<compile_context>
chip_gen: v7x
topology: tpu7x:2x2x1
jax: 0.10.0
libtpu: 0.0.40
codegen_flags: <defaults>
</compile_context>

<pallas_src>
import functools

import jax
import jax.numpy as jnp
from jax.experimental import pallas as pl
from jax.experimental.pallas import tpu as pltpu


_TM_MAX = 512  # max rows of the im2col matrix per grid step


def _ru(x, m):
    return (x + m - 1) // m * m


def _choose_tiles(m):
    """Pick (tile_m, padded_m) so tile_m | padded_m and tile_m % 8 == 0."""
    if m <= _TM_MAX:
        tm = max(8, _ru(m, 8))
        return tm, tm
    return _TM_MAX, _ru(m, _TM_MAX)


def _apply_act(y, act):
    if act == "leaky":
        return jnp.where(y > 0, y, 0.2 * y)
    if act == "sigmoid":
        # numerically stable sigmoid via tanh (EUP path, f32).
        return 0.5 * (jnp.tanh(0.5 * y) + 1.0)
    return y


# ----------------------------- Pallas kernels -----------------------------

def _conv_act_kernel(a_ref, w_ref, o_ref, *, act):
    """One fused step: (TM, K)bf16 @ (K, C)bf16 -> f32, activation, store."""
    y = jnp.dot(a_ref[...], w_ref[...], preferred_element_type=jnp.float32)
    o_ref[...] = _apply_act(y, act)


def _conv_bn_act_kernel(a_ref, w_ref, g_ref, b_ref, o_ref, sum_ref, ssq_ref,
                        *, m_real, eps, act, tm):
    """Fused conv + BatchNorm(batch stats) + activation.

    The output block (Mp, C) is resident in VMEM for the whole grid: each step
    writes its matmul tile into it and accumulates per-channel sum / sum-sq in
    VMEM scratch; the last step turns the stats into scale/shift and applies
    the affine + activation in place before the single HBM writeback.
    """
    i = pl.program_id(0)

    @pl.when(i == 0)
    def _init():
        sum_ref[...] = jnp.zeros_like(sum_ref)
        ssq_ref[...] = jnp.zeros_like(ssq_ref)

    y = jnp.dot(a_ref[...], w_ref[...], preferred_element_type=jnp.float32)

    row0 = pl.multiple_of(i * tm, tm)
    o_ref[pl.ds(row0, tm), :] = y

    sum_ref[...] += jnp.sum(y, axis=0, keepdims=True)
    ssq_ref[...] += jnp.sum(y * y, axis=0, keepdims=True)

    @pl.when(i == pl.num_programs(0) - 1)
    def _finalize():
        inv_m = 1.0 / m_real
        mean = sum_ref[...] * inv_m
        var = jnp.maximum(ssq_ref[...] * inv_m - mean * mean, 0.0)
        scale = g_ref[...] * jax.lax.rsqrt(var + eps)   # (1, C)
        shift = b_ref[...] - mean * scale               # (1, C)
        yn = o_ref[...] * scale + shift
        o_ref[...] = _apply_act(yn, act)


# ------------------------------ conv plumbing ------------------------------

def _im2col(x_nhwc, kh, kw, stride, pad):
    """Patch extraction (XLA glue): (N,H,W,Cin) -> (N*Ho*Wo, KH*KW*Cin)."""
    n, h, w, cin = x_nhwc.shape
    ho = (h + 2 * pad - kh) // stride + 1
    wo = (w + 2 * pad - kw) // stride + 1
    xp = x_nhwc
    if pad:
        xp = jnp.pad(x_nhwc, ((0, 0), (pad, pad), (pad, pad), (0, 0)))
    cols = [xp[:, i:i + stride * ho:stride, j:j + stride * wo:stride, :]
            for i in range(kh) for j in range(kw)]
    patches = jnp.stack(cols, axis=3)                 # (N,Ho,Wo,KH*KW,Cin)
    return patches.reshape(n * ho * wo, kh * kw * cin), (n, ho, wo)


def _conv_block(x_nhwc, w_kc, bn, stride, pad, act, eps=1e-5):
    """Conv(no bias) [+ BatchNorm] + activation as ONE fused pallas_call."""
    k, cout = w_kc.shape

    # bf16 only for the MXU operands; everything elementwise stays f32.
    patches, (n, ho, wo) = _im2col(x_nhwc.astype(jnp.bfloat16), 4, 4,
                                   stride, pad)
    m = patches.shape[0]
    tm, mp = _choose_tiles(m)
    if mp != m:
        patches = jnp.pad(patches, ((0, mp - m), (0, 0)))  # zero rows only
    grid = (mp // tm,)

    if bn is None:
        out = pl.pallas_call(
            functools.partial(_conv_act_kernel, act=act),
            out_shape=jax.ShapeDtypeStruct((mp, cout), jnp.float32),
            grid=grid,
            in_specs=[
                pl.BlockSpec((tm, k), lambda i: (i, 0)),
                pl.BlockSpec((k, cout), lambda i: (0, 0)),
            ],
            out_specs=pl.BlockSpec((tm, cout), lambda i: (i, 0)),
            compiler_params=pltpu.CompilerParams(
                dimension_semantics=("parallel",)),
        )(patches, w_kc)
    else:
        # Whole (Mp, Cout) f32 activation stays resident in VMEM.  Tiny at
        # DCGAN test scales; guard against silently blowing VMEM elsewhere.
        assert mp * cout * 4 <= 24 * 1024 * 1024, (
            "resident BN activation too large for VMEM; use a streaming "
            "two-pass variant for this shape")
        gamma, beta = bn
        out = pl.pallas_call(
            functools.partial(_conv_bn_act_kernel, m_real=float(m), eps=eps,
                              act=act, tm=tm),
            out_shape=jax.ShapeDtypeStruct((mp, cout), jnp.float32),
            grid=grid,
            in_specs=[
                pl.BlockSpec((tm, k), lambda i: (i, 0)),
                pl.BlockSpec((k, cout), lambda i: (0, 0)),
                pl.BlockSpec((1, cout), lambda i: (0, 0)),
                pl.BlockSpec((1, cout), lambda i: (0, 0)),
            ],
            out_specs=pl.BlockSpec((mp, cout), lambda i: (0, 0)),
            scratch_shapes=[pltpu.VMEM((1, cout), jnp.float32),
                            pltpu.VMEM((1, cout), jnp.float32)],
            compiler_params=pltpu.CompilerParams(
                dimension_semantics=("arbitrary",)),
        )(patches, w_kc, gamma, beta)

    return out[:m].reshape(n, ho, wo, cout)


# ------------------------------- the model --------------------------------

def init_discriminator_params(key, ndf=8):
    """DCGAN-style N(0, 0.02) conv weights, pre-reshaped to (K, Cout) bf16."""
    chans = [(3, ndf), (ndf, 2 * ndf), (2 * ndf, 4 * ndf),
             (4 * ndf, 8 * ndf), (8 * ndf, 1)]
    keys = jax.random.split(key, len(chans))
    weights = []
    for k, (cin, cout) in zip(keys, chans):
        w = 0.02 * jax.random.normal(k, (4, 4, cin, cout), jnp.float32)  # HWIO
        # (kh, kw, cin) flattened -> matches the im2col K ordering.
        weights.append(w.reshape(4 * 4 * cin, cout).astype(jnp.bfloat16))
    bns = [None,
           (jnp.ones((1, 2 * ndf), jnp.float32), jnp.zeros((1, 2 * ndf), jnp.float32)),
           (jnp.ones((1, 4 * ndf), jnp.float32), jnp.zeros((1, 4 * ndf), jnp.float32)),
           (jnp.ones((1, 8 * ndf), jnp.float32), jnp.zeros((1, 8 * ndf), jnp.float32)),
           None]
    return weights, bns


@jax.jit
def discriminator_forward(x_nchw, weights, bns):
    # layout: input NCHW (PyTorch convention) -> NHWC internally.
    x = jnp.transpose(x_nchw, (0, 2, 3, 1)).astype(jnp.float32)

    layer_cfg = [
        (2, 1, "leaky"),    # conv1
        (2, 1, "leaky"),    # conv2 + BN
        (2, 1, "leaky"),    # conv3 + BN
        (2, 1, "leaky"),    # conv4 + BN
        (1, 0, "sigmoid"),  # conv5
    ]
    for w, bn, (stride, pad, act) in zip(weights, bns, layer_cfg):
        x = _conv_block(x, w, bn, stride, pad, act)

    # (N, 1, 1, 1) -> .view(-1, 1).squeeze(1) -> (N,)
    return x.reshape(-1)


# ----------------------------------- main ----------------------------------

if __name__ == "__main__":
    key = jax.random.PRNGKey(0)
    k_x, k_p = jax.random.split(key)

    ndf = 8
    batch = 2
    # DCGAN discriminator expects 64x64 inputs (so the final 4x4 conv -> 1x1).
    x = jax.random.normal(k_x, (batch, 3, 64, 64), jnp.float32)

    weights, bns = init_discriminator_params(k_p, ndf=ndf)

    out = discriminator_forward(x, weights, bns)
    out = jax.block_until_ready(out)

    assert out.shape == (batch,), out.shape
    assert bool(jnp.all((out > 0.0) & (out < 1.0))), "sigmoid range violated"
    print("KERNEL_OK")
</pallas_src>

<mosaic_0001>
module attributes {stable_mosaic.version = 11 : i64} {
  func.func @_conv_act_kernel(%arg0: i32, %arg1: memref<512x48xbf16, #tpu.memory_space<vmem>>, %arg2: memref<48x8xbf16, #tpu.memory_space<vmem>>, %arg3: memref<512x8xf32, #tpu.memory_space<vmem>>) attributes {dimension_semantics = [#tpu.dimension_semantics<parallel>], iteration_bounds = array<i64: 4>, scalar_prefetch = 0 : i64, scratch_operands = 0 : i64, tpu.core_type = #tpu.core_type<tc>, window_params = [{transform_indices = @transform_0, window_bounds = array<i64: 512, 48>}, {pipeline_mode = #tpu.pipeline_mode<synchronous>, transform_indices = @transform_1, window_bounds = array<i64: 48, 8>}, {transform_indices = @transform_2, window_bounds = array<i64: 512, 8>}]} {
    %c0 = arith.constant 0 : index
    %c0_0 = arith.constant 0 : index
    %0 = vector.load %arg1[%c0, %c0_0] : memref<512x48xbf16, #tpu.memory_space<vmem>>, vector<512x48xbf16>
    %c0_1 = arith.constant 0 : index
    %c0_2 = arith.constant 0 : index
    %1 = vector.load %arg2[%c0_1, %c0_2] : memref<48x8xbf16, #tpu.memory_space<vmem>>, vector<48x8xbf16>
    %cst = arith.constant dense<0.000000e+00> : vector<512x8xf32>
    %2 = tpu.matmul %0, %1, %cst {dimension_numbers = #tpu.dot_dimension_numbers<[1], [0], [0], [1], [0, 0, 1, 1], [], []>} : vector<512x48xbf16>, vector<48x8xbf16>, vector<512x8xf32> -> vector<512x8xf32>
    %cst_3 = arith.constant 0.000000e+00 : f32
    %3 = vector.broadcast %cst_3 : f32 to vector<512x8xf32>
    %4 = arith.cmpf ogt, %2, %3 : vector<512x8xf32>
    %cst_4 = arith.constant 2.000000e-01 : f32
    %5 = vector.broadcast %cst_4 : f32 to vector<512x8xf32>
    %6 = arith.mulf %5, %2 : vector<512x8xf32>
    %7 = arith.select %4, %2, %6 : vector<512x8xi1>, vector<512x8xf32>
    %c0_5 = arith.constant 0 : index
    %c0_6 = arith.constant 0 : index
    %8 = vector.load %arg3[%c0_5, %c0_6] : memref<512x8xf32, #tpu.memory_space<vmem>>, vector<512x8xf32>
    tpu.vector_store %arg3[%c0_5, %c0_6], %7 {strides = array<i32>} : memref<512x8xf32, #tpu.memory_space<vmem>>, vector<512x8xf32>,
    return
  }
  func.func @transform_0(%arg0: i32) -> (i32, i32) {
    %c0_i32 = arith.constant 0 : i32
    %c0_i32_0 = arith.constant 0 : i32
    return %arg0, %c0_i32 : i32, i32
  }
  func.func @transform_1(%arg0: i32) -> (i32, i32) {
    %c0_i32 = arith.constant 0 : i32
    %c0_i32_0 = arith.constant 0 : i32
    %c0_i32_1 = arith.constant 0 : i32
    return %c0_i32, %c0_i32_0 : i32, i32
  }
  func.func @transform_2(%arg0: i32) -> (i32, i32) {
    %c0_i32 = arith.constant 0 : i32
    %c0_i32_0 = arith.constant 0 : i32
    return %arg0, %c0_i32 : i32, i32
  }
}

module attributes {stable_mosaic.version = 11 : i64} {
  func.func @_conv_bn_act_kernel(%arg0: i32, %arg1: memref<512x128xbf16, #tpu.memory_space<vmem>>, %arg2: memref<128x16xbf16, #tpu.memory_space<vmem>>, %arg3: memref<1x16xf32, #tpu.memory_space<vmem>>, %arg4: memref<1x16xf32, #tpu.memory_space<vmem>>, %arg5: memref<512x16xf32, #tpu.memory_space<vmem>>, %arg6: memref<1x16xf32, #tpu.memory_space<vmem>>, %arg7: memref<1x16xf32, #tpu.memory_space<vmem>>) attributes {dimension_semantics = [#tpu.dimension_semantics<arbitrary>], iteration_bounds = array<i64: 1>, scalar_prefetch = 0 : i64, scratch_operands = 2 : i64, tpu.core_type = #tpu.core_type<tc>, window_params = [{transform_indices = @transform_0, window_bounds = array<i64: 512, 128>}, {pipeline_mode = #tpu.pipeline_mode<synchronous>, transform_indices = @transform_1, window_bounds = array<i64: 128, 16>}, {pipeline_mode = #tpu.pipeline_mode<synchronous>, transform_indices = @transform_2, window_bounds = array<i64: 1, 16>}, {pipeline_mode = #tpu.pipeline_mode<synchronous>, transform_indices = @transform_3, window_bounds = array<i64: 1, 16>}, {pipeline_mode = #tpu.pipeline_mode<synchronous>, transform_indices = @transform_4, window_bounds = array<i64: 512, 16>}]} {
    %c0_i32 = arith.constant 0 : i32
    %0 = arith.cmpi eq, %arg0, %c0_i32 : i32
    %1 = arith.extui %0 : i1 to i32
    %c0_i32_0 = arith.constant 0 : i32
    %2 = arith.cmpi ne, %1, %c0_i32_0 : i32
    scf.if %2 {
      %cst_17 = arith.constant 0.000000e+00 : f32
      %24 = vector.broadcast %cst_17 : f32 to vector<1x16xf32>
      %c0_18 = arith.constant 0 : index
      %c0_19 = arith.constant 0 : index
      %25 = vector.load %arg6[%c0_18, %c0_19] : memref<1x16xf32, #tpu.memory_space<vmem>>, vector<1x16xf32>
      tpu.vector_store %arg6[%c0_18, %c0_19], %24 {strides = array<i32>} : memref<1x16xf32, #tpu.memory_space<vmem>>, vector<1x16xf32>,
      %cst_20 = arith.constant 0.000000e+00 : f32
      %26 = vector.broadcast %cst_20 : f32 to vector<1x16xf32>
      %c0_21 = arith.constant 0 : index
      %c0_22 = arith.constant 0 : index
      %27 = vector.load %arg7[%c0_21, %c0_22] : memref<1x16xf32, #tpu.memory_space<vmem>>, vector<1x16xf32>
      tpu.vector_store %arg7[%c0_21, %c0_22], %26 {strides = array<i32>} : memref<1x16xf32, #tpu.memory_space<vmem>>, vector<1x16xf32>,
    } else {
    }
    %c0 = arith.constant 0 : index
    %c0_1 = arith.constant 0 : index
    %3 = vector.load %arg1[%c0, %c0_1] : memref<512x128xbf16, #tpu.memory_space<vmem>>, vector<512x128xbf16>
    %c0_2 = arith.constant 0 : index
    %c0_3 = arith.constant 0 : index
    %4 = vector.load %arg2[%c0_2, %c0_3] : memref<128x16xbf16, #tpu.memory_space<vmem>>, vector<128x16xbf16>
    %cst = arith.constant dense<0.000000e+00> : vector<512x16xf32>
    %5 = tpu.matmul %3, %4, %cst {dimension_numbers = #tpu.dot_dimension_numbers<[1], [0], [0], [1], [0, 0, 1, 1], [], []>} : vector<512x128xbf16>, vector<128x16xbf16>, vector<512x16xf32> -> vector<512x16xf32>
    %c512_i32 = arith.constant 512 : i32
    %6 = arith.muli %arg0, %c512_i32 : i32
    %7 = tpu.assume_multiple %6, 512 : i32
    %8 = arith.index_cast %7 : i32 to index
    %c0_4 = arith.constant 0 : index
    %9 = vector.load %arg5[%8, %c0_4] : memref<512x16xf32, #tpu.memory_space<vmem>>, vector<512x16xf32>
    tpu.vector_store %arg5[%8, %c0_4], %5 {strides = array<i32>} : memref<512x16xf32, #tpu.memory_space<vmem>>, vector<512x16xf32>,
    %c0_5 = arith.constant 0 : index
    %c0_6 = arith.constant 0 : index
    %10 = vector.load %arg6[%c0_5, %c0_6] : memref<1x16xf32, #tpu.memory_space<vmem>>, vector<1x16xf32>
    %cst_7 = arith.constant dense<0.000000e+00> : vector<16xf32>
    %11 = vector.multi_reduction <add>, %5, %cst_7 [0] : vector<512x16xf32> to vector<16xf32>
    %12 = vector.shape_cast %11 : vector<16xf32> to vector<1x16xf32>
    %13 = arith.addf %10, %12 : vector<1x16xf32>
    %c0_8 = arith.constant 0 : index
    %c0_9 = arith.constant 0 : index
    %14 = vector.load %arg6[%c0_8, %c0_9] : memref<1x16xf32, #tpu.memory_space<vmem>>, vector<1x16xf32>
    tpu.vector_store %arg6[%c0_8, %c0_9], %13 {strides = array<i32>} : memref<1x16xf32, #tpu.memory_space<vmem>>, vector<1x16xf32>,
    %c0_10 = arith.constant 0 : index
    %c0_11 = arith.constant 0 : index
    %15 = vector.load %arg7[%c0_10, %c0_11] : memref<1x16xf32, #tpu.memory_space<vmem>>, vector<1x16xf32>
    %16 = arith.mulf %5, %5 : vector<512x16xf32>
    %cst_12 = arith.constant dense<0.000000e+00> : vector<16xf32>
    %17 = vector.multi_reduction <add>, %16, %cst_12 [0] : vector<512x16xf32> to vector<16xf32>
    %18 = vector.shape_cast %17 : vector<16xf32> to vector<1x16xf32>
    %19 = arith.addf %15, %18 : vector<1x16xf32>
    %c0_13 = arith.constant 0 : index
    %c0_14 = arith.constant 0 : index
    %20 = vector.load %arg7[%c0_13, %c0_14] : memref<1x16xf32, #tpu.memory_space<vmem>>, vector<1x16xf32>
    tpu.vector_store %arg7[%c0_13, %c0_14], %19 {strides = array<i32>} : memref<1x16xf32, #tpu.memory_space<vmem>>, vector<1x16xf32>,
    %c0_i32_15 = arith.constant 0 : i32
    %21 = arith.cmpi eq, %arg0, %c0_i32_15 : i32
    %22 = arith.extui %21 : i1 to i32
    %c0_i32_16 = arith.constant 0 : i32
    %23 = arith.cmpi ne, %22, %c0_i32_16 : i32
    scf.if %23 {
      %c0_17 = arith.constant 0 : index
      %c0_18 = arith.constant 0 : index
      %24 = vector.load %arg6[%c0_17, %c0_18] : memref<1x16xf32, #tpu.memory_space<vmem>>, vector<1x16xf32>
      %cst_19 = arith.constant 0.001953125 : f32
      %25 = vector.broadcast %cst_19 : f32 to vector<1x16xf32>
      %26 = arith.mulf %24, %25 : vector<1x16xf32>
      %c0_20 = arith.constant 0 : index
      %c0_21 = arith.constant 0 : index
      %27 = vector.load %arg7[%c0_20, %c0_21] : memref<1x16xf32, #tpu.memory_space<vmem>>, vector<1x16xf32>
      %cst_22 = arith.constant 0.001953125 : f32
      %28 = vector.broadcast %cst_22 : f32 to vector<1x16xf32>
      %29 = arith.mulf %27, %28 : vector<1x16xf32>
      %30 = arith.mulf %26, %26 : vector<1x16xf32>
      %31 = arith.subf %29, %30 : vector<1x16xf32>
      %cst_23 = arith.constant 0.000000e+00 : f32
      %32 = vector.broadcast %cst_23 : f32 to vector<1x16xf32>
      %33 = arith.maximumf %31, %32 : vector<1x16xf32>
      %c0_24 = arith.constant 0 : index
      %c0_25 = arith.constant 0 : index
      %34 = vector.load %arg3[%c0_24, %c0_25] : memref<1x16xf32, #tpu.memory_space<vmem>>, vector<1x16xf32>
      %cst_26 = arith.constant 9.99999974E-6 : f32
      %35 = vector.broadcast %cst_26 : f32 to vector<1x16xf32>
      %36 = arith.addf %33, %35 : vector<1x16xf32>
      %37 = math.rsqrt %36 : vector<1x16xf32>
      %38 = arith.mulf %34, %37 : vector<1x16xf32>
      %c0_27 = arith.constant 0 : index
      %c0_28 = arith.constant 0 : index
      %39 = vector.load %arg4[%c0_27, %c0_28] : memref<1x16xf32, #tpu.memory_space<vmem>>, vector<1x16xf32>
      %40 = arith.mulf %26, %38 : vector<1x16xf32>
      %41 = arith.subf %39, %40 : vector<1x16xf32>
      %c0_29 = arith.constant 0 : index
      %c0_30 = arith.constant 0 : index
      %42 = vector.load %arg5[%c0_29, %c0_30] : memref<512x16xf32, #tpu.memory_space<vmem>>, vector<512x16xf32>
      %43 = vector.broadcast %38 : vector<1x16xf32> to vector<512x16xf32>
      %44 = arith.mulf %42, %43 : vector<512x16xf32>
      %45 = vector.broadcast %41 : vector<1x16xf32> to vector<512x16xf32>
      %46 = arith.addf %44, %45 : vector<512x16xf32>
      %cst_31 = arith.constant 0.000000e+00 : f32
      %47 = vector.broadcast %cst_31 : f32 to vector<512x16xf32>
      %48 = arith.cmpf ogt, %46, %47 : vector<512x16xf32>
      %cst_32 = arith.constant 2.000000e-01 : f32
      %49 = vector.broadcast %cst_32 : f32 to vector<512x16xf32>
      %50 = arith.mulf %49, %46 : vector<512x16xf32>
      %51 = arith.select %48, %46, %50 : vector<512x16xi1>, vector<512x16xf32>
      %c0_33 = arith.constant 0 : index
      %c0_34 = arith.constant 0 : index
      %52 = vector.load %arg5[%c0_33, %c0_34] : memref<512x16xf32, #tpu.memory_space<vmem>>, vector<512x16xf32>
      tpu.vector_store %arg5[%c0_33, %c0_34], %51 {strides = array<i32>} : memref<512x16xf32, #tpu.memory_space<vmem>>, vector<512x16xf32>,
    } else {
    }
    return
  }
  func.func @transform_0(%arg0: i32) -> (i32, i32) {
    %c0_i32 = arith.constant 0 : i32
    %c0_i32_0 = arith.constant 0 : i32
    return %arg0, %c0_i32 : i32, i32
  }
  func.func @transform_1(%arg0: i32) -> (i32, i32) {
    %c0_i32 = arith.constant 0 : i32
    %c0_i32_0 = arith.constant 0 : i32
    %c0_i32_1 = arith.constant 0 : i32
    return %c0_i32, %c0_i32_0 : i32, i32
  }
  func.func @transform_2(%arg0: i32) -> (i32, i32) {
    %c0_i32 = arith.constant 0 : i32
    %c0_i32_0 = arith.constant 0 : i32
    %c0_i32_1 = arith.constant 0 : i32
    return %c0_i32, %c0_i32_0 : i32, i32
  }
  func.func @transform_3(%arg0: i32) -> (i32, i32) {
    %c0_i32 = arith.constant 0 : i32
    %c0_i32_0 = arith.constant 0 : i32
    %c0_i32_1 = arith.constant 0 : i32
    return %c0_i32, %c0_i32_0 : i32, i32
  }
  func.func @transform_4(%arg0: i32) -> (i32, i32) {
    %c0_i32 = arith.constant 0 : i32
    %c0_i32_0 = arith.constant 0 : i32
    %c0_i32_1 = arith.constant 0 : i32
    return %c0_i32, %c0_i32_0 : i32, i32
  }
}

module attributes {stable_mosaic.version = 11 : i64} {
  func.func @_conv_bn_act_kernel(%arg0: i32, %arg1: memref<128x256xbf16, #tpu.memory_space<vmem>>, %arg2: memref<256x32xbf16, #tpu.memory_space<vmem>>, %arg3: memref<1x32xf32, #tpu.memory_space<vmem>>, %arg4: memref<1x32xf32, #tpu.memory_space<vmem>>, %arg5: memref<128x32xf32, #tpu.memory_space<vmem>>, %arg6: memref<1x32xf32, #tpu.memory_space<vmem>>, %arg7: memref<1x32xf32, #tpu.memory_space<vmem>>) attributes {dimension_semantics = [#tpu.dimension_semantics<arbitrary>], iteration_bounds = array<i64: 1>, scalar_prefetch = 0 : i64, scratch_operands = 2 : i64, tpu.core_type = #tpu.core_type<tc>, window_params = [{transform_indices = @transform_0, window_bounds = array<i64: 128, 256>}, {pipeline_mode = #tpu.pipeline_mode<synchronous>, transform_indices = @transform_1, window_bounds = array<i64: 256, 32>}, {pipeline_mode = #tpu.pipeline_mode<synchronous>, transform_indices = @transform_2, window_bounds = array<i64: 1, 32>}, {pipeline_mode = #tpu.pipeline_mode<synchronous>, transform_indices = @transform_3, window_bounds = array<i64: 1, 32>}, {pipeline_mode = #tpu.pipeline_mode<synchronous>, transform_indices = @transform_4, window_bounds = array<i64: 128, 32>}]} {
    %c0_i32 = arith.constant 0 : i32
    %0 = arith.cmpi eq, %arg0, %c0_i32 : i32
    %1 = arith.extui %0 : i1 to i32
    %c0_i32_0 = arith.constant 0 : i32
    %2 = arith.cmpi ne, %1, %c0_i32_0 : i32
    scf.if %2 {
      %cst_17 = arith.constant 0.000000e+00 : f32
      %24 = vector.broadcast %cst_17 : f32 to vector<1x32xf32>
      %c0_18 = arith.constant 0 : index
      %c0_19 = arith.constant 0 : index
      %25 = vector.load %arg6[%c0_18, %c0_19] : memref<1x32xf32, #tpu.memory_space<vmem>>, vector<1x32xf32>
      tpu.vector_store %arg6[%c0_18, %c0_19], %24 {strides = array<i32>} : memref<1x32xf32, #tpu.memory_space<vmem>>, vector<1x32xf32>,
      %cst_20 = arith.constant 0.000000e+00 : f32
      %26 = vector.broadcast %cst_20 : f32 to vector<1x32xf32>
      %c0_21 = arith.constant 0 : index
      %c0_22 = arith.constant 0 : index
      %27 = vector.load %arg7[%c0_21, %c0_22] : memref<1x32xf32, #tpu.memory_space<vmem>>, vector<1x32xf32>
      tpu.vector_store %arg7[%c0_21, %c0_22], %26 {strides = array<i32>} : memref<1x32xf32, #tpu.memory_space<vmem>>, vector<1x32xf32>,
    } else {
    }
    %c0 = arith.constant 0 : index
    %c0_1 = arith.constant 0 : index
    %3 = vector.load %arg1[%c0, %c0_1] : memref<128x256xbf16, #tpu.memory_space<vmem>>, vector<128x256xbf16>
    %c0_2 = arith.constant 0 : index
    %c0_3 = arith.constant 0 : index
    %4 = vector.load %arg2[%c0_2, %c0_3] : memref<256x32xbf16, #tpu.memory_space<vmem>>, vector<256x32xbf16>
    %cst = arith.constant dense<0.000000e+00> : vector<128x32xf32>
    %5 = tpu.matmul %3, %4, %cst {dimension_numbers = #tpu.dot_dimension_numbers<[1], [0], [0], [1], [0, 0, 1, 1], [], []>} : vector<128x256xbf16>, vector<256x32xbf16>, vector<128x32xf32> -> vector<128x32xf32>
    %c128_i32 = arith.constant 128 : i32
    %6 = arith.muli %arg0, %c128_i32 : i32
    %7 = tpu.assume_multiple %6, 128 : i32
    %8 = arith.index_cast %7 : i32 to index
    %c0_4 = arith.constant 0 : index
    %9 = vector.load %arg5[%8, %c0_4] : memref<128x32xf32, #tpu.memory_space<vmem>>, vector<128x32xf32>
    tpu.vector_store %arg5[%8, %c0_4], %5 {strides = array<i32>} : memref<128x32xf32, #tpu.memory_space<vmem>>, vector<128x32xf32>,
    %c0_5 = arith.constant 0 : index
    %c0_6 = arith.constant 0 : index
    %10 = vector.load %arg6[%c0_5, %c0_6] : memref<1x32xf32, #tpu.memory_space<vmem>>, vector<1x32xf32>
    %cst_7 = arith.constant dense<0.000000e+00> : vector<32xf32>
    %11 = vector.multi_reduction <add>, %5, %cst_7 [0] : vector<128x32xf32> to vector<32xf32>
    %12 = vector.shape_cast %11 : vector<32xf32> to vector<1x32xf32>
    %13 = arith.addf %10, %12 : vector<1x32xf32>
    %c0_8 = arith.constant 0 : index
    %c0_9 = arith.constant 0 : index
    %14 = vector.load %arg6[%c0_8, %c0_9] : memref<1x32xf32, #tpu.memory_space<vmem>>, vector<1x32xf32>
    tpu.vector_store %arg6[%c0_8, %c0_9], %13 {strides = array<i32>} : memref<1x32xf32, #tpu.memory_space<vmem>>, vector<1x32xf32>,
    %c0_10 = arith.constant 0 : index
    %c0_11 = arith.constant 0 : index
    %15 = vector.load %arg7[%c0_10, %c0_11] : memref<1x32xf32, #tpu.memory_space<vmem>>, vector<1x32xf32>
    %16 = arith.mulf %5, %5 : vector<128x32xf32>
    %cst_12 = arith.constant dense<0.000000e+00> : vector<32xf32>
    %17 = vector.multi_reduction <add>, %16, %cst_12 [0] : vector<128x32xf32> to vector<32xf32>
    %18 = vector.shape_cast %17 : vector<32xf32> to vector<1x32xf32>
    %19 = arith.addf %15, %18 : vector<1x32xf32>
    %c0_13 = arith.constant 0 : index
    %c0_14 = arith.constant 0 : index
    %20 = vector.load %arg7[%c0_13, %c0_14] : memref<1x32xf32, #tpu.memory_space<vmem>>, vector<1x32xf32>
    tpu.vector_store %arg7[%c0_13, %c0_14], %19 {strides = array<i32>} : memref<1x32xf32, #tpu.memory_space<vmem>>, vector<1x32xf32>,
    %c0_i32_15 = arith.constant 0 : i32
    %21 = arith.cmpi eq, %arg0, %c0_i32_15 : i32
    %22 = arith.extui %21 : i1 to i32
    %c0_i32_16 = arith.constant 0 : i32
    %23 = arith.cmpi ne, %22, %c0_i32_16 : i32
    scf.if %23 {
      %c0_17 = arith.constant 0 : index
      %c0_18 = arith.constant 0 : index
      %24 = vector.load %arg6[%c0_17, %c0_18] : memref<1x32xf32, #tpu.memory_space<vmem>>, vector<1x32xf32>
      %cst_19 = arith.constant 7.812500e-03 : f32
      %25 = vector.broadcast %cst_19 : f32 to vector<1x32xf32>
      %26 = arith.mulf %24, %25 : vector<1x32xf32>
      %c0_20 = arith.constant 0 : index
      %c0_21 = arith.constant 0 : index
      %27 = vector.load %arg7[%c0_20, %c0_21] : memref<1x32xf32, #tpu.memory_space<vmem>>, vector<1x32xf32>
      %cst_22 = arith.constant 7.812500e-03 : f32
      %28 = vector.broadcast %cst_22 : f32 to vector<1x32xf32>
      %29 = arith.mulf %27, %28 : vector<1x32xf32>
      %30 = arith.mulf %26, %26 : vector<1x32xf32>
      %31 = arith.subf %29, %30 : vector<1x32xf32>
      %cst_23 = arith.constant 0.000000e+00 : f32
      %32 = vector.broadcast %cst_23 : f32 to vector<1x32xf32>
      %33 = arith.maximumf %31, %32 : vector<1x32xf32>
      %c0_24 = arith.constant 0 : index
      %c0_25 = arith.constant 0 : index
      %34 = vector.load %arg3[%c0_24, %c0_25] : memref<1x32xf32, #tpu.memory_space<vmem>>, vector<1x32xf32>
      %cst_26 = arith.constant 9.99999974E-6 : f32
      %35 = vector.broadcast %cst_26 : f32 to vector<1x32xf32>
      %36 = arith.addf %33, %35 : vector<1x32xf32>
      %37 = math.rsqrt %36 : vector<1x32xf32>
      %38 = arith.mulf %34, %37 : vector<1x32xf32>
      %c0_27 = arith.constant 0 : index
      %c0_28 = arith.constant 0 : index
      %39 = vector.load %arg4[%c0_27, %c0_28] : memref<1x32xf32, #tpu.memory_space<vmem>>, vector<1x32xf32>
      %40 = arith.mulf %26, %38 : vector<1x32xf32>
      %41 = arith.subf %39, %40 : vector<1x32xf32>
      %c0_29 = arith.constant 0 : index
      %c0_30 = arith.constant 0 : index
      %42 = vector.load %arg5[%c0_29, %c0_30] : memref<128x32xf32, #tpu.memory_space<vmem>>, vector<128x32xf32>
      %43 = vector.broadcast %38 : vector<1x32xf32> to vector<128x32xf32>
      %44 = arith.mulf %42, %43 : vector<128x32xf32>
      %45 = vector.broadcast %41 : vector<1x32xf32> to vector<128x32xf32>
      %46 = arith.addf %44, %45 : vector<128x32xf32>
      %cst_31 = arith.constant 0.000000e+00 : f32
      %47 = vector.broadcast %cst_31 : f32 to vector<128x32xf32>
      %48 = arith.cmpf ogt, %46, %47 : vector<128x32xf32>
      %cst_32 = arith.constant 2.000000e-01 : f32
      %49 = vector.broadcast %cst_32 : f32 to vector<128x32xf32>
      %50 = arith.mulf %49, %46 : vector<128x32xf32>
      %51 = arith.select %48, %46, %50 : vector<128x32xi1>, vector<128x32xf32>
      %c0_33 = arith.constant 0 : index
      %c0_34 = arith.constant 0 : index
      %52 = vector.load %arg5[%c0_33, %c0_34] : memref<128x32xf32, #tpu.memory_space<vmem>>, vector<128x32xf32>
      tpu.vector_store %arg5[%c0_33, %c0_34], %51 {strides = array<i32>} : memref<128x32xf32, #tpu.memory_space<vmem>>, vector<128x32xf32>,
    } else {
    }
    return
  }
  func.func @transform_0(%arg0: i32) -> (i32, i32) {
    %c0_i32 = arith.constant 0 : i32
    %c0_i32_0 = arith.constant 0 : i32
    return %arg0, %c0_i32 : i32, i32
  }
  func.func @transform_1(%arg0: i32) -> (i32, i32) {
    %c0_i32 = arith.constant 0 : i32
    %c0_i32_0 = arith.constant 0 : i32
    %c0_i32_1 = arith.constant 0 : i32
    return %c0_i32, %c0_i32_0 : i32, i32
  }
  func.func @transform_2(%arg0: i32) -> (i32, i32) {
    %c0_i32 = arith.constant 0 : i32
    %c0_i32_0 = arith.constant 0 : i32
    %c0_i32_1 = arith.constant 0 : i32
    return %c0_i32, %c0_i32_0 : i32, i32
  }
  func.func @transform_3(%arg0: i32) -> (i32, i32) {
    %c0_i32 = arith.constant 0 : i32
    %c0_i32_0 = arith.constant 0 : i32
    %c0_i32_1 = arith.constant 0 : i32
    return %c0_i32, %c0_i32_0 : i32, i32
  }
  func.func @transform_4(%arg0: i32) -> (i32, i32) {
    %c0_i32 = arith.constant 0 : i32
    %c0_i32_0 = arith.constant 0 : i32
    %c0_i32_1 = arith.constant 0 : i32
    return %c0_i32, %c0_i32_0 : i32, i32
  }
}

module attributes {stable_mosaic.version = 11 : i64} {
  func.func @_conv_bn_act_kernel(%arg0: i32, %arg1: memref<32x512xbf16, #tpu.memory_space<vmem>>, %arg2: memref<512x64xbf16, #tpu.memory_space<vmem>>, %arg3: memref<1x64xf32, #tpu.memory_space<vmem>>, %arg4: memref<1x64xf32, #tpu.memory_space<vmem>>, %arg5: memref<32x64xf32, #tpu.memory_space<vmem>>, %arg6: memref<1x64xf32, #tpu.memory_space<vmem>>, %arg7: memref<1x64xf32, #tpu.memory_space<vmem>>) attributes {dimension_semantics = [#tpu.dimension_semantics<arbitrary>], iteration_bounds = array<i64: 1>, scalar_prefetch = 0 : i64, scratch_operands = 2 : i64, tpu.core_type = #tpu.core_type<tc>, window_params = [{transform_indices = @transform_0, window_bounds = array<i64: 32, 512>}, {pipeline_mode = #tpu.pipeline_mode<synchronous>, transform_indices = @transform_1, window_bounds = array<i64: 512, 64>}, {pipeline_mode = #tpu.pipeline_mode<synchronous>, transform_indices = @transform_2, window_bounds = array<i64: 1, 64>}, {pipeline_mode = #tpu.pipeline_mode<synchronous>, transform_indices = @transform_3, window_bounds = array<i64: 1, 64>}, {pipeline_mode = #tpu.pipeline_mode<synchronous>, transform_indices = @transform_4, window_bounds = array<i64: 32, 64>}]} {
    %c0_i32 = arith.constant 0 : i32
    %0 = arith.cmpi eq, %arg0, %c0_i32 : i32
    %1 = arith.extui %0 : i1 to i32
    %c0_i32_0 = arith.constant 0 : i32
    %2 = arith.cmpi ne, %1, %c0_i32_0 : i32
    scf.if %2 {
      %cst_17 = arith.constant 0.000000e+00 : f32
      %24 = vector.broadcast %cst_17 : f32 to vector<1x64xf32>
      %c0_18 = arith.constant 0 : index
      %c0_19 = arith.constant 0 : index
      %25 = vector.load %arg6[%c0_18, %c0_19] : memref<1x64xf32, #tpu.memory_space<vmem>>, vector<1x64xf32>
      tpu.vector_store %arg6[%c0_18, %c0_19], %24 {strides = array<i32>} : memref<1x64xf32, #tpu.memory_space<vmem>>, vector<1x64xf32>,
      %cst_20 = arith.constant 0.000000e+00 : f32
      %26 = vector.broadcast %cst_20 : f32 to vector<1x64xf32>
      %c0_21 = arith.constant 0 : index
      %c0_22 = arith.constant 0 : index
      %27 = vector.load %arg7[%c0_21, %c0_22] : memref<1x64xf32, #tpu.memory_space<vmem>>, vector<1x64xf32>
      tpu.vector_store %arg7[%c0_21, %c0_22], %26 {strides = array<i32>} : memref<1x64xf32, #tpu.memory_space<vmem>>, vector<1x64xf32>,
    } else {
    }
    %c0 = arith.constant 0 : index
    %c0_1 = arith.constant 0 : index
    %3 = vector.load %arg1[%c0, %c0_1] : memref<32x512xbf16, #tpu.memory_space<vmem>>, vector<32x512xbf16>
    %c0_2 = arith.constant 0 : index
    %c0_3 = arith.constant 0 : index
    %4 = vector.load %arg2[%c0_2, %c0_3] : memref<512x64xbf16, #tpu.memory_space<vmem>>, vector<512x64xbf16>
    %cst = arith.constant dense<0.000000e+00> : vector<32x64xf32>
    %5 = tpu.matmul %3, %4, %cst {dimension_numbers = #tpu.dot_dimension_numbers<[1], [0], [0], [1], [0, 0, 1, 1], [], []>} : vector<32x512xbf16>, vector<512x64xbf16>, vector<32x64xf32> -> vector<32x64xf32>
    %c32_i32 = arith.constant 32 : i32
    %6 = arith.muli %arg0, %c32_i32 : i32
    %7 = tpu.assume_multiple %6, 32 : i32
    %8 = arith.index_cast %7 : i32 to index
    %c0_4 = arith.constant 0 : index
    %9 = vector.load %arg5[%8, %c0_4] : memref<32x64xf32, #tpu.memory_space<vmem>>, vector<32x64xf32>
    tpu.vector_store %arg5[%8, %c0_4], %5 {strides = array<i32>} : memref<32x64xf32, #tpu.memory_space<vmem>>, vector<32x64xf32>,
    %c0_5 = arith.constant 0 : index
    %c0_6 = arith.constant 0 : index
    %10 = vector.load %arg6[%c0_5, %c0_6] : memref<1x64xf32, #tpu.memory_space<vmem>>, vector<1x64xf32>
    %cst_7 = arith.constant dense<0.000000e+00> : vector<64xf32>
    %11 = vector.multi_reduction <add>, %5, %cst_7 [0] : vector<32x64xf32> to vector<64xf32>
    %12 = vector.shape_cast %11 : vector<64xf32> to vector<1x64xf32>
    %13 = arith.addf %10, %12 : vector<1x64xf32>
    %c0_8 = arith.constant 0 : index
    %c0_9 = arith.constant 0 : index
    %14 = vector.load %arg6[%c0_8, %c0_9] : memref<1x64xf32, #tpu.memory_space<vmem>>, vector<1x64xf32>
    tpu.vector_store %arg6[%c0_8, %c0_9], %13 {strides = array<i32>} : memref<1x64xf32, #tpu.memory_space<vmem>>, vector<1x64xf32>,
    %c0_10 = arith.constant 0 : index
    %c0_11 = arith.constant 0 : index
    %15 = vector.load %arg7[%c0_10, %c0_11] : memref<1x64xf32, #tpu.memory_space<vmem>>, vector<1x64xf32>
    %16 = arith.mulf %5, %5 : vector<32x64xf32>
    %cst_12 = arith.constant dense<0.000000e+00> : vector<64xf32>
    %17 = vector.multi_reduction <add>, %16, %cst_12 [0] : vector<32x64xf32> to vector<64xf32>
    %18 = vector.shape_cast %17 : vector<64xf32> to vector<1x64xf32>
    %19 = arith.addf %15, %18 : vector<1x64xf32>
    %c0_13 = arith.constant 0 : index
    %c0_14 = arith.constant 0 : index
    %20 = vector.load %arg7[%c0_13, %c0_14] : memref<1x64xf32, #tpu.memory_space<vmem>>, vector<1x64xf32>
    tpu.vector_store %arg7[%c0_13, %c0_14], %19 {strides = array<i32>} : memref<1x64xf32, #tpu.memory_space<vmem>>, vector<1x64xf32>,
    %c0_i32_15 = arith.constant 0 : i32
    %21 = arith.cmpi eq, %arg0, %c0_i32_15 : i32
    %22 = arith.extui %21 : i1 to i32
    %c0_i32_16 = arith.constant 0 : i32
    %23 = arith.cmpi ne, %22, %c0_i32_16 : i32
    scf.if %23 {
      %c0_17 = arith.constant 0 : index
      %c0_18 = arith.constant 0 : index
      %24 = vector.load %arg6[%c0_17, %c0_18] : memref<1x64xf32, #tpu.memory_space<vmem>>, vector<1x64xf32>
      %cst_19 = arith.constant 3.125000e-02 : f32
      %25 = vector.broadcast %cst_19 : f32 to vector<1x64xf32>
      %26 = arith.mulf %24, %25 : vector<1x64xf32>
      %c0_20 = arith.constant 0 : index
      %c0_21 = arith.constant 0 : index
      %27 = vector.load %arg7[%c0_20, %c0_21] : memref<1x64xf32, #tpu.memory_space<vmem>>, vector<1x64xf32>
      %cst_22 = arith.constant 3.125000e-02 : f32
      %28 = vector.broadcast %cst_22 : f32 to vector<1x64xf32>
      %29 = arith.mulf %27, %28 : vector<1x64xf32>
      %30 = arith.mulf %26, %26 : vector<1x64xf32>
      %31 = arith.subf %29, %30 : vector<1x64xf32>
      %cst_23 = arith.constant 0.000000e+00 : f32
      %32 = vector.broadcast %cst_23 : f32 to vector<1x64xf32>
      %33 = arith.maximumf %31, %32 : vector<1x64xf32>
      %c0_24 = arith.constant 0 : index
      %c0_25 = arith.constant 0 : index
      %34 = vector.load %arg3[%c0_24, %c0_25] : memref<1x64xf32, #tpu.memory_space<vmem>>, vector<1x64xf32>
      %cst_26 = arith.constant 9.99999974E-6 : f32
      %35 = vector.broadcast %cst_26 : f32 to vector<1x64xf32>
      %36 = arith.addf %33, %35 : vector<1x64xf32>
      %37 = math.rsqrt %36 : vector<1x64xf32>
      %38 = arith.mulf %34, %37 : vector<1x64xf32>
      %c0_27 = arith.constant 0 : index
      %c0_28 = arith.constant 0 : index
      %39 = vector.load %arg4[%c0_27, %c0_28] : memref<1x64xf32, #tpu.memory_space<vmem>>, vector<1x64xf32>
      %40 = arith.mulf %26, %38 : vector<1x64xf32>
      %41 = arith.subf %39, %40 : vector<1x64xf32>
      %c0_29 = arith.constant 0 : index
      %c0_30 = arith.constant 0 : index
      %42 = vector.load %arg5[%c0_29, %c0_30] : memref<32x64xf32, #tpu.memory_space<vmem>>, vector<32x64xf32>
      %43 = vector.broadcast %38 : vector<1x64xf32> to vector<32x64xf32>
      %44 = arith.mulf %42, %43 : vector<32x64xf32>
      %45 = vector.broadcast %41 : vector<1x64xf32> to vector<32x64xf32>
      %46 = arith.addf %44, %45 : vector<32x64xf32>
      %cst_31 = arith.constant 0.000000e+00 : f32
      %47 = vector.broadcast %cst_31 : f32 to vector<32x64xf32>
      %48 = arith.cmpf ogt, %46, %47 : vector<32x64xf32>
      %cst_32 = arith.constant 2.000000e-01 : f32
      %49 = vector.broadcast %cst_32 : f32 to vector<32x64xf32>
      %50 = arith.mulf %49, %46 : vector<32x64xf32>
      %51 = arith.select %48, %46, %50 : vector<32x64xi1>, vector<32x64xf32>
      %c0_33 = arith.constant 0 : index
      %c0_34 = arith.constant 0 : index
      %52 = vector.load %arg5[%c0_33, %c0_34] : memref<32x64xf32, #tpu.memory_space<vmem>>, vector<32x64xf32>
      tpu.vector_store %arg5[%c0_33, %c0_34], %51 {strides = array<i32>} : memref<32x64xf32, #tpu.memory_space<vmem>>, vector<32x64xf32>,
    } else {
    }
    return
  }
  func.func @transform_0(%arg0: i32) -> (i32, i32) {
    %c0_i32 = arith.constant 0 : i32
    %c0_i32_0 = arith.constant 0 : i32
    return %arg0, %c0_i32 : i32, i32
  }
  func.func @transform_1(%arg0: i32) -> (i32, i32) {
    %c0_i32 = arith.constant 0 : i32
    %c0_i32_0 = arith.constant 0 : i32
    %c0_i32_1 = arith.constant 0 : i32
    return %c0_i32, %c0_i32_0 : i32, i32
  }
  func.func @transform_2(%arg0: i32) -> (i32, i32) {
    %c0_i32 = arith.constant 0 : i32
    %c0_i32_0 = arith.constant 0 : i32
    %c0_i32_1 = arith.constant 0 : i32
    return %c0_i32, %c0_i32_0 : i32, i32
  }
  func.func @transform_3(%arg0: i32) -> (i32, i32) {
    %c0_i32 = arith.constant 0 : i32
    %c0_i32_0 = arith.constant 0 : i32
    %c0_i32_1 = arith.constant 0 : i32
    return %c0_i32, %c0_i32_0 : i32, i32
  }
  func.func @transform_4(%arg0: i32) -> (i32, i32) {
    %c0_i32 = arith.constant 0 : i32
    %c0_i32_0 = arith.constant 0 : i32
    %c0_i32_1 = arith.constant 0 : i32
    return %c0_i32, %c0_i32_0 : i32, i32
  }
}

module attributes {stable_mosaic.version = 11 : i64} {
  func.func @_conv_act_kernel(%arg0: i32, %arg1: memref<8x1024xbf16, #tpu.memory_space<vmem>>, %arg2: memref<1024x1xbf16, #tpu.memory_space<vmem>>, %arg3: memref<8x1xf32, #tpu.memory_space<vmem>>) attributes {dimension_semantics = [#tpu.dimension_semantics<parallel>], iteration_bounds = array<i64: 1>, scalar_prefetch = 0 : i64, scratch_operands = 0 : i64, tpu.core_type = #tpu.core_type<tc>, window_params = [{transform_indices = @transform_0, window_bounds = array<i64: 8, 1024>}, {pipeline_mode = #tpu.pipeline_mode<synchronous>, transform_indices = @transform_1, window_bounds = array<i64: 1024, 1>}, {transform_indices = @transform_2, window_bounds = array<i64: 8, 1>}]} {
    %c0 = arith.constant 0 : index
    %c0_0 = arith.constant 0 : index
    %0 = vector.load %arg1[%c0, %c0_0] : memref<8x1024xbf16, #tpu.memory_space<vmem>>, vector<8x1024xbf16>
    %c0_1 = arith.constant 0 : index
    %c0_2 = arith.constant 0 : index
    %1 = vector.load %arg2[%c0_1, %c0_2] : memref<1024x1xbf16, #tpu.memory_space<vmem>>, vector<1024x1xbf16>
    %cst = arith.constant dense<0.000000e+00> : vector<8x1xf32>
    %2 = tpu.matmul %0, %1, %cst {dimension_numbers = #tpu.dot_dimension_numbers<[1], [0], [0], [1], [0, 0, 1, 1], [], []>} : vector<8x1024xbf16>, vector<1024x1xbf16>, vector<8x1xf32> -> vector<8x1xf32>
    %cst_3 = arith.constant 5.000000e-01 : f32
    %3 = vector.broadcast %cst_3 : f32 to vector<8x1xf32>
    %4 = arith.mulf %3, %2 : vector<8x1xf32>
    %5 = math.tanh %4 : vector<8x1xf32>
    %cst_4 = arith.constant 1.000000e+00 : f32
    %6 = vector.broadcast %cst_4 : f32 to vector<8x1xf32>
    %7 = arith.addf %5, %6 : vector<8x1xf32>
    %cst_5 = arith.constant 5.000000e-01 : f32
    %8 = vector.broadcast %cst_5 : f32 to vector<8x1xf32>
    %9 = arith.mulf %8, %7 : vector<8x1xf32>
    %c0_6 = arith.constant 0 : index
    %c0_7 = arith.constant 0 : index
    %10 = vector.load %arg3[%c0_6, %c0_7] : memref<8x1xf32, #tpu.memory_space<vmem>>, vector<8x1xf32>
    tpu.vector_store %arg3[%c0_6, %c0_7], %9 {strides = array<i32>} : memref<8x1xf32, #tpu.memory_space<vmem>>, vector<8x1xf32>,
    return
  }
  func.func @transform_0(%arg0: i32) -> (i32, i32) {
    %c0_i32 = arith.constant 0 : i32
    %c0_i32_0 = arith.constant 0 : i32
    return %arg0, %c0_i32 : i32, i32
  }
  func.func @transform_1(%arg0: i32) -> (i32, i32) {
    %c0_i32 = arith.constant 0 : i32
    %c0_i32_0 = arith.constant 0 : i32
    %c0_i32_1 = arith.constant 0 : i32
    return %c0_i32, %c0_i32_0 : i32, i32
  }
  func.func @transform_2(%arg0: i32) -> (i32, i32) {
    %c0_i32 = arith.constant 0 : i32
    %c0_i32_0 = arith.constant 0 : i32
    return %arg0, %c0_i32 : i32, i32
  }
}

</mosaic_0001>

<llo_original>
// kernel: discriminator_forward.5
$region0: #{discriminator_forward.5}
  #allocation0 [shape = 'u32[]', space=smem, size = 0x4, offset = 0x4, fixed_abs, tag = 'smem constant byte address 0x4 - core index']
  #allocation1 [shape = 'u32[144,128]{1,0:T(1,128)}', space=vmem, size = 0x12000, scoped, tag = 'internal scratch']
  %s0 = inlined_call_operand.vmem [shape: bf16[2048,48], index: 0, kind: input, shape index: {}]
  %s1 = inlined_call_operand.vmem [shape: bf16[48,8], index: 1, kind: input, shape index: {}]
  %s2 = inlined_call_operand.vmem [shape: f32[2048,8], index: 2, kind: output, shape index: {}]
  %s3 = sld [smem:[#allocation0]]
  $region41: #{discriminator_forward.5} parent=0
    _
  %s5 = ssub.s32 1, %s3
  %s6 = scalar_select 0, %s5, %s3
  loop: start=0, step=1, limit=6
  $region2: #{discriminator_forward.5} parent=0 // loop_pre_header
    _
  $region3: #{discriminator_forward.5} parent=0 // loop_header
    %s8 = sphi 0, %s12
    %p9 = scmp.ge.s32.totalorder %s8, 6
    %s18 = sphi 0, %s20
    %s21 = sphi 0, %s18
    %s22 = sphi 0, %s21
    %s38 = sphi 0, %s22
    %s42 = sphi 0, %s42
    %s44 = sphi 0, %s42
    %s45 = sphi 0, %s44
    %s59 = sphi 0, %s45
    %s65 = sphi 0, %s67
    %s68 = sphi 0, %s65
    %s69 = sphi 0, %s68
    %s85 = sphi 0, %s69
  $region4: #{discriminator_forward.5} parent=0 // loop_header_branch
    %11 = sbr.rel (%p9) target = $region8
  $region5: #{discriminator_forward.5} parent=0 // loop_body
    %s13 = ssub.s32 %s8, 1
    %s14 = ssub.s32 %s8, 2
    %s15 = sadd.s32 %s8, 1
    %s16 = ssub.s32 %s8, %s15
    %p17 = scmp.eq.s32.totalorder %s16, 0
    %s19 = sadd.s32 %s18, 1
    %s20 = scalar_select %p17, %s18, %s19
    %p23 = pneg %p17
    %p24 = scmp.eq.s32.totalorder %s8, 3
    %p25 = por %p23, %p24
    %p26 = scmp.ne.s32.totalorder %s18, %s21
    %p27 = scmp.eq.s32.totalorder %s8, 0
    %p28 = por %p26, %p27
    %p29 = scmp.ne.s32.totalorder %s18, %s21
    %p30 = scmp.eq.s32.totalorder %s13, 3
    %p31 = por %p29, %p30
    %p32 = scmp.ne.s32.totalorder %s21, %s22
    %p33 = scmp.eq.s32.totalorder %s13, 0
    %p34 = por %p32, %p33
    %p35 = scmp.ne.s32.totalorder %s21, %s22
    %p36 = scmp.eq.s32.totalorder %s14, 3
    %p37 = por %p35, %p36
    %p39 = scmp.ne.s32.totalorder %s22, %s38
    %p40 = scmp.eq.s32.totalorder %s14, 0
    %p41 = por %p39, %p40
    %s43 = sadd.s32 %s42, 1
    %p46 = scmp.eq.s32.totalorder %s8, 3
    %p47 = scmp.ne.s32.totalorder %s42, %s44
    %p48 = scmp.eq.s32.totalorder %s8, 0
    %p49 = por %p47, %p48
    %p50 = scmp.ne.s32.totalorder %s42, %s44
    %p51 = scmp.eq.s32.totalorder %s13, 3
    %p52 = por %p50, %p51
    %p53 = scmp.ne.s32.totalorder %s44, %s45
    %p54 = scmp.eq.s32.totalorder %s13, 0
    %p55 = por %p53, %p54
    %p56 = scmp.ne.s32.totalorder %s44, %s45
    %p57 = scmp.eq.s32.totalorder %s14, 3
    %p58 = por %p56, %p57
    %p60 = scmp.ne.s32.totalorder %s45, %s59
    %p61 = scmp.eq.s32.totalorder %s14, 0
    %p62 = por %p60, %p61
    %s63 = ssub.s32 %s8, %s15
    %p64 = scmp.eq.s32.totalorder %s63, 0
    %s66 = sadd.s32 %s65, 1
    %s67 = scalar_select %p64, %s65, %s66
    %p70 = pneg %p64
    %p71 = scmp.eq.s32.totalorder %s8, 3
    %p72 = por %p70, %p71
    %p73 = scmp.ne.s32.totalorder %s65, %s68
    %p74 = scmp.eq.s32.totalorder %s8, 0
    %p75 = por %p73, %p74
    %p76 = scmp.ne.s32.totalorder %s65, %s68
    %p77 = scmp.eq.s32.totalorder %s13, 3
    %p78 = por %p76, %p77
    %p79 = scmp.ne.s32.totalorder %s68, %s69
    %p80 = scmp.eq.s32.totalorder %s13, 0
    %p81 = por %p79, %p80
    %p82 = scmp.ne.s32.totalorder %s68, %s69
    %p83 = scmp.eq.s32.totalorder %s14, 3
    %p84 = por %p82, %p83
    %p86 = scmp.ne.s32.totalorder %s69, %s85
    %p87 = scmp.eq.s32.totalorder %s14, 0
    %p88 = por %p86, %p87
    %p89 = scmp.le.s32.totalorder 1, %s8
    %p90 = scmp.lt.s32.totalorder %s8, 5
    %p91 = pnand %p89, %p90
    %p92 = pneg %p91
    // Predicated region
    $region9: #{discriminator_forward.5} parent=5 // pred_check
      _
    $region10: #{discriminator_forward.5} parent=5 // pred_check_branch
      %94 = sbr.rel (%p91) target = $region12
    $region11: #{discriminator_forward.5} parent=5 // pred_region
      %s95 = ssub.s32 %s8, 1
      // Predicated region
      $region13: #{discriminator_forward.5} parent=11 // pred_check
        %p96 = pneg %p55
      $region14: #{discriminator_forward.5} parent=11 // pred_check_branch
        %98 = sbr.rel (%p96) target = $region16
      $region15: #{discriminator_forward.5} parent=11 // pred_region
        _
      $region16: #{discriminator_forward.5} parent=11 // pred_fallthru
        _
    $region12: #{discriminator_forward.5} parent=5 // pred_fallthru
      _
    %p99 = scmp.lt.s32.totalorder %s8, 4
    // Predicated region
    $region17: #{discriminator_forward.5} parent=5 // pred_check
      %p100 = pneg %p99
    $region18: #{discriminator_forward.5} parent=5 // pred_check_branch
      %102 = sbr.rel (%p100) target = $region20
    $region19: #{discriminator_forward.5} parent=5 // pred_region
      // Predicated region
      $region21: #{discriminator_forward.5} parent=19 // pred_check
        %p103 = pneg %p28
      $region22: #{discriminator_forward.5} parent=19 // pred_check_branch
        %105 = sbr.rel (%p103) target = $region24
      $region23: #{discriminator_forward.5} parent=19 // pred_region
        %s106 = smul.u32 64, %s8
        %p107 = scmp.lt.s32.totalorder %s106, 255
        %s108 = scalar_select %p107, %s106, 255
        %s109 = smul.addr %s108, 4
        %s110 = scalar_lea.vmem %s0, %s109
        %s111 = smul.u32 64, %s8
      $region24: #{discriminator_forward.5} parent=19 // pred_fallthru
        _
    $region20: #{discriminator_forward.5} parent=5 // pred_fallthru
      _
    %p112 = scmp.le.s32.totalorder 1, %s8
    %p113 = scmp.lt.s32.totalorder %s8, 5
    %p114 = pnand %p112, %p113
    %p115 = pneg %p114
    // Predicated region
    $region25: #{discriminator_forward.5} parent=5 // pred_check
      _
    $region26: #{discriminator_forward.5} parent=5 // pred_check_branch
      %117 = sbr.rel (%p114) target = $region28
    $region27: #{discriminator_forward.5} parent=5 // pred_region
      %s118 = ssub.s32 %s8, 1
      %s119 = smul.u32 64, %s13
      %p120 = scmp.lt.s32.totalorder %s119, 255
      %s121 = scalar_select %p120, %s119, 255
      %s122 = smul.addr %s121, 4
      %s123 = scalar_lea.vmem %s0, %s122
      %p124 = pneg %p34
      %p125 = pneg %p31
      %p126 = pneg %p55
      %p127 = pneg %p52
      %p128 = pneg %p81
      %p129 = pneg %p78
      %s130 = smul.u32 64, %s13
      %p131 = scmp.lt.s32.totalorder %s130, 255
      %s132 = scalar_select %p131, %s130, 255
      %s133 = smul.addr %s132, 8
      %s134 = scalar_lea.vmem %s2, %s133
      %s135 = smul.u32 64, %s13
      %p136 = scmp.lt.s32.totalorder %s135, 255
      %s137 = scalar_select %p136, %s135, 255
      %s138 = smul.addr %s137, 4
      %s139 = scalar_lea.vmem %s0, %s138
      %s140 = smul.u32 64, %s13
      %s141 = smul.u32 64, %s13
      %p142 = scmp.lt.s32.totalorder %s141, 255
      %s143 = scalar_select %p142, %s141, 255
      %s144 = smul.addr %s143, 8
      %s145 = scalar_lea.vmem %s2, %s144
      %s146 = smul.u32 64, %s13
      %v148 = vld [vmem:[%s139] sm:$0xf]
      %v149 = vld [vmem:[%s139 + $0x4] sm:$0xf]
      %v150 = vld [vmem:[%s139 + $0x8] sm:$0xf]
      %v151 = vld [vmem:[%s139 + $0xc] sm:$0xf]
      %v152 = vld [vmem:[%s139 + $0x10] sm:$0xf]
      %v153 = vld [vmem:[%s139 + $0x14] sm:$0xf]
      %v154 = vld [vmem:[%s139 + $0x18] sm:$0xf]
      %v155 = vld [vmem:[%s139 + $0x1c] sm:$0xf]
      %v156 = vld [vmem:[%s139 + $0x20] sm:$0xf]
      %v157 = vld [vmem:[%s139 + $0x24] sm:$0xf]
      %v158 = vld [vmem:[%s139 + $0x28] sm:$0xf]
      %v159 = vld [vmem:[%s139 + $0x2c] sm:$0xf]
      %v160 = vld [vmem:[%s139 + $0x30] sm:$0xf]
      %v161 = vld [vmem:[%s139 + $0x34] sm:$0xf]
      %v162 = vld [vmem:[%s139 + $0x38] sm:$0xf]
      %v163 = vld [vmem:[%s139 + $0x3c] sm:$0xf]
      %v164 = vld [vmem:[%s139 + $0x40] sm:$0xf]
      %v165 = vld [vmem:[%s139 + $0x44] sm:$0xf]
      %v166 = vld [vmem:[%s139 + $0x48] sm:$0xf]
      %v167 = vld [vmem:[%s139 + $0x4c] sm:$0xf]
      %v168 = vld [vmem:[%s139 + $0x50] sm:$0xf]
      %v169 = vld [vmem:[%s139 + $0x54] sm:$0xf]
      %v170 = vld [vmem:[%s139 + $0x58] sm:$0xf]
      %v171 = vld [vmem:[%s139 + $0x5c] sm:$0xf]
      %v172 = vld [vmem:[%s139 + $0x60] sm:$0xf]
      %v173 = vld [vmem:[%s139 + $0x64] sm:$0xf]
      %v174 = vld [vmem:[%s139 + $0x68] sm:$0xf]
      %v175 = vld [vmem:[%s139 + $0x6c] sm:$0xf]
      %v176 = vld [vmem:[%s139 + $0x70] sm:$0xf]
      %v177 = vld [vmem:[%s139 + $0x74] sm:$0xf]
      %v178 = vld [vmem:[%s139 + $0x78] sm:$0xf]
      %v179 = vld [vmem:[%s139 + $0x7c] sm:$0xf]
      %v180 = vld [vmem:[%s139 + $0x80] sm:$0xf]
      %v181 = vld [vmem:[%s139 + $0x84] sm:$0xf]
      %v182 = vld [vmem:[%s139 + $0x88] sm:$0xf]
      %v183 = vld [vmem:[%s139 + $0x8c] sm:$0xf]
      %v184 = vld [vmem:[%s139 + $0x90] sm:$0xf]
      %v185 = vld [vmem:[%s139 + $0x94] sm:$0xf]
      %v186 = vld [vmem:[%s139 + $0x98] sm:$0xf]
      %v187 = vld [vmem:[%s139 + $0x9c] sm:$0xf]
      %v188 = vld [vmem:[%s139 + $0xa0] sm:$0xf]
      %v189 = vld [vmem:[%s139 + $0xa4] sm:$0xf]
      %v190 = vld [vmem:[%s139 + $0xa8] sm:$0xf]
      %v191 = vld [vmem:[%s139 + $0xac] sm:$0xf]
      %v192 = vld [vmem:[%s139 + $0xb0] sm:$0xf]
      %v193 = vld [vmem:[%s139 + $0xb4] sm:$0xf]
      %v194 = vld [vmem:[%s139 + $0xb8] sm:$0xf]
      %v195 = vld [vmem:[%s139 + $0xbc] sm:$0xf]
      %v196 = vld [vmem:[%s139 + $0xc0] sm:$0xf]
      %v197 = vld [vmem:[%s139 + $0xc4] sm:$0xf]
      %v198 = vld [vmem:[%s139 + $0xc8] sm:$0xf]
      %v199 = vld [vmem:[%s139 + $0xcc] sm:$0xf]
      %v200 = vld [vmem:[%s139 + $0xd0] sm:$0xf]
      %v201 = vld [vmem:[%s139 + $0xd4] sm:$0xf]
      %v202 = vld [vmem:[%s139 + $0xd8] sm:$0xf]
      %v203 = vld [vmem:[%s139 + $0xdc] sm:$0xf]
      %v204 = vld [vmem:[%s139 + $0xe0] sm:$0xf]
      %v205 = vld [vmem:[%s139 + $0xe4] sm:$0xf]
      %v206 = vld [vmem:[%s139 + $0xe8] sm:$0xf]
      %v207 = vld [vmem:[%s139 + $0xec] sm:$0xf]
      %v208 = vld [vmem:[%s139 + $0xf0] sm:$0xf]
      %v209 = vld [vmem:[%s139 + $0xf4] sm:$0xf]
      %v210 = vld [vmem:[%s139 + $0xf8] sm:$0xf]
      %v211 = vld [vmem:[%s139 + $0xfc] sm:$0xf]
      %v212 = vld [vmem:[%s1] sm:$0xf]
      %v213 = vld [vmem:[%s1 + $0x4] sm:$0xf]
      %v214 = vld [vmem:[%s1 + $0x8] sm:$0xf]
      %v215 = vld [vmem:[%s1 + $0xc] sm:$0xf]
      %v216 = vld [vmem:[%s1 + $0x10] sm:$0xf]
      %v217 = vld [vmem:[%s1 + $0x14] sm:$0xf]
      %v282 = vunpack.c.l.b16 %v148
      %v283 = vunpack.c.l.b16 %v149
      %v284 = vunpack.c.l.b16 %v150
      %v285 = vunpack.c.l.b16 %v151
      %v286 = vunpack.c.l.b16 %v152
      %v287 = vunpack.c.l.b16 %v153
      %v288 = vunpack.c.l.b16 %v154
      %v289 = vunpack.c.l.b16 %v155
      %v290 = vunpack.c.l.b16 %v156
      %v291 = vunpack.c.l.b16 %v157
      %v292 = vunpack.c.l.b16 %v158
      %v293 = vunpack.c.l.b16 %v159
      %v294 = vunpack.c.l.b16 %v160
      %v295 = vunpack.c.l.b16 %v161
      %v296 = vunpack.c.l.b16 %v162
      %v297 = vunpack.c.l.b16 %v163
      %v298 = vunpack.c.l.b16 %v164
      %v299 = vunpack.c.l.b16 %v165
      %v300 = vunpack.c.l.b16 %v166
      %v301 = vunpack.c.l.b16 %v167
      %v302 = vunpack.c.l.b16 %v168
      %v303 = vunpack.c.l.b16 %v169
      %v304 = vunpack.c.l.b16 %v170
      %v305 = vunpack.c.l.b16 %v171
      %v306 = vunpack.c.l.b16 %v172
      %v307 = vunpack.c.l.b16 %v173
      %v308 = vunpack.c.l.b16 %v174
      %v309 = vunpack.c.l.b16 %v175
      %v310 = vunpack.c.l.b16 %v176
      %v311 = vunpack.c.l.b16 %v177
      %v312 = vunpack.c.l.b16 %v178
      %v313 = vunpack.c.l.b16 %v179
      %v314 = vunpack.c.l.b16 %v180
      %v315 = vunpack.c.l.b16 %v181
      %v316 = vunpack.c.l.b16 %v182
      %v317 = vunpack.c.l.b16 %v183
      %v318 = vunpack.c.l.b16 %v184
      %v319 = vunpack.c.l.b16 %v185
      %v320 = vunpack.c.l.b16 %v186
      %v321 = vunpack.c.l.b16 %v187
      %v322 = vunpack.c.l.b16 %v188
      %v323 = vunpack.c.l.b16 %v189
      %v324 = vunpack.c.l.b16 %v190
      %v325 = vunpack.c.l.b16 %v191
      %v326 = vunpack.c.l.b16 %v192
      %v327 = vunpack.c.l.b16 %v193
      %v328 = vunpack.c.l.b16 %v194
      %v329 = vunpack.c.l.b16 %v195
      %v330 = vunpack.c.l.b16 %v196
      %v331 = vunpack.c.l.b16 %v197
      %v332 = vunpack.c.l.b16 %v198
      %v333 = vunpack.c.l.b16 %v199
      %v334 = vunpack.c.l.b16 %v200
      %v335 = vunpack.c.l.b16 %v201
      %v336 = vunpack.c.l.b16 %v202
      %v337 = vunpack.c.l.b16 %v203
      %v338 = vunpack.c.l.b16 %v204
      %v339 = vunpack.c.l.b16 %v205
      %v340 = vunpack.c.l.b16 %v206
      %v341 = vunpack.c.l.b16 %v207
      %v342 = vunpack.c.l.b16 %v208
      %v343 = vunpack.c.l.b16 %v209
      %v344 = vunpack.c.l.b16 %v210
      %v345 = vunpack.c.l.b16 %v211
      %v346 = vpack.c.b16 %v283, %v282
      %v347 = vpack.c.b16 %v285, %v284
      %v348 = vpack.c.b16 %v287, %v286
      %v349 = vpack.c.b16 %v289, %v288
      %v350 = vpack.c.b16 %v291, %v290
      %v351 = vpack.c.b16 %v293, %v292
      %v352 = vpack.c.b16 %v295, %v294
      %v353 = vpack.c.b16 %v297, %v296
      %v354 = vpack.c.b16 %v299, %v298
      %v355 = vpack.c.b16 %v301, %v300
      %v356 = vpack.c.b16 %v303, %v302
      %v357 = vpack.c.b16 %v305, %v304
      %v358 = vpack.c.b16 %v307, %v306
      %v359 = vpack.c.b16 %v309, %v308
      %v360 = vpack.c.b16 %v311, %v310
      %v361 = vpack.c.b16 %v313, %v312
      %v362 = vpack.c.b16 %v315, %v314
      %v363 = vpack.c.b16 %v317, %v316
      %v364 = vpack.c.b16 %v319, %v318
      %v365 = vpack.c.b16 %v321, %v320
      %v366 = vpack.c.b16 %v323, %v322
      %v367 = vpack.c.b16 %v325, %v324
      %v368 = vpack.c.b16 %v327, %v326
      %v369 = vpack.c.b16 %v329, %v328
      %v370 = vpack.c.b16 %v331, %v330
      %v371 = vpack.c.b16 %v333, %v332
      %v372 = vpack.c.b16 %v335, %v334
      %v373 = vpack.c.b16 %v337, %v336
      %v374 = vpack.c.b16 %v339, %v338
      %v375 = vpack.c.b16 %v341, %v340
      %v376 = vpack.c.b16 %v343, %v342
      %v377 = vpack.c.b16 %v345, %v344
      %v384 = vunpack.c.l.b16 %v212
      %v385 = vunpack.c.l.b16 %v213
      %v386 = vunpack.c.l.b16 %v214
      %v387 = vunpack.c.l.b16 %v215
      %v388 = vunpack.c.l.b16 %v216
      %v389 = vunpack.c.l.b16 %v217
      %v390 = vpack.c.b16 %v385, %v384
      %v391 = vpack.c.b16 %v387, %v386
      %v392 = vpack.c.b16 %v389, %v388
      %vm396 = vcmask 392192
      %v398 = vsel %vm396, %v346, 0
      %v401 = vsel %vm396, %v347, 0
      %v404 = vsel %vm396, %v348, 0
      %v407 = vsel %vm396, %v349, 0
      %v410 = vsel %vm396, %v350, 0
      %v413 = vsel %vm396, %v351, 0
      %v416 = vsel %vm396, %v352, 0
      %v419 = vsel %vm396, %v353, 0
      %v422 = vsel %vm396, %v354, 0
      %v425 = vsel %vm396, %v355, 0
      %v428 = vsel %vm396, %v356, 0
      %v431 = vsel %vm396, %v357, 0
      %v434 = vsel %vm396, %v358, 0
      %v437 = vsel %vm396, %v359, 0
      %v440 = vsel %vm396, %v360, 0
      %v443 = vsel %vm396, %v361, 0
      %v446 = vsel %vm396, %v362, 0
      %v449 = vsel %vm396, %v363, 0
      %v452 = vsel %vm396, %v364, 0
      %v455 = vsel %vm396, %v365, 0
      %v458 = vsel %vm396, %v366, 0
      %v461 = vsel %vm396, %v367, 0
      %v464 = vsel %vm396, %v368, 0
      %v467 = vsel %vm396, %v369, 0
      %v470 = vsel %vm396, %v370, 0
      %v473 = vsel %vm396, %v371, 0
      %v476 = vsel %vm396, %v372, 0
      %v479 = vsel %vm396, %v373, 0
      %v482 = vsel %vm396, %v374, 0
      %v485 = vsel %vm396, %v375, 0
      %v488 = vsel %vm396, %v376, 0
      %v491 = vsel %vm396, %v377, 0
      %493 = vmatprep.subr.bf16.mxu0 0
      %494 = vmatpush1.bf16.msra.mxu0 %v390
      %495 = vmatprep.subr.bf16.mxu0 0
      %496 = vmatpush1.bf16.msra.mxu0 %v391
      %497 = vmatprep.subr.bf16.mxu0 0
      %498 = vmatpush1.bf16.msra.mxu0 %v392
      %499 = vmatprep.subr.bf16.mxu0 0
      %500 = vmatpush1.bf16.msra.mxu0 0
      %501 = vmatprep.subr.bf16.mxu0 0
      %502 = vmatpush1.bf16.msra.mxu0 0
      %503 = vmatprep.subr.bf16.mxu0 0
      %504 = vmatpush1.bf16.msra.mxu0 0
      %505 = vmatprep.subr.bf16.mxu0 0
      %506 = vmatpush1.bf16.msra.mxu0 0
      %507 = vmatprep.subr.bf16.mxu0 0
      %508 = vmatpush1.bf16.msra.mxu0 0
      %509 = vmatprep.subr.bf16.mxu0 0
      %510 = vmatpush1.bf16.msra.mxu0 0
      %511 = vmatprep.subr.bf16.mxu0 0
      %512 = vmatpush1.bf16.msra.mxu0 0
      %513 = vmatprep.subr.bf16.mxu0 0
      %514 = vmatpush1.bf16.msra.mxu0 0
      %515 = vmatprep.subr.bf16.mxu0 0
      %516 = vmatpush1.bf16.msra.mxu0 0
      %517 = vmatprep.subr.bf16.mxu0 0
      %518 = vmatpush1.bf16.msra.mxu0 0
      %519 = vmatprep.subr.bf16.mxu0 0
      %520 = vmatpush1.bf16.msra.mxu0 0
      %521 = vmatprep.subr.bf16.mxu0 0
      %522 = vmatpush1.bf16.msra.mxu0 0
      %523 = vmatprep.subr.bf16.mxu0 0
      %524 = vmatpush1.bf16.msra.mxu0 0
      %525 = vmatprep.mubr.bf16.mxu0 0
      %526 = vmatmul.mubr.bf16.gmra.mrb[0].mxu0 %v398
      %v527 = vpop.f32.mrb[0].mxu0
      %v528 = vadd.f32 0.0, %v527
      %v529 = vpop.f32.mrb[0].mxu0
      %v530 = vpop.f32.mrb[0].mxu0
      %v531 = vadd.f32 0.0, %v530
      %v532 = vpop.f32.mrb[0].mxu0
      %533 = vmatprep.mubr.bf16.mxu0 0
      %534 = vmatmul.mubr.bf16.gmra.mrb[0].mxu0 %v401
      %v535 = vpop.f32.mrb[0].mxu0
      %v536 = vadd.f32 0.0, %v535
      %v537 = vpop.f32.mrb[0].mxu0
      %v538 = vpop.f32.mrb[0].mxu0
      %v539 = vadd.f32 0.0, %v538
      %v540 = vpop.f32.mrb[0].mxu0
      %541 = vmatprep.mubr.bf16.mxu0 0
      %542 = vmatmul.mubr.bf16.gmra.mrb[0].mxu0 %v404
      %v543 = vpop.f32.mrb[0].mxu0
      %v544 = vadd.f32 0.0, %v543
      %v545 = vpop.f32.mrb[0].mxu0
      %v546 = vpop.f32.mrb[0].mxu0
      %v547 = vadd.f32 0.0, %v546
      %v548 = vpop.f32.mrb[0].mxu0
      %549 = vmatprep.mubr.bf16.mxu0 0
      %550 = vmatmul.mubr.bf16.gmra.mrb[0].mxu0 %v407
      %v551 = vpop.f32.mrb[0].mxu0
      %v552 = vadd.f32 0.0, %v551
      %v553 = vpop.f32.mrb[0].mxu0
      %v554 = vpop.f32.mrb[0].mxu0
      %v555 = vadd.f32 0.0, %v554
      %v556 = vpop.f32.mrb[0].mxu0
      %557 = vmatprep.mubr.bf16.mxu0 0
      %558 = vmatmul.mubr.bf16.gmra.mrb[0].mxu0 %v410
      %v559 = vpop.f32.mrb[0].mxu0
      %v560 = vadd.f32 0.0, %v559
      %v561 = vpop.f32.mrb[0].mxu0
      %v562 = vpop.f32.mrb[0].mxu0
      %v563 = vadd.f32 0.0, %v562
      %v564 = vpop.f32.mrb[0].mxu0
      %565 = vmatprep.mubr.bf16.mxu0 0
      %566 = vmatmul.mubr.bf16.gmra.mrb[0].mxu0 %v413
      %v567 = vpop.f32.mrb[0].mxu0
      %v568 = vadd.f32 0.0, %v567
      %v569 = vpop.f32.mrb[0].mxu0
      %v570 = vpop.f32.mrb[0].mxu0
      %v571 = vadd.f32 0.0, %v570
      %v572 = vpop.f32.mrb[0].mxu0
      %573 = vmatprep.mubr.bf16.mxu0 0
      %574 = vmatmul.mubr.bf16.gmra.mrb[0].mxu0 %v416
      %v575 = vpop.f32.mrb[0].mxu0
      %v576 = vadd.f32 0.0, %v575
      %v577 = vpop.f32.mrb[0].mxu0
      %v578 = vpop.f32.mrb[0].mxu0
      %v579 = vadd.f32 0.0, %v578
      %v580 = vpop.f32.mrb[0].mxu0
      %581 = vmatprep.mubr.bf16.mxu0 0
      %582 = vmatmul.mubr.bf16.gmra.mrb[0].mxu0 %v419
      %v583 = vpop.f32.mrb[0].mxu0
      %v584 = vadd.f32 0.0, %v583
      %v585 = vpop.f32.mrb[0].mxu0
      %v586 = vpop.f32.mrb[0].mxu0
      %v587 = vadd.f32 0.0, %v586
      %v588 = vpop.f32.mrb[0].mxu0
      %589 = vmatprep.mubr.bf16.mxu0 0
      %590 = vmatmul.mubr.bf16.gmra.mrb[0].mxu0 %v422
      %v591 = vpop.f32.mrb[0].mxu0
      %v592 = vadd.f32 0.0, %v591
      %v593 = vpop.f32.mrb[0].mxu0
      %v594 = vpop.f32.mrb[0].mxu0
      %v595 = vadd.f32 0.0, %v594
      %v596 = vpop.f32.mrb[0].mxu0
      %597 = vmatprep.mubr.bf16.mxu0 0
      %598 = vmatmul.mubr.bf16.gmra.mrb[0].mxu0 %v425
      %v599 = vpop.f32.mrb[0].mxu0
      %v600 = vadd.f32 0.0, %v599
      %v601 = vpop.f32.mrb[0].mxu0
      %v602 = vpop.f32.mrb[0].mxu0
      %v603 = vadd.f32 0.0, %v602
      %v604 = vpop.f32.mrb[0].mxu0
      %605 = vmatprep.mubr.bf16.mxu0 0
      %606 = vmatmul.mubr.bf16.gmra.mrb[0].mxu0 %v428
      %v607 = vpop.f32.mrb[0].mxu0
      %v608 = vadd.f32 0.0, %v607
      %v609 = vpop.f32.mrb[0].mxu0
      %v610 = vpop.f32.mrb[0].mxu0
      %v611 = vadd.f32 0.0, %v610
      %v612 = vpop.f32.mrb[0].mxu0
      %613 = vmatprep.mubr.bf16.mxu0 0
      %614 = vmatmul.mubr.bf16.gmra.mrb[0].mxu0 %v431
      %v615 = vpop.f32.mrb[0].mxu0
      %v616 = vadd.f32 0.0, %v615
      %v617 = vpop.f32.mrb[0].mxu0
      %v618 = vpop.f32.mrb[0].mxu0
      %v619 = vadd.f32 0.0, %v618
      %v620 = vpop.f32.mrb[0].mxu0
      %621 = vmatprep.mubr.bf16.mxu0 0
      %622 = vmatmul.mubr.bf16.gmra.mrb[0].mxu0 %v434
      %v623 = vpop.f32.mrb[0].mxu0
      %v624 = vadd.f32 0.0, %v623
      %v625 = vpop.f32.mrb[0].mxu0
      %v626 = vpop.f32.mrb[0].mxu0
      %v627 = vadd.f32 0.0, %v626
      %v628 = vpop.f32.mrb[0].mxu0
      %629 = vmatprep.mubr.bf16.mxu0 0
      %630 = vmatmul.mubr.bf16.gmra.mrb[0].mxu0 %v437
      %v631 = vpop.f32.mrb[0].mxu0
      %v632 = vadd.f32 0.0, %v631
      %v633 = vpop.f32.mrb[0].mxu0
      %v634 = vpop.f32.mrb[0].mxu0
      %v635 = vadd.f32 0.0, %v634
      %v636 = vpop.f32.mrb[0].mxu0
      %637 = vmatprep.mubr.bf16.mxu0 0
      %638 = vmatmul.mubr.bf16.gmra.mrb[0].mxu0 %v440
      %v639 = vpop.f32.mrb[0].mxu0
      %v640 = vadd.f32 0.0, %v639
      %v641 = vpop.f32.mrb[0].mxu0
      %v642 = vpop.f32.mrb[0].mxu0
      %v643 = vadd.f32 0.0, %v642
      %v644 = vpop.f32.mrb[0].mxu0
      %645 = vmatprep.mubr.bf16.mxu0 0
      %646 = vmatmul.mubr.bf16.gmra.mrb[0].mxu0 %v443
      %v647 = vpop.f32.mrb[0].mxu0
      %v648 = vadd.f32 0.0, %v647
      %v649 = vpop.f32.mrb[0].mxu0
      %v650 = vpop.f32.mrb[0].mxu0
      %v651 = vadd.f32 0.0, %v650
      %v652 = vpop.f32.mrb[0].mxu0
      %653 = vmatprep.mubr.bf16.mxu0 0
      %654 = vmatmul.mubr.bf16.gmra.mrb[0].mxu0 %v446
      %v655 = vpop.f32.mrb[0].mxu0
      %v656 = vadd.f32 0.0, %v655
      %v657 = vpop.f32.mrb[0].mxu0
      %v658 = vpop.f32.mrb[0].mxu0
      %v659 = vadd.f32 0.0, %v658
      %v660 = vpop.f32.mrb[0].mxu0
      %661 = vmatprep.mubr.bf16.mxu0 0
      %662 = vmatmul.mubr.bf16.gmra.mrb[0].mxu0 %v449
      %v663 = vpop.f32.mrb[0].mxu0
      %v664 = vadd.f32 0.0, %v663
      %v665 = vpop.f32.mrb[0].mxu0
      %v666 = vpop.f32.mrb[0].mxu0
      %v667 = vadd.f32 0.0, %v666
      %v668 = vpop.f32.mrb[0].mxu0
      %669 = vmatprep.mubr.bf16.mxu0 0
      %670 = vmatmul.mubr.bf16.gmra.mrb[0].mxu0 %v452
      %v671 = vpop.f32.mrb[0].mxu0
      %v672 = vadd.f32 0.0, %v671
      %v673 = vpop.f32.mrb[0].mxu0
      %v674 = vpop.f32.mrb[0].mxu0
      %v675 = vadd.f32 0.0, %v674
      %v676 = vpop.f32.mrb[0].mxu0
      %677 = vmatprep.mubr.bf16.mxu0 0
      %678 = vmatmul.mubr.bf16.gmra.mrb[0].mxu0 %v455
      %v679 = vpop.f32.mrb[0].mxu0
      %v680 = vadd.f32 0.0, %v679
      %v681 = vpop.f32.mrb[0].mxu0
      %v682 = vpop.f32.mrb[0].mxu0
      %v683 = vadd.f32 0.0, %v682
      %v684 = vpop.f32.mrb[0].mxu0
      %685 = vmatprep.mubr.bf16.mxu0 0
      %686 = vmatmul.mubr.bf16.gmra.mrb[0].mxu0 %v458
      %v687 = vpop.f32.mrb[0].mxu0
      %v688 = vadd.f32 0.0, %v687
      %v689 = vpop.f32.mrb[0].mxu0
      %v690 = vpop.f32.mrb[0].mxu0
      %v691 = vadd.f32 0.0, %v690
      %v692 = vpop.f32.mrb[0].mxu0
      %693 = vmatprep.mubr.bf16.mxu0 0
      %694 = vmatmul.mubr.bf16.gmra.mrb[0].mxu0 %v461
      %v695 = vpop.f32.mrb[0].mxu0
      %v696 = vadd.f32 0.0, %v695
      %v697 = vpop.f32.mrb[0].mxu0
      %v698 = vpop.f32.mrb[0].mxu0
      %v699 = vadd.f32 0.0, %v698
      %v700 = vpop.f32.mrb[0].mxu0
      %701 = vmatprep.mubr.bf16.mxu0 0
      %702 = vmatmul.mubr.bf16.gmra.mrb[0].mxu0 %v464
      %v703 = vpop.f32.mrb[0].mxu0
      %v704 = vadd.f32 0.0, %v703
      %v705 = vpop.f32.mrb[0].mxu0
      %v706 = vpop.f32.mrb[0].mxu0
      %v707 = vadd.f32 0.0, %v706
      %v708 = vpop.f32.mrb[0].mxu0
      %709 = vmatprep.mubr.bf16.mxu0 0
      %710 = vmatmul.mubr.bf16.gmra.mrb[0].mxu0 %v467
      %v711 = vpop.f32.mrb[0].mxu0
      %v712 = vadd.f32 0.0, %v711
      %v713 = vpop.f32.mrb[0].mxu0
      %v714 = vpop.f32.mrb[0].mxu0
      %v715 = vadd.f32 0.0, %v714
      %v716 = vpop.f32.mrb[0].mxu0
      %717 = vmatprep.mubr.bf16.mxu0 0
      %718 = vmatmul.mubr.bf16.gmra.mrb[0].mxu0 %v470
      %v719 = vpop.f32.mrb[0].mxu0
      %v720 = vadd.f32 0.0, %v719
      %v721 = vpop.f32.mrb[0].mxu0
      %v722 = vpop.f32.mrb[0].mxu0
      %v723 = vadd.f32 0.0, %v722
      %v724 = vpop.f32.mrb[0].mxu0
      %725 = vmatprep.mubr.bf16.mxu0 0
      %726 = vmatmul.mubr.bf16.gmra.mrb[0].mxu0 %v473
      %v727 = vpop.f32.mrb[0].mxu0
      %v728 = vadd.f32 0.0, %v727
      %v729 = vpop.f32.mrb[0].mxu0
      %v730 = vpop.f32.mrb[0].mxu0
      %v731 = vadd.f32 0.0, %v730
      %v732 = vpop.f32.mrb[0].mxu0
      %733 = vmatprep.mubr.bf16.mxu0 0
      %734 = vmatmul.mubr.bf16.gmra.mrb[0].mxu0 %v476
      %v735 = vpop.f32.mrb[0].mxu0
      %v736 = vadd.f32 0.0, %v735
      %v737 = vpop.f32.mrb[0].mxu0
      %v738 = vpop.f32.mrb[0].mxu0
      %v739 = vadd.f32 0.0, %v738
      %v740 = vpop.f32.mrb[0].mxu0
      %741 = vmatprep.mubr.bf16.mxu0 0
      %742 = vmatmul.mubr.bf16.gmra.mrb[0].mxu0 %v479
      %v743 = vpop.f32.mrb[0].mxu0
      %v744 = vadd.f32 0.0, %v743
      %v745 = vpop.f32.mrb[0].mxu0
      %v746 = vpop.f32.mrb[0].mxu0
      %v747 = vadd.f32 0.0, %v746
      %v748 = vpop.f32.mrb[0].mxu0
      %749 = vmatprep.mubr.bf16.mxu0 0
      %750 = vmatmul.mubr.bf16.gmra.mrb[0].mxu0 %v482
      %v751 = vpop.f32.mrb[0].mxu0
      %v752 = vadd.f32 0.0, %v751
      %v753 = vpop.f32.mrb[0].mxu0
      %v754 = vpop.f32.mrb[0].mxu0
      %v755 = vadd.f32 0.0, %v754
      %v756 = vpop.f32.mrb[0].mxu0
      %757 = vmatprep.mubr.bf16.mxu0 0
      %758 = vmatmul.mubr.bf16.gmra.mrb[0].mxu0 %v485
      %v759 = vpop.f32.mrb[0].mxu0
      %v760 = vadd.f32 0.0, %v759
      %v761 = vpop.f32.mrb[0].mxu0
      %v762 = vpop.f32.mrb[0].mxu0
      %v763 = vadd.f32 0.0, %v762
      %v764 = vpop.f32.mrb[0].mxu0
      %765 = vmatprep.mubr.bf16.mxu0 0
      %766 = vmatmul.mubr.bf16.gmra.mrb[0].mxu0 %v488
      %v767 = vpop.f32.mrb[0].mxu0
      %v768 = vadd.f32 0.0, %v767
      %v769 = vpop.f32.mrb[0].mxu0
      %v770 = vpop.f32.mrb[0].mxu0
      %v771 = vadd.f32 0.0, %v770
      %v772 = vpop.f32.mrb[0].mxu0
      %773 = vmatprep.mubr.bf16.mxu0 0
      %774 = vmatmul.mubr.bf16.gmra.mrb[0].mxu0 %v491
      %v775 = vpop.f32.mrb[0].mxu0
      %v776 = vadd.f32 0.0, %v775
      %v777 = vpop.f32.mrb[0].mxu0
      %v778 = vpop.f32.mrb[0].mxu0
      %v779 = vadd.f32 0.0, %v778
      %v780 = vpop.f32.mrb[0].mxu0
      %781 = vdwg.mxu0
      %vm782 = vcmp.gt.f32.partialorder %v528, 0.0
      %vm783 = vcmp.gt.f32.partialorder %v531, 0.0
      %vm784 = vcmp.gt.f32.partialorder %v536, 0.0
      %vm785 = vcmp.gt.f32.partialorder %v539, 0.0
      %vm786 = vcmp.gt.f32.partialorder %v544, 0.0
      %vm787 = vcmp.gt.f32.partialorder %v547, 0.0
      %vm788 = vcmp.gt.f32.partialorder %v552, 0.0
      %vm789 = vcmp.gt.f32.partialorder %v555, 0.0
      %vm790 = vcmp.gt.f32.partialorder %v560, 0.0
      %vm791 = vcmp.gt.f32.partialorder %v563, 0.0
      %vm792 = vcmp.gt.f32.partialorder %v568, 0.0
      %vm793 = vcmp.gt.f32.partialorder %v571, 0.0
      %vm794 = vcmp.gt.f32.partialorder %v576, 0.0
      %vm795 = vcmp.gt.f32.partialorder %v579, 0.0
      %vm796 = vcmp.gt.f32.partialorder %v584, 0.0
      %vm797 = vcmp.gt.f32.partialorder %v587, 0.0
      %vm798 = vcmp.gt.f32.partialorder %v592, 0.0
      %vm799 = vcmp.gt.f32.partialorder %v595, 0.0
      %vm800 = vcmp.gt.f32.partialorder %v600, 0.0
      %vm801 = vcmp.gt.f32.partialorder %v603, 0.0
      %vm802 = vcmp.gt.f32.partialorder %v608, 0.0
      %vm803 = vcmp.gt.f32.partialorder %v611, 0.0
      %vm804 = vcmp.gt.f32.partialorder %v616, 0.0
      %vm805 = vcmp.gt.f32.partialorder %v619, 0.0
      %vm806 = vcmp.gt.f32.partialorder %v624, 0.0
      %vm807 = vcmp.gt.f32.partialorder %v627, 0.0
      %vm808 = vcmp.gt.f32.partialorder %v632, 0.0
      %vm809 = vcmp.gt.f32.partialorder %v635, 0.0
      %vm810 = vcmp.gt.f32.partialorder %v640, 0.0
      %vm811 = vcmp.gt.f32.partialorder %v643, 0.0
      %vm812 = vcmp.gt.f32.partialorder %v648, 0.0
      %vm813 = vcmp.gt.f32.partialorder %v651, 0.0
      %vm814 = vcmp.gt.f32.partialorder %v656, 0.0
      %vm815 = vcmp.gt.f32.partialorder %v659, 0.0
      %vm816 = vcmp.gt.f32.partialorder %v664, 0.0
      %vm817 = vcmp.gt.f32.partialorder %v667, 0.0
      %vm818 = vcmp.gt.f32.partialorder %v672, 0.0
      %vm819 = vcmp.gt.f32.partialorder %v675, 0.0
      %vm820 = vcmp.gt.f32.partialorder %v680, 0.0
      %vm821 = vcmp.gt.f32.partialorder %v683, 0.0
      %vm822 = vcmp.gt.f32.partialorder %v688, 0.0
      %vm823 = vcmp.gt.f32.partialorder %v691, 0.0
      %vm824 = vcmp.gt.f32.partialorder %v696, 0.0
      %vm825 = vcmp.gt.f32.partialorder %v699, 0.0
      %vm826 = vcmp.gt.f32.partialorder %v704, 0.0
      %vm827 = vcmp.gt.f32.partialorder %v707, 0.0
      %vm828 = vcmp.gt.f32.partialorder %v712, 0.0
      %vm829 = vcmp.gt.f32.partialorder %v715, 0.0
      %vm830 = vcmp.gt.f32.partialorder %v720, 0.0
      %vm831 = vcmp.gt.f32.partialorder %v723, 0.0
      %vm832 = vcmp.gt.f32.partialorder %v728, 0.0
      %vm833 = vcmp.gt.f32.partialorder %v731, 0.0
      %vm834 = vcmp.gt.f32.partialorder %v736, 0.0
      %vm835 = vcmp.gt.f32.partialorder %v739, 0.0
      %vm836 = vcmp.gt.f32.partialorder %v744, 0.0
      %vm837 = vcmp.gt.f32.partialorder %v747, 0.0
      %vm838 = vcmp.gt.f32.partialorder %v752, 0.0
      %vm839 = vcmp.gt.f32.partialorder %v755, 0.0
      %vm840 = vcmp.gt.f32.partialorder %v760, 0.0
      %vm841 = vcmp.gt.f32.partialorder %v763, 0.0
      %vm842 = vcmp.gt.f32.partialorder %v768, 0.0
      %vm843 = vcmp.gt.f32.partialorder %v771, 0.0
      %vm844 = vcmp.gt.f32.partialorder %v776, 0.0
      %vm845 = vcmp.gt.f32.partialorder %v779, 0.0
      %v846 = vmul.f32 %v528, 0.2
      %v847 = vmul.f32 %v531, 0.2
      %v848 = vmul.f32 %v536, 0.2
      %v849 = vmul.f32 %v539, 0.2
      %v850 = vmul.f32 %v544, 0.2
      %v851 = vmul.f32 %v547, 0.2
      %v852 = vmul.f32 %v552, 0.2
      %v853 = vmul.f32 %v555, 0.2
      %v854 = vmul.f32 %v560, 0.2
      %v855 = vmul.f32 %v563, 0.2
      %v856 = vmul.f32 %v568, 0.2
      %v857 = vmul.f32 %v571, 0.2
      %v858 = vmul.f32 %v576, 0.2
      %v859 = vmul.f32 %v579, 0.2
      %v860 = vmul.f32 %v584, 0.2
      %v861 = vmul.f32 %v587, 0.2
      %v862 = vmul.f32 %v592, 0.2
      %v863 = vmul.f32 %v595, 0.2
      %v864 = vmul.f32 %v600, 0.2
      %v865 = vmul.f32 %v603, 0.2
      %v866 = vmul.f32 %v608, 0.2
      %v867 = vmul.f32 %v611, 0.2
      %v868 = vmul.f32 %v616, 0.2
      %v869 = vmul.f32 %v619, 0.2
      %v870 = vmul.f32 %v624, 0.2
      %v871 = vmul.f32 %v627, 0.2
      %v872 = vmul.f32 %v632, 0.2
      %v873 = vmul.f32 %v635, 0.2
      %v874 = vmul.f32 %v640, 0.2
      %v875 = vmul.f32 %v643, 0.2
      %v876 = vmul.f32 %v648, 0.2
      %v877 = vmul.f32 %v651, 0.2
      %v878 = vmul.f32 %v656, 0.2
      %v879 = vmul.f32 %v659, 0.2
      %v880 = vmul.f32 %v664, 0.2
      %v881 = vmul.f32 %v667, 0.2
      %v882 = vmul.f32 %v672, 0.2
      %v883 = vmul.f32 %v675, 0.2
      %v884 = vmul.f32 %v680, 0.2
      %v885 = vmul.f32 %v683, 0.2
      %v886 = vmul.f32 %v688, 0.2
      %v887 = vmul.f32 %v691, 0.2
      %v888 = vmul.f32 %v696, 0.2
      %v889 = vmul.f32 %v699, 0.2
      %v890 = vmul.f32 %v704, 0.2
      %v891 = vmul.f32 %v707, 0.2
      %v892 = vmul.f32 %v712, 0.2
      %v893 = vmul.f32 %v715, 0.2
      %v894 = vmul.f32 %v720, 0.2
      %v895 = vmul.f32 %v723, 0.2
      %v896 = vmul.f32 %v728, 0.2
      %v897 = vmul.f32 %v731, 0.2
      %v898 = vmul.f32 %v736, 0.2
      %v899 = vmul.f32 %v739, 0.2
      %v900 = vmul.f32 %v744, 0.2
      %v901 = vmul.f32 %v747, 0.2
      %v902 = vmul.f32 %v752, 0.2
      %v903 = vmul.f32 %v755, 0.2
      %v904 = vmul.f32 %v760, 0.2
      %v905 = vmul.f32 %v763, 0.2
      %v906 = vmul.f32 %v768, 0.2
      %v907 = vmul.f32 %v771, 0.2
      %v908 = vmul.f32 %v776, 0.2
      %v909 = vmul.f32 %v779, 0.2
      %v910 = vsel %vm782, %v528, %v846
      %v911 = vsel %vm783, %v531, %v847
      %v912 = vsel %vm784, %v536, %v848
      %v913 = vsel %vm785, %v539, %v849
      %v914 = vsel %vm786, %v544, %v850
      %v915 = vsel %vm787, %v547, %v851
      %v916 = vsel %vm788, %v552, %v852
      %v917 = vsel %vm789, %v555, %v853
      %v918 = vsel %vm790, %v560, %v854
      %v919 = vsel %vm791, %v563, %v855
      %v920 = vsel %vm792, %v568, %v856
      %v921 = vsel %vm793, %v571, %v857
      %v922 = vsel %vm794, %v576, %v858
      %v923 = vsel %vm795, %v579, %v859
      %v924 = vsel %vm796, %v584, %v860
      %v925 = vsel %vm797, %v587, %v861
      %v926 = vsel %vm798, %v592, %v862
      %v927 = vsel %vm799, %v595, %v863
      %v928 = vsel %vm800, %v600, %v864
      %v929 = vsel %vm801, %v603, %v865
      %v930 = vsel %vm802, %v608, %v866
      %v931 = vsel %vm803, %v611, %v867
      %v932 = vsel %vm804, %v616, %v868
      %v933 = vsel %vm805, %v619, %v869
      %v934 = vsel %vm806, %v624, %v870
      %v935 = vsel %vm807, %v627, %v871
      %v936 = vsel %vm808, %v632, %v872
      %v937 = vsel %vm809, %v635, %v873
      %v938 = vsel %vm810, %v640, %v874
      %v939 = vsel %vm811, %v643, %v875
      %v940 = vsel %vm812, %v648, %v876
      %v941 = vsel %vm813, %v651, %v877
      %v942 = vsel %vm814, %v656, %v878
      %v943 = vsel %vm815, %v659, %v879
      %v944 = vsel %vm816, %v664, %v880
      %v945 = vsel %vm817, %v667, %v881
      %v946 = vsel %vm818, %v672, %v882
      %v947 = vsel %vm819, %v675, %v883
      %v948 = vsel %vm820, %v680, %v884
      %v949 = vsel %vm821, %v683, %v885
      %v950 = vsel %vm822, %v688, %v886
      %v951 = vsel %vm823, %v691, %v887
      %v952 = vsel %vm824, %v696, %v888
      %v953 = vsel %vm825, %v699, %v889
      %v954 = vsel %vm826, %v704, %v890
      %v955 = vsel %vm827, %v707, %v891
      %v956 = vsel %vm828, %v712, %v892
      %v957 = vsel %vm829, %v715, %v893
      %v958 = vsel %vm830, %v720, %v894
      %v959 = vsel %vm831, %v723, %v895
      %v960 = vsel %vm832, %v728, %v896
      %v961 = vsel %vm833, %v731, %v897
      %v962 = vsel %vm834, %v736, %v898
      %v963 = vsel %vm835, %v739, %v899
      %v964 = vsel %vm836, %v744, %v900
      %v965 = vsel %vm837, %v747, %v901
      %v966 = vsel %vm838, %v752, %v902
      %v967 = vsel %vm839, %v755, %v903
      %v968 = vsel %vm840, %v760, %v904
      %v969 = vsel %vm841, %v763, %v905
      %v970 = vsel %vm842, %v768, %v906
      %v971 = vsel %vm843, %v771, %v907
      %v972 = vsel %vm844, %v776, %v908
      %v973 = vsel %vm845, %v779, %v909
      %vm974 = vcmask 64512
      %975 = vst.msk [vmem:[%s145] sm:$0xff] %vm974, %v910
      %976 = vst.msk [vmem:[%s145 + $0x8] sm:$0xff] %vm974, %v911
      %977 = vst.msk [vmem:[%s145 + $0x10] sm:$0xff] %vm974, %v912
      %978 = vst.msk [vmem:[%s145 + $0x18] sm:$0xff] %vm974, %v913
      %979 = vst.msk [vmem:[%s145 + $0x20] sm:$0xff] %vm974, %v914
      %980 = vst.msk [vmem:[%s145 + $0x28] sm:$0xff] %vm974, %v915
      %981 = vst.msk [vmem:[%s145 + $0x30] sm:$0xff] %vm974, %v916
      %982 = vst.msk [vmem:[%s145 + $0x38] sm:$0xff] %vm974, %v917
      %983 = vst.msk [vmem:[%s145 + $0x40] sm:$0xff] %vm974, %v918
      %984 = vst.msk [vmem:[%s145 + $0x48] sm:$0xff] %vm974, %v919
      %985 = vst.msk [vmem:[%s145 + $0x50] sm:$0xff] %vm974, %v920
      %986 = vst.msk [vmem:[%s145 + $0x58] sm:$0xff] %vm974, %v921
      %987 = vst.msk [vmem:[%s145 + $0x60] sm:$0xff] %vm974, %v922
      %988 = vst.msk [vmem:[%s145 + $0x68] sm:$0xff] %vm974, %v923
      %989 = vst.msk [vmem:[%s145 + $0x70] sm:$0xff] %vm974, %v924
      %990 = vst.msk [vmem:[%s145 + $0x78] sm:$0xff] %vm974, %v925
      %991 = vst.msk [vmem:[%s145 + $0x80] sm:$0xff] %vm974, %v926
      %992 = vst.msk [vmem:[%s145 + $0x88] sm:$0xff] %vm974, %v927
      %993 = vst.msk [vmem:[%s145 + $0x90] sm:$0xff] %vm974, %v928
      %994 = vst.msk [vmem:[%s145 + $0x98] sm:$0xff] %vm974, %v929
      %995 = vst.msk [vmem:[%s145 + $0xa0] sm:$0xff] %vm974, %v930
      %996 = vst.msk [vmem:[%s145 + $0xa8] sm:$0xff] %vm974, %v931
      %997 = vst.msk [vmem:[%s145 + $0xb0] sm:$0xff] %vm974, %v932
      %998 = vst.msk [vmem:[%s145 + $0xb8] sm:$0xff] %vm974, %v933
      %999 = vst.msk [vmem:[%s145 + $0xc0] sm:$0xff] %vm974, %v934
      %1000 = vst.msk [vmem:[%s145 + $0xc8] sm:$0xff] %vm974, %v935
      %1001 = vst.msk [vmem:[%s145 + $0xd0] sm:$0xff] %vm974, %v936
      %1002 = vst.msk [vmem:[%s145 + $0xd8] sm:$0xff] %vm974, %v937
      %1003 = vst.msk [vmem:[%s145 + $0xe0] sm:$0xff] %vm974, %v938
      %1004 = vst.msk [vmem:[%s145 + $0xe8] sm:$0xff] %vm974, %v939
      %1005 = vst.msk [vmem:[%s145 + $0xf0] sm:$0xff] %vm974, %v940
      %1006 = vst.msk [vmem:[%s145 + $0xf8] sm:$0xff] %vm974, %v941
      %1007 = vst.msk [vmem:[%s145 + $0x100] sm:$0xff] %vm974, %v942
      %1008 = vst.msk [vmem:[%s145 + $0x108] sm:$0xff] %vm974, %v943
      %1009 = vst.msk [vmem:[%s145 + $0x110] sm:$0xff] %vm974, %v944
      %1010 = vst.msk [vmem:[%s145 + $0x118] sm:$0xff] %vm974, %v945
      %1011 = vst.msk [vmem:[%s145 + $0x120] sm:$0xff] %vm974, %v946
      %1012 = vst.msk [vmem:[%s145 + $0x128] sm:$0xff] %vm974, %v947
      %1013 = vst.msk [vmem:[%s145 + $0x130] sm:$0xff] %vm974, %v948
      %1014 = vst.msk [vmem:[%s145 + $0x138] sm:$0xff] %vm974, %v949
      %1015 = vst.msk [vmem:[%s145 + $0x140] sm:$0xff] %vm974, %v950
      %1016 = vst.msk [vmem:[%s145 + $0x148] sm:$0xff] %vm974, %v951
      %1017 = vst.msk [vmem:[%s145 + $0x150] sm:$0xff] %vm974, %v952
      %1018 = vst.msk [vmem:[%s145 + $0x158] sm:$0xff] %vm974, %v953
      %1019 = vst.msk [vmem:[%s145 + $0x160] sm:$0xff] %vm974, %v954
      %1020 = vst.msk [vmem:[%s145 + $0x168] sm:$0xff] %vm974, %v955
      %1021 = vst.msk [vmem:[%s145 + $0x170] sm:$0xff] %vm974, %v956
      %1022 = vst.msk [vmem:[%s145 + $0x178] sm:$0xff] %vm974, %v957
      %1023 = vst.msk [vmem:[%s145 + $0x180] sm:$0xff] %vm974, %v958
      %1024 = vst.msk [vmem:[%s145 + $0x188] sm:$0xff] %vm974, %v959
      %1025 = vst.msk [vmem:[%s145 + $0x190] sm:$0xff] %vm974, %v960
      %1026 = vst.msk [vmem:[%s145 + $0x198] sm:$0xff] %vm974, %v961
      %1027 = vst.msk [vmem:[%s145 + $0x1a0] sm:$0xff] %vm974, %v962
      %1028 = vst.msk [vmem:[%s145 + $0x1a8] sm:$0xff] %vm974, %v963
      %1029 = vst.msk [vmem:[%s145 + $0x1b0] sm:$0xff] %vm974, %v964
      %1030 = vst.msk [vmem:[%s145 + $0x1b8] sm:$0xff] %vm974, %v965
      %1031 = vst.msk [vmem:[%s145 + $0x1c0] sm:$0xff] %vm974, %v966
      %1032 = vst.msk [vmem:[%s145 + $0x1c8] sm:$0xff] %vm974, %v967
      %1033 = vst.msk [vmem:[%s145 + $0x1d0] sm:$0xff] %vm974, %v968
      %1034 = vst.msk [vmem:[%s145 + $0x1d8] sm:$0xff] %vm974, %v969
      %1035 = vst.msk [vmem:[%s145 + $0x1e0] sm:$0xff] %vm974, %v970
      %1036 = vst.msk [vmem:[%s145 + $0x1e8] sm:$0xff] %vm974, %v971
      %1037 = vst.msk [vmem:[%s145 + $0x1f0] sm:$0xff] %vm974, %v972
      %1038 = vst.msk [vmem:[%s145 + $0x1f8] sm:$0xff] %vm974, %v973
      %s1039 = smul.u32 64, %s13
      %p1040 = scmp.lt.s32.totalorder %s1039, 255
      %s1041 = scalar_select %p1040, %s1039, 255
      %s1042 = smul.addr %s1041, 8
      %s1043 = scalar_lea.vmem %s2, %s1042
      // Predicated region
      $region29: #{discriminator_forward.5} parent=27 // pred_check
        %p1044 = pneg %p78
      $region30: #{discriminator_forward.5} parent=27 // pred_check_branch
        %1046 = sbr.rel (%p1044) target = $region32
      $region31: #{discriminator_forward.5} parent=27 // pred_region
        %s1047 = smul.u32 64, %s13
      $region32: #{discriminator_forward.5} parent=27 // pred_fallthru
        _
    $region28: #{discriminator_forward.5} parent=5 // pred_fallthru
      _
    %p1048 = scmp.le.s32.totalorder 2, %s8
    // Predicated region
    $region33: #{discriminator_forward.5} parent=5 // pred_check
      %p1049 = pneg %p1048
    $region34: #{discriminator_forward.5} parent=5 // pred_check_branch
      %1051 = sbr.rel (%p1049) target = $region36
    $region35: #{discriminator_forward.5} parent=5 // pred_region
      %s1052 = ssub.s32 %s8, 2
      // Predicated region
      $region37: #{discriminator_forward.5} parent=35 // pred_check
        %p1053 = pneg %p84
      $region38: #{discriminator_forward.5} parent=35 // pred_check_branch
        %1055 = sbr.rel (%p1053) target = $region40
      $region39: #{discriminator_forward.5} parent=35 // pred_region
        %s1056 = smul.u32 64, %s14
        %p1057 = scmp.lt.s32.totalorder %s1056, 255
        %s1058 = scalar_select %p1057, %s1056, 255
        %s1059 = smul.addr %s1058, 8
        %s1060 = scalar_lea.vmem %s2, %s1059
      $region40: #{discriminator_forward.5} parent=35 // pred_fallthru
        _
    $region36: #{discriminator_forward.5} parent=5 // pred_fallthru
      _
  $region6: #{discriminator_forward.5} parent=0 // loop_footer
    %s12 = sadd.s32 1, %s8
  $region7: #{discriminator_forward.5} parent=0 // loop_footer_branch
    %7 = sbr.rel target = $region3
  $region8: #{discriminator_forward.5} parent=0 // loop_exit
    _

// kernel: discriminator_forward.6
$region0: #{discriminator_forward.6}
  #allocation0 [shape = 'u32[]', space=smem, size = 0x4, offset = 0x4, fixed_abs, tag = 'smem constant byte address 0x4 - core index']
  #allocation1 [shape = 'u32[144,128]{1,0:T(1,128)}', space=vmem, size = 0x12000, scoped, tag = 'internal scratch']
  #allocation2 [shape = 'f32[1,16]{1,0:T(1,128)}', space=vmem, size = 0x200, scoped, tag = 'scratch operand']
  #allocation3 [shape = 'f32[1,16]{1,0:T(1,128)}', space=vmem, size = 0x200, scoped, tag = 'scratch operand']
  %s0 = inlined_call_operand.vmem [shape: bf16[512,128], index: 0, kind: input, shape index: {}]
  %s1 = inlined_call_operand.vmem [shape: bf16[128,16], index: 1, kind: input, shape index: {}]
  %s2 = inlined_call_operand.vmem [shape: f32[1,16], index: 2, kind: input, shape index: {}]
  %s3 = inlined_call_operand.vmem [shape: f32[1,16], index: 3, kind: input, shape index: {}]
  %s4 = inlined_call_operand.vmem [shape: f32[512,16], index: 4, kind: output, shape index: {}]
  %s5 = sld [smem:[#allocation0]]
  $region34: #{discriminator_forward.6} parent=0
    _
  %s7 = ssub.s32 1, %s5
  %s8 = scalar_select 0, %s7, %s5
  // Predicated region
  $region2: #{discriminator_forward.6} parent=0 // pred_check
    _
  $region3: #{discriminator_forward.6} parent=0 // pred_check_branch
    %10 = sbr.rel (0) target = $region5
  $region4: #{discriminator_forward.6} parent=0 // pred_region
    _
  $region5: #{discriminator_forward.6} parent=0 // pred_fallthru
    _
  // Predicated region
  $region6: #{discriminator_forward.6} parent=0 // pred_check
    _
  $region7: #{discriminator_forward.6} parent=0 // pred_check_branch
    %12 = sbr.rel (0) target = $region9
  $region8: #{discriminator_forward.6} parent=0 // pred_region
    _
  $region9: #{discriminator_forward.6} parent=0 // pred_fallthru
    _
  // Predicated region
  $region10: #{discriminator_forward.6} parent=0 // pred_check
    _
  $region11: #{discriminator_forward.6} parent=0 // pred_check_branch
    %14 = sbr.rel (0) target = $region13
  $region12: #{discriminator_forward.6} parent=0 // pred_region
    _
  $region13: #{discriminator_forward.6} parent=0 // pred_fallthru
    _
  // Predicated region
  $region14: #{discriminator_forward.6} parent=0 // pred_check
    _
  $region15: #{discriminator_forward.6} parent=0 // pred_check_branch
    %16 = sbr.rel (0) target = $region17
  $region16: #{discriminator_forward.6} parent=0 // pred_region
    _
  $region17: #{discriminator_forward.6} parent=0 // pred_fallthru
    _
  %p18 = scmp.eq.s32.totalorder 0, 0
  // Predicated region
  $region18: #{discriminator_forward.6} parent=0 // pred_check
    %p19 = pneg %p18
  $region19: #{discriminator_forward.6} parent=0 // pred_check_branch
    %21 = sbr.rel (%p19) target = $region21
  $region20: #{discriminator_forward.6} parent=0 // pred_region
    %vm22 = vcmask 122880
    %23 = vst.msk [vmem:[#allocation2] sm:$0x1] %vm22, 0.0
    %24 = vst.msk [vmem:[#allocation3] sm:$0x1] %vm22, 0.0
  $region21: #{discriminator_forward.6} parent=0 // pred_fallthru
    _
  %v25 = vld [vmem:[%s0] sm:$0xf]
  %v26 = vld [vmem:[%s0 + $0x4] sm:$0xf]
  %v27 = vld [vmem:[%s0 + $0x8] sm:$0xf]
  %v28 = vld [vmem:[%s0 + $0xc] sm:$0xf]
  %v29 = vld [vmem:[%s0 + $0x10] sm:$0xf]
  %v30 = vld [vmem:[%s0 + $0x14] sm:$0xf]
  %v31 = vld [vmem:[%s0 + $0x18] sm:$0xf]
  %v32 = vld [vmem:[%s0 + $0x1c] sm:$0xf]
  %v33 = vld [vmem:[%s0 + $0x20] sm:$0xf]
  %v34 = vld [vmem:[%s0 + $0x24] sm:$0xf]
  %v35 = vld [vmem:[%s0 + $0x28] sm:$0xf]
  %v36 = vld [vmem:[%s0 + $0x2c] sm:$0xf]
  %v37 = vld [vmem:[%s0 + $0x30] sm:$0xf]
  %v38 = vld [vmem:[%s0 + $0x34] sm:$0xf]
  %v39 = vld [vmem:[%s0 + $0x38] sm:$0xf]
  %v40 = vld [vmem:[%s0 + $0x3c] sm:$0xf]
  %v41 = vld [vmem:[%s0 + $0x40] sm:$0xf]
  %v42 = vld [vmem:[%s0 + $0x44] sm:$0xf]
  %v43 = vld [vmem:[%s0 + $0x48] sm:$0xf]
  %v44 = vld [vmem:[%s0 + $0x4c] sm:$0xf]
  %v45 = vld [vmem:[%s0 + $0x50] sm:$0xf]
  %v46 = vld [vmem:[%s0 + $0x54] sm:$0xf]
  %v47 = vld [vmem:[%s0 + $0x58] sm:$0xf]
  %v48 = vld [vmem:[%s0 + $0x5c] sm:$0xf]
  %v49 = vld [vmem:[%s0 + $0x60] sm:$0xf]
  %v50 = vld [vmem:[%s0 + $0x64] sm:$0xf]
  %v51 = vld [vmem:[%s0 + $0x68] sm:$0xf]
  %v52 = vld [vmem:[%s0 + $0x6c] sm:$0xf]
  %v53 = vld [vmem:[%s0 + $0x70] sm:$0xf]
  %v54 = vld [vmem:[%s0 + $0x74] sm:$0xf]
  %v55 = vld [vmem:[%s0 + $0x78] sm:$0xf]
  %v56 = vld [vmem:[%s0 + $0x7c] sm:$0xf]
  %v57 = vld [vmem:[%s0 + $0x80] sm:$0xf]
  %v58 = vld [vmem:[%s0 + $0x84] sm:$0xf]
  %v59 = vld [vmem:[%s0 + $0x88] sm:$0xf]
  %v60 = vld [vmem:[%s0 + $0x8c] sm:$0xf]
  %v61 = vld [vmem:[%s0 + $0x90] sm:$0xf]
  %v62 = vld [vmem:[%s0 + $0x94] sm:$0xf]
  %v63 = vld [vmem:[%s0 + $0x98] sm:$0xf]
  %v64 = vld [vmem:[%s0 + $0x9c] sm:$0xf]
  %v65 = vld [vmem:[%s0 + $0xa0] sm:$0xf]
  %v66 = vld [vmem:[%s0 + $0xa4] sm:$0xf]
  %v67 = vld [vmem:[%s0 + $0xa8] sm:$0xf]
  %v68 = vld [vmem:[%s0 + $0xac] sm:$0xf]
  %v69 = vld [vmem:[%s0 + $0xb0] sm:$0xf]
  %v70 = vld [vmem:[%s0 + $0xb4] sm:$0xf]
  %v71 = vld [vmem:[%s0 + $0xb8] sm:$0xf]
  %v72 = vld [vmem:[%s0 + $0xbc] sm:$0xf]
  %v73 = vld [vmem:[%s0 + $0xc0] sm:$0xf]
  %v74 = vld [vmem:[%s0 + $0xc4] sm:$0xf]
  %v75 = vld [vmem:[%s0 + $0xc8] sm:$0xf]
  %v76 = vld [vmem:[%s0 + $0xcc] sm:$0xf]
  %v77 = vld [vmem:[%s0 + $0xd0] sm:$0xf]
  %v78 = vld [vmem:[%s0 + $0xd4] sm:$0xf]
  %v79 = vld [vmem:[%s0 + $0xd8] sm:$0xf]
  %v80 = vld [vmem:[%s0 + $0xdc] sm:$0xf]
  %v81 = vld [vmem:[%s0 + $0xe0] sm:$0xf]
  %v82 = vld [vmem:[%s0 + $0xe4] sm:$0xf]
  %v83 = vld [vmem:[%s0 + $0xe8] sm:$0xf]
  %v84 = vld [vmem:[%s0 + $0xec] sm:$0xf]
  %v85 = vld [vmem:[%s0 + $0xf0] sm:$0xf]
  %v86 = vld [vmem:[%s0 + $0xf4] sm:$0xf]
  %v87 = vld [vmem:[%s0 + $0xf8] sm:$0xf]
  %v88 = vld [vmem:[%s0 + $0xfc] sm:$0xf]
  %v89 = vld [vmem:[%s1] sm:$0xf]
  %v90 = vld [vmem:[%s1 + $0x4] sm:$0xf]
  %v91 = vld [vmem:[%s1 + $0x8] sm:$0xf]
  %v92 = vld [vmem:[%s1 + $0xc] sm:$0xf]
  %v93 = vld [vmem:[%s1 + $0x10] sm:$0xf]
  %v94 = vld [vmem:[%s1 + $0x14] sm:$0xf]
  %v95 = vld [vmem:[%s1 + $0x18] sm:$0xf]
  %v96 = vld [vmem:[%s1 + $0x1c] sm:$0xf]
  %v97 = vld [vmem:[%s1 + $0x20] sm:$0xf]
  %v98 = vld [vmem:[%s1 + $0x24] sm:$0xf]
  %v99 = vld [vmem:[%s1 + $0x28] sm:$0xf]
  %v100 = vld [vmem:[%s1 + $0x2c] sm:$0xf]
  %v101 = vld [vmem:[%s1 + $0x30] sm:$0xf]
  %v102 = vld [vmem:[%s1 + $0x34] sm:$0xf]
  %v103 = vld [vmem:[%s1 + $0x38] sm:$0xf]
  %v104 = vld [vmem:[%s1 + $0x3c] sm:$0xf]
  %v169 = vunpack.c.l.b16 %v25
  %v170 = vunpack.c.l.b16 %v26
  %v171 = vunpack.c.l.b16 %v27
  %v172 = vunpack.c.l.b16 %v28
  %v173 = vunpack.c.l.b16 %v29
  %v174 = vunpack.c.l.b16 %v30
  %v175 = vunpack.c.l.b16 %v31
  %v176 = vunpack.c.l.b16 %v32
  %v177 = vunpack.c.l.b16 %v33
  %v178 = vunpack.c.l.b16 %v34
  %v179 = vunpack.c.l.b16 %v35
  %v180 = vunpack.c.l.b16 %v36
  %v181 = vunpack.c.l.b16 %v37
  %v182 = vunpack.c.l.b16 %v38
  %v183 = vunpack.c.l.b16 %v39
  %v184 = vunpack.c.l.b16 %v40
  %v185 = vunpack.c.l.b16 %v41
  %v186 = vunpack.c.l.b16 %v42
  %v187 = vunpack.c.l.b16 %v43
  %v188 = vunpack.c.l.b16 %v44
  %v189 = vunpack.c.l.b16 %v45
  %v190 = vunpack.c.l.b16 %v46
  %v191 = vunpack.c.l.b16 %v47
  %v192 = vunpack.c.l.b16 %v48
  %v193 = vunpack.c.l.b16 %v49
  %v194 = vunpack.c.l.b16 %v50
  %v195 = vunpack.c.l.b16 %v51
  %v196 = vunpack.c.l.b16 %v52
  %v197 = vunpack.c.l.b16 %v53
  %v198 = vunpack.c.l.b16 %v54
  %v199 = vunpack.c.l.b16 %v55
  %v200 = vunpack.c.l.b16 %v56
  %v201 = vunpack.c.l.b16 %v57
  %v202 = vunpack.c.l.b16 %v58
  %v203 = vunpack.c.l.b16 %v59
  %v204 = vunpack.c.l.b16 %v60
  %v205 = vunpack.c.l.b16 %v61
  %v206 = vunpack.c.l.b16 %v62
  %v207 = vunpack.c.l.b16 %v63
  %v208 = vunpack.c.l.b16 %v64
  %v209 = vunpack.c.l.b16 %v65
  %v210 = vunpack.c.l.b16 %v66
  %v211 = vunpack.c.l.b16 %v67
  %v212 = vunpack.c.l.b16 %v68
  %v213 = vunpack.c.l.b16 %v69
  %v214 = vunpack.c.l.b16 %v70
  %v215 = vunpack.c.l.b16 %v71
  %v216 = vunpack.c.l.b16 %v72
  %v217 = vunpack.c.l.b16 %v73
  %v218 = vunpack.c.l.b16 %v74
  %v219 = vunpack.c.l.b16 %v75
  %v220 = vunpack.c.l.b16 %v76
  %v221 = vunpack.c.l.b16 %v77
  %v222 = vunpack.c.l.b16 %v78
  %v223 = vunpack.c.l.b16 %v79
  %v224 = vunpack.c.l.b16 %v80
  %v225 = vunpack.c.l.b16 %v81
  %v226 = vunpack.c.l.b16 %v82
  %v227 = vunpack.c.l.b16 %v83
  %v228 = vunpack.c.l.b16 %v84
  %v229 = vunpack.c.l.b16 %v85
  %v230 = vunpack.c.l.b16 %v86
  %v231 = vunpack.c.l.b16 %v87
  %v232 = vunpack.c.l.b16 %v88
  %v233 = vpack.c.b16 %v170, %v169
  %v234 = vpack.c.b16 %v172, %v171
  %v235 = vpack.c.b16 %v174, %v173
  %v236 = vpack.c.b16 %v176, %v175
  %v237 = vpack.c.b16 %v178, %v177
  %v238 = vpack.c.b16 %v180, %v179
  %v239 = vpack.c.b16 %v182, %v181
  %v240 = vpack.c.b16 %v184, %v183
  %v241 = vpack.c.b16 %v186, %v185
  %v242 = vpack.c.b16 %v188, %v187
  %v243 = vpack.c.b16 %v190, %v189
  %v244 = vpack.c.b16 %v192, %v191
  %v245 = vpack.c.b16 %v194, %v193
  %v246 = vpack.c.b16 %v196, %v195
  %v247 = vpack.c.b16 %v198, %v197
  %v248 = vpack.c.b16 %v200, %v199
  %v249 = vpack.c.b16 %v202, %v201
  %v250 = vpack.c.b16 %v204, %v203
  %v251 = vpack.c.b16 %v206, %v205
  %v252 = vpack.c.b16 %v208, %v207
  %v253 = vpack.c.b16 %v210, %v209
  %v254 = vpack.c.b16 %v212, %v211
  %v255 = vpack.c.b16 %v214, %v213
  %v256 = vpack.c.b16 %v216, %v215
  %v257 = vpack.c.b16 %v218, %v217
  %v258 = vpack.c.b16 %v220, %v219
  %v259 = vpack.c.b16 %v222, %v221
  %v260 = vpack.c.b16 %v224, %v223
  %v261 = vpack.c.b16 %v226, %v225
  %v262 = vpack.c.b16 %v228, %v227
  %v263 = vpack.c.b16 %v230, %v229
  %v264 = vpack.c.b16 %v232, %v231
  %v313 = vunpack.c.l.b16 %v89
  %v314 = vunpack.c.l.b16 %v90
  %v315 = vunpack.c.l.b16 %v91
  %v316 = vunpack.c.l.b16 %v92
  %v317 = vunpack.c.l.b16 %v93
  %v318 = vunpack.c.l.b16 %v94
  %v319 = vunpack.c.l.b16 %v95
  %v320 = vunpack.c.l.b16 %v96
  %v321 = vunpack.c.l.b16 %v97
  %v322 = vunpack.c.l.b16 %v98
  %v323 = vunpack.c.l.b16 %v99
  %v324 = vunpack.c.l.b16 %v100
  %v325 = vunpack.c.l.b16 %v101
  %v326 = vunpack.c.l.b16 %v102
  %v327 = vunpack.c.l.b16 %v103
  %v328 = vunpack.c.l.b16 %v104
  %v329 = vpack.c.b16 %v314, %v313
  %v330 = vpack.c.b16 %v316, %v315
  %v331 = vpack.c.b16 %v318, %v317
  %v332 = vpack.c.b16 %v320, %v319
  %v333 = vpack.c.b16 %v322, %v321
  %v334 = vpack.c.b16 %v324, %v323
  %v335 = vpack.c.b16 %v326, %v325
  %v336 = vpack.c.b16 %v328, %v327
  %345 = vmatprep.subr.bf16.mxu0 0
  %346 = vmatpush1.bf16.msra.mxu0 %v329
  %347 = vmatprep.subr.bf16.mxu0 0
  %348 = vmatpush1.bf16.msra.mxu0 %v330
  %349 = vmatprep.subr.bf16.mxu0 0
  %350 = vmatpush1.bf16.msra.mxu0 %v331
  %351 = vmatprep.subr.bf16.mxu0 0
  %352 = vmatpush1.bf16.msra.mxu0 %v332
  %353 = vmatprep.subr.bf16.mxu0 0
  %354 = vmatpush1.bf16.msra.mxu0 %v333
  %355 = vmatprep.subr.bf16.mxu0 0
  %356 = vmatpush1.bf16.msra.mxu0 %v334
  %357 = vmatprep.subr.bf16.mxu0 0
  %358 = vmatpush1.bf16.msra.mxu0 %v335
  %359 = vmatprep.subr.bf16.mxu0 0
  %360 = vmatpush1.bf16.msra.mxu0 %v336
  %361 = vmatprep.subr.bf16.mxu0 0
  %362 = vmatpush1.bf16.msra.mxu0 0
  %363 = vmatprep.subr.bf16.mxu0 0
  %364 = vmatpush1.bf16.msra.mxu0 0
  %365 = vmatprep.subr.bf16.mxu0 0
  %366 = vmatpush1.bf16.msra.mxu0 0
  %367 = vmatprep.subr.bf16.mxu0 0
  %368 = vmatpush1.bf16.msra.mxu0 0
  %369 = vmatprep.subr.bf16.mxu0 0
  %370 = vmatpush1.bf16.msra.mxu0 0
  %371 = vmatprep.subr.bf16.mxu0 0
  %372 = vmatpush1.bf16.msra.mxu0 0
  %373 = vmatprep.subr.bf16.mxu0 0
  %374 = vmatpush1.bf16.msra.mxu0 0
  %375 = vmatprep.subr.bf16.mxu0 0
  %376 = vmatpush1.bf16.msra.mxu0 0
  %377 = vmatprep.mubr.bf16.mxu0 0
  %378 = vmatmul.mubr.bf16.gmra.mrb[0].mxu0 %v233
  %v379 = vpop.f32.mrb[0].mxu0
  %v380 = vadd.f32 0.0, %v379
  %v381 = vpop.f32.mrb[0].mxu0
  %v382 = vpop.f32.mrb[0].mxu0
  %v383 = vadd.f32 0.0, %v382
  %v384 = vpop.f32.mrb[0].mxu0
  %385 = vmatprep.mubr.bf16.mxu0 0
  %386 = vmatmul.mubr.bf16.gmra.mrb[0].mxu0 %v234
  %v387 = vpop.f32.mrb[0].mxu0
  %v388 = vadd.f32 0.0, %v387
  %v389 = vpop.f32.mrb[0].mxu0
  %v390 = vpop.f32.mrb[0].mxu0
  %v391 = vadd.f32 0.0, %v390
  %v392 = vpop.f32.mrb[0].mxu0
  %393 = vmatprep.mubr.bf16.mxu0 0
  %394 = vmatmul.mubr.bf16.gmra.mrb[0].mxu0 %v235
  %v395 = vpop.f32.mrb[0].mxu0
  %v396 = vadd.f32 0.0, %v395
  %v397 = vpop.f32.mrb[0].mxu0
  %v398 = vpop.f32.mrb[0].mxu0
  %v399 = vadd.f32 0.0, %v398
  %v400 = vpop.f32.mrb[0].mxu0
  %401 = vmatprep.mubr.bf16.mxu0 0
  %402 = vmatmul.mubr.bf16.gmra.mrb[0].mxu0 %v236
  %v403 = vpop.f32.mrb[0].mxu0
  %v404 = vadd.f32 0.0, %v403
  %v405 = vpop.f32.mrb[0].mxu0
  %v406 = vpop.f32.mrb[0].mxu0
  %v407 = vadd.f32 0.0, %v406
  %v408 = vpop.f32.mrb[0].mxu0
  %409 = vmatprep.mubr.bf16.mxu0 0
  %410 = vmatmul.mubr.bf16.gmra.mrb[0].mxu0 %v237
  %v411 = vpop.f32.mrb[0].mxu0
  %v412 = vadd.f32 0.0, %v411
  %v413 = vpop.f32.mrb[0].mxu0
  %v414 = vpop.f32.mrb[0].mxu0
  %v415 = vadd.f32 0.0, %v414
  %v416 = vpop.f32.mrb[0].mxu0
  %417 = vmatprep.mubr.bf16.mxu0 0
  %418 = vmatmul.mubr.bf16.gmra.mrb[0].mxu0 %v238
  %v419 = vpop.f32.mrb[0].mxu0
  %v420 = vadd.f32 0.0, %v419
  %v421 = vpop.f32.mrb[0].mxu0
  %v422 = vpop.f32.mrb[0].mxu0
  %v423 = vadd.f32 0.0, %v422
  %v424 = vpop.f32.mrb[0].mxu0
  %425 = vmatprep.mubr.bf16.mxu0 0
  %426 = vmatmul.mubr.bf16.gmra.mrb[0].mxu0 %v239
  %v427 = vpop.f32.mrb[0].mxu0
  %v428 = vadd.f32 0.0, %v427
  %v429 = vpop.f32.mrb[0].mxu0
  %v430 = vpop.f32.mrb[0].mxu0
  %v431 = vadd.f32 0.0, %v430
  %v432 = vpop.f32.mrb[0].mxu0
  %433 = vmatprep.mubr.bf16.mxu0 0
  %434 = vmatmul.mubr.bf16.gmra.mrb[0].mxu0 %v240
  %v435 = vpop.f32.mrb[0].mxu0
  %v436 = vadd.f32 0.0, %v435
  %v437 = vpop.f32.mrb[0].mxu0
  %v438 = vpop.f32.mrb[0].mxu0
  %v439 = vadd.f32 0.0, %v438
  %v440 = vpop.f32.mrb[0].mxu0
  %441 = vmatprep.mubr.bf16.mxu0 0
  %442 = vmatmul.mubr.bf16.gmra.mrb[0].mxu0 %v241
  %v443 = vpop.f32.mrb[0].mxu0
  %v444 = vadd.f32 0.0, %v443
  %v445 = vpop.f32.mrb[0].mxu0
  %v446 = vpop.f32.mrb[0].mxu0
  %v447 = vadd.f32 0.0, %v446
  %v448 = vpop.f32.mrb[0].mxu0
  %449 = vmatprep.mubr.bf16.mxu0 0
  %450 = vmatmul.mubr.bf16.gmra.mrb[0].mxu0 %v242
  %v451 = vpop.f32.mrb[0].mxu0
  %v452 = vadd.f32 0.0, %v451
  %v453 = vpop.f32.mrb[0].mxu0
  %v454 = vpop.f32.mrb[0].mxu0
  %v455 = vadd.f32 0.0, %v454
  %v456 = vpop.f32.mrb[0].mxu0
  %457 = vmatprep.mubr.bf16.mxu0 0
  %458 = vmatmul.mubr.bf16.gmra.mrb[0].mxu0 %v243
  %v459 = vpop.f32.mrb[0].mxu0
  %v460 = vadd.f32 0.0, %v459
  %v461 = vpop.f32.mrb[0].mxu0
  %v462 = vpop.f32.mrb[0].mxu0
  %v463 = vadd.f32 0.0, %v462
  %v464 = vpop.f32.mrb[0].mxu0
  %465 = vmatprep.mubr.bf16.mxu0 0
  %466 = vmatmul.mubr.bf16.gmra.mrb[0].mxu0 %v244
  %v467 = vpop.f32.mrb[0].mxu0
  %v468 = vadd.f32 0.0, %v467
  %v469 = vpop.f32.mrb[0].mxu0
  %v470 = vpop.f32.mrb[0].mxu0
  %v471 = vadd.f32 0.0, %v470
  %v472 = vpop.f32.mrb[0].mxu0
  %473 = vmatprep.mubr.bf16.mxu0 0
  %474 = vmatmul.mubr.bf16.gmra.mrb[0].mxu0 %v245
  %v475 = vpop.f32.mrb[0].mxu0
  %v476 = vadd.f32 0.0, %v475
  %v477 = vpop.f32.mrb[0].mxu0
  %v478 = vpop.f32.mrb[0].mxu0
  %v479 = vadd.f32 0.0, %v478
  %v480 = vpop.f32.mrb[0].mxu0
  %481 = vmatprep.mubr.bf16.mxu0 0
  %482 = vmatmul.mubr.bf16.gmra.mrb[0].mxu0 %v246
  %v483 = vpop.f32.mrb[0].mxu0
  %v484 = vadd.f32 0.0, %v483
  %v485 = vpop.f32.mrb[0].mxu0
  %v486 = vpop.f32.mrb[0].mxu0
  %v487 = vadd.f32 0.0, %v486
  %v488 = vpop.f32.mrb[0].mxu0
  %489 = vmatprep.mubr.bf16.mxu0 0
  %490 = vmatmul.mubr.bf16.gmra.mrb[0].mxu0 %v247
  %v491 = vpop.f32.mrb[0].mxu0
  %v492 = vadd.f32 0.0, %v491
  %v493 = vpop.f32.mrb[0].mxu0
  %v494 = vpop.f32.mrb[0].mxu0
  %v495 = vadd.f32 0.0, %v494
  %v496 = vpop.f32.mrb[0].mxu0
  %497 = vmatprep.mubr.bf16.mxu0 0
  %498 = vmatmul.mubr.bf16.gmra.mrb[0].mxu0 %v248
  %v499 = vpop.f32.mrb[0].mxu0
  %v500 = vadd.f32 0.0, %v499
  %v501 = vpop.f32.mrb[0].mxu0
  %v502 = vpop.f32.mrb[0].mxu0
  %v503 = vadd.f32 0.0, %v502
  %v504 = vpop.f32.mrb[0].mxu0
  %505 = vmatprep.mubr.bf16.mxu0 0
  %506 = vmatmul.mubr.bf16.gmra.mrb[0].mxu0 %v249
  %v507 = vpop.f32.mrb[0].mxu0
  %v508 = vadd.f32 0.0, %v507
  %v509 = vpop.f32.mrb[0].mxu0
  %v510 = vpop.f32.mrb[0].mxu0
  %v511 = vadd.f32 0.0, %v510
  %v512 = vpop.f32.mrb[0].mxu0
  %513 = vmatprep.mubr.bf16.mxu0 0
  %514 = vmatmul.mubr.bf16.gmra.mrb[0].mxu0 %v250
  %v515 = vpop.f32.mrb[0].mxu0
  %v516 = vadd.f32 0.0, %v515
  %v517 = vpop.f32.mrb[0].mxu0
  %v518 = vpop.f32.mrb[0].mxu0
  %v519 = vadd.f32 0.0, %v518
  %v520 = vpop.f32.mrb[0].mxu0
  %521 = vmatprep.mubr.bf16.mxu0 0
  %522 = vmatmul.mubr.bf16.gmra.mrb[0].mxu0 %v251
  %v523 = vpop.f32.mrb[0].mxu0
  %v524 = vadd.f32 0.0, %v523
  %v525 = vpop.f32.mrb[0].mxu0
  %v526 = vpop.f32.mrb[0].mxu0
  %v527 = vadd.f32 0.0, %v526
  %v528 = vpop.f32.mrb[0].mxu0
  %529 = vmatprep.mubr.bf16.mxu0 0
  %530 = vmatmul.mubr.bf16.gmra.mrb[0].mxu0 %v252
  %v531 = vpop.f32.mrb[0].mxu0
  %v532 = vadd.f32 0.0, %v531
  %v533 = vpop.f32.mrb[0].mxu0
  %v534 = vpop.f32.mrb[0].mxu0
  %v535 = vadd.f32 0.0, %v534
  %v536 = vpop.f32.mrb[0].mxu0
  %537 = vmatprep.mubr.bf16.mxu0 0
  %538 = vmatmul.mubr.bf16.gmra.mrb[0].mxu0 %v253
  %v539 = vpop.f32.mrb[0].mxu0
  %v540 = vadd.f32 0.0, %v539
  %v541 = vpop.f32.mrb[0].mxu0
  %v542 = vpop.f32.mrb[0].mxu0
  %v543 = vadd.f32 0.0, %v542
  %v544 = vpop.f32.mrb[0].mxu0
  %545 = vmatprep.mubr.bf16.mxu0 0
  %546 = vmatmul.mubr.bf16.gmra.mrb[0].mxu0 %v254
  %v547 = vpop.f32.mrb[0].mxu0
  %v548 = vadd.f32 0.0, %v547
  %v549 = vpop.f32.mrb[0].mxu0
  %v550 = vpop.f32.mrb[0].mxu0
  %v551 = vadd.f32 0.0, %v550
  %v552 = vpop.f32.mrb[0].mxu0
  %553 = vmatprep.mubr.bf16.mxu0 0
  %554 = vmatmul.mubr.bf16.gmra.mrb[0].mxu0 %v255
  %v555 = vpop.f32.mrb[0].mxu0
  %v556 = vadd.f32 0.0, %v555
  %v557 = vpop.f32.mrb[0].mxu0
  %v558 = vpop.f32.mrb[0].mxu0
  %v559 = vadd.f32 0.0, %v558
  %v560 = vpop.f32.mrb[0].mxu0
  %561 = vmatprep.mubr.bf16.mxu0 0
  %562 = vmatmul.mubr.bf16.gmra.mrb[0].mxu0 %v256
  %v563 = vpop.f32.mrb[0].mxu0
  %v564 = vadd.f32 0.0, %v563
  %v565 = vpop.f32.mrb[0].mxu0
  %v566 = vpop.f32.mrb[0].mxu0
  %v567 = vadd.f32 0.0, %v566
  %v568 = vpop.f32.mrb[0].mxu0
  %569 = vmatprep.mubr.bf16.mxu0 0
  %570 = vmatmul.mubr.bf16.gmra.mrb[0].mxu0 %v257
  %v571 = vpop.f32.mrb[0].mxu0
  %v572 = vadd.f32 0.0, %v571
  %v573 = vpop.f32.mrb[0].mxu0
  %v574 = vpop.f32.mrb[0].mxu0
  %v575 = vadd.f32 0.0, %v574
  %v576 = vpop.f32.mrb[0].mxu0
  %577 = vmatprep.mubr.bf16.mxu0 0
  %578 = vmatmul.mubr.bf16.gmra.mrb[0].mxu0 %v258
  %v579 = vpop.f32.mrb[0].mxu0
  %v580 = vadd.f32 0.0, %v579
  %v581 = vpop.f32.mrb[0].mxu0
  %v582 = vpop.f32.mrb[0].mxu0
  %v583 = vadd.f32 0.0, %v582
  %v584 = vpop.f32.mrb[0].mxu0
  %585 = vmatprep.mubr.bf16.mxu0 0
  %586 = vmatmul.mubr.bf16.gmra.mrb[0].mxu0 %v259
  %v587 = vpop.f32.mrb[0].mxu0
  %v588 = vadd.f32 0.0, %v587
  %v589 = vpop.f32.mrb[0].mxu0
  %v590 = vpop.f32.mrb[0].mxu0
  %v591 = vadd.f32 0.0, %v590
  %v592 = vpop.f32.mrb[0].mxu0
  %593 = vmatprep.mubr.bf16.mxu0 0
  %594 = vmatmul.mubr.bf16.gmra.mrb[0].mxu0 %v260
  %v595 = vpop.f32.mrb[0].mxu0
  %v596 = vadd.f32 0.0, %v595
  %v597 = vpop.f32.mrb[0].mxu0
  %v598 = vpop.f32.mrb[0].mxu0
  %v599 = vadd.f32 0.0, %v598
  %v600 = vpop.f32.mrb[0].mxu0
  %601 = vmatprep.mubr.bf16.mxu0 0
  %602 = vmatmul.mubr.bf16.gmra.mrb[0].mxu0 %v261
  %v603 = vpop.f32.mrb[0].mxu0
  %v604 = vadd.f32 0.0, %v603
  %v605 = vpop.f32.mrb[0].mxu0
  %v606 = vpop.f32.mrb[0].mxu0
  %v607 = vadd.f32 0.0, %v606
  %v608 = vpop.f32.mrb[0].mxu0
  %609 = vmatprep.mubr.bf16.mxu0 0
  %610 = vmatmul.mubr.bf16.gmra.mrb[0].mxu0 %v262
  %v611 = vpop.f32.mrb[0].mxu0
  %v612 = vadd.f32 0.0, %v611
  %v613 = vpop.f32.mrb[0].mxu0
  %v614 = vpop.f32.mrb[0].mxu0
  %v615 = vadd.f32 0.0, %v614
  %v616 = vpop.f32.mrb[0].mxu0
  %617 = vmatprep.mubr.bf16.mxu0 0
  %618 = vmatmul.mubr.bf16.gmra.mrb[0].mxu0 %v263
  %v619 = vpop.f32.mrb[0].mxu0
  %v620 = vadd.f32 0.0, %v619
  %v621 = vpop.f32.mrb[0].mxu0
  %v622 = vpop.f32.mrb[0].mxu0
  %v623 = vadd.f32 0.0, %v622
  %v624 = vpop.f32.mrb[0].mxu0
  %625 = vmatprep.mubr.bf16.mxu0 0
  %626 = vmatmul.mubr.bf16.gmra.mrb[0].mxu0 %v264
  %v627 = vpop.f32.mrb[0].mxu0
  %v628 = vadd.f32 0.0, %v627
  %v629 = vpop.f32.mrb[0].mxu0
  %v630 = vpop.f32.mrb[0].mxu0
  %v631 = vadd.f32 0.0, %v630
  %v632 = vpop.f32.mrb[0].mxu0
  %633 = vdwg.mxu0
  %s634 = smul.u32 0, 512
  %s635 = scalar_lea.vmem %s4, %s634
  %vm636 = vcmask 130048
  %637 = vst.msk [vmem:[%s635] sm:$0xff] %vm636, %v380
  %638 = vst.msk [vmem:[%s635 + $0x8] sm:$0xff] %vm636, %v383
  %639 = vst.msk [vmem:[%s635 + $0x10] sm:$0xff] %vm636, %v388
  %640 = vst.msk [vmem:[%s635 + $0x18] sm:$0xff] %vm636, %v391
  %641 = vst.msk [vmem:[%s635 + $0x20] sm:$0xff] %vm636, %v396
  %642 = vst.msk [vmem:[%s635 + $0x28] sm:$0xff] %vm636, %v399
  %643 = vst.msk [vmem:[%s635 + $0x30] sm:$0xff] %vm636, %v404
  %644 = vst.msk [vmem:[%s635 + $0x38] sm:$0xff] %vm636, %v407
  %645 = vst.msk [vmem:[%s635 + $0x40] sm:$0xff] %vm636, %v412
  %646 = vst.msk [vmem:[%s635 + $0x48] sm:$0xff] %vm636, %v415
  %647 = vst.msk [vmem:[%s635 + $0x50] sm:$0xff] %vm636, %v420
  %648 = vst.msk [vmem:[%s635 + $0x58] sm:$0xff] %vm636, %v423
  %649 = vst.msk [vmem:[%s635 + $0x60] sm:$0xff] %vm636, %v428
  %650 = vst.msk [vmem:[%s635 + $0x68] sm:$0xff] %vm636, %v431
  %651 = vst.msk [vmem:[%s635 + $0x70] sm:$0xff] %vm636, %v436
  %652 = vst.msk [vmem:[%s635 + $0x78] sm:$0xff] %vm636, %v439
  %653 = vst.msk [vmem:[%s635 + $0x80] sm:$0xff] %vm636, %v444
  %654 = vst.msk [vmem:[%s635 + $0x88] sm:$0xff] %vm636, %v447
  %655 = vst.msk [vmem:[%s635 + $0x90] sm:$0xff] %vm636, %v452
  %656 = vst.msk [vmem:[%s635 + $0x98] sm:$0xff] %vm636, %v455
  %657 = vst.msk [vmem:[%s635 + $0xa0] sm:$0xff] %vm636, %v460
  %658 = vst.msk [vmem:[%s635 + $0xa8] sm:$0xff] %vm636, %v463
  %659 = vst.msk [vmem:[%s635 + $0xb0] sm:$0xff] %vm636, %v468
  %660 = vst.msk [vmem:[%s635 + $0xb8] sm:$0xff] %vm636, %v471
  %661 = vst.msk [vmem:[%s635 + $0xc0] sm:$0xff] %vm636, %v476
  %662 = vst.msk [vmem:[%s635 + $0xc8] sm:$0xff] %vm636, %v479
  %663 = vst.msk [vmem:[%s635 + $0xd0] sm:$0xff] %vm636, %v484
  %664 = vst.msk [vmem:[%s635 + $0xd8] sm:$0xff] %vm636, %v487
  %665 = vst.msk [vmem:[%s635 + $0xe0] sm:$0xff] %vm636, %v492
  %666 = vst.msk [vmem:[%s635 + $0xe8] sm:$0xff] %vm636, %v495
  %667 = vst.msk [vmem:[%s635 + $0xf0] sm:$0xff] %vm636, %v500
  %668 = vst.msk [vmem:[%s635 + $0xf8] sm:$0xff] %vm636, %v503
  %669 = vst.msk [vmem:[%s635 + $0x100] sm:$0xff] %vm636, %v508
  %670 = vst.msk [vmem:[%s635 + $0x108] sm:$0xff] %vm636, %v511
  %671 = vst.msk [vmem:[%s635 + $0x110] sm:$0xff] %vm636, %v516
  %672 = vst.msk [vmem:[%s635 + $0x118] sm:$0xff] %vm636, %v519
  %673 = vst.msk [vmem:[%s635 + $0x120] sm:$0xff] %vm636, %v524
  %674 = vst.msk [vmem:[%s635 + $0x128] sm:$0xff] %vm636, %v527
  %675 = vst.msk [vmem:[%s635 + $0x130] sm:$0xff] %vm636, %v532
  %676 = vst.msk [vmem:[%s635 + $0x138] sm:$0xff] %vm636, %v535
  %677 = vst.msk [vmem:[%s635 + $0x140] sm:$0xff] %vm636, %v540
  %678 = vst.msk [vmem:[%s635 + $0x148] sm:$0xff] %vm636, %v543
  %679 = vst.msk [vmem:[%s635 + $0x150] sm:$0xff] %vm636, %v548
  %680 = vst.msk [vmem:[%s635 + $0x158] sm:$0xff] %vm636, %v551
  %681 = vst.msk [vmem:[%s635 + $0x160] sm:$0xff] %vm636, %v556
  %682 = vst.msk [vmem:[%s635 + $0x168] sm:$0xff] %vm636, %v559
  %683 = vst.msk [vmem:[%s635 + $0x170] sm:$0xff] %vm636, %v564
  %684 = vst.msk [vmem:[%s635 + $0x178] sm:$0xff] %vm636, %v567
  %685 = vst.msk [vmem:[%s635 + $0x180] sm:$0xff] %vm636, %v572
  %686 = vst.msk [vmem:[%s635 + $0x188] sm:$0xff] %vm636, %v575
  %687 = vst.msk [vmem:[%s635 + $0x190] sm:$0xff] %vm636, %v580
  %688 = vst.msk [vmem:[%s635 + $0x198] sm:$0xff] %vm636, %v583
  %689 = vst.msk [vmem:[%s635 + $0x1a0] sm:$0xff] %vm636, %v588
  %690 = vst.msk [vmem:[%s635 + $0x1a8] sm:$0xff] %vm636, %v591
  %691 = vst.msk [vmem:[%s635 + $0x1b0] sm:$0xff] %vm636, %v596
  %692 = vst.msk [vmem:[%s635 + $0x1b8] sm:$0xff] %vm636, %v599
  %693 = vst.msk [vmem:[%s635 + $0x1c0] sm:$0xff] %vm636, %v604
  %694 = vst.msk [vmem:[%s635 + $0x1c8] sm:$0xff] %vm636, %v607
  %695 = vst.msk [vmem:[%s635 + $0x1d0] sm:$0xff] %vm636, %v612
  %696 = vst.msk [vmem:[%s635 + $0x1d8] sm:$0xff] %vm636, %v615
  %697 = vst.msk [vmem:[%s635 + $0x1e0] sm:$0xff] %vm636, %v620
  %698 = vst.msk [vmem:[%s635 + $0x1e8] sm:$0xff] %vm636, %v623
  %699 = vst.msk [vmem:[%s635 + $0x1f0] sm:$0xff] %vm636, %v628
  %700 = vst.msk [vmem:[%s635 + $0x1f8] sm:$0xff] %vm636, %v631
  %v701 = vld [vmem:[#allocation2] sm:$0x1]
  %v702 = vsel %vm636, %v380, 0.0
  %v703 = vsel %vm636, %v383, 0.0
  %v704 = vadd.f32 %v702, %v703
  %v705 = vsel %vm636, %v388, 0.0
  %v706 = vadd.f32 %v704, %v705
  %v707 = vsel %vm636, %v391, 0.0
  %v708 = vadd.f32 %v706, %v707
  %v709 = vsel %vm636, %v396, 0.0
  %v710 = vadd.f32 %v708, %v709
  %v711 = vsel %vm636, %v399, 0.0
  %v712 = vadd.f32 %v710, %v711
  %v713 = vsel %vm636, %v404, 0.0
  %v714 = vadd.f32 %v712, %v713
  %v715 = vsel %vm636, %v407, 0.0
  %v716 = vadd.f32 %v714, %v715
  %v717 = vsel %vm636, %v412, 0.0
  %v718 = vadd.f32 %v716, %v717
  %v719 = vsel %vm636, %v415, 0.0
  %v720 = vadd.f32 %v718, %v719
  %v721 = vsel %vm636, %v420, 0.0
  %v722 = vadd.f32 %v720, %v721
  %v723 = vsel %vm636, %v423, 0.0
  %v724 = vadd.f32 %v722, %v723
  %v725 = vsel %vm636, %v428, 0.0
  %v726 = vadd.f32 %v724, %v725
  %v727 = vsel %vm636, %v431, 0.0
  %v728 = vadd.f32 %v726, %v727
  %v729 = vsel %vm636, %v436, 0.0
  %v730 = vadd.f32 %v728, %v729
  %v731 = vsel %vm636, %v439, 0.0
  %v732 = vadd.f32 %v730, %v731
  %v733 = vsel %vm636, %v444, 0.0
  %v734 = vadd.f32 %v732, %v733
  %v735 = vsel %vm636, %v447, 0.0
  %v736 = vadd.f32 %v734, %v735
  %v737 = vsel %vm636, %v452, 0.0
  %v738 = vadd.f32 %v736, %v737
  %v739 = vsel %vm636, %v455, 0.0
  %v740 = vadd.f32 %v738, %v739
  %v741 = vsel %vm636, %v460, 0.0
  %v742 = vadd.f32 %v740, %v741
  %v743 = vsel %vm636, %v463, 0.0
  %v744 = vadd.f32 %v742, %v743
  %v745 = vsel %vm636, %v468, 0.0
  %v746 = vadd.f32 %v744, %v745
  %v747 = vsel %vm636, %v471, 0.0
  %v748 = vadd.f32 %v746, %v747
  %v749 = vsel %vm636, %v476, 0.0
  %v750 = vadd.f32 %v748, %v749
  %v751 = vsel %vm636, %v479, 0.0
  %v752 = vadd.f32 %v750, %v751
  %v753 = vsel %vm636, %v484, 0.0
  %v754 = vadd.f32 %v752, %v753
  %v755 = vsel %vm636, %v487, 0.0
  %v756 = vadd.f32 %v754, %v755
  %v757 = vsel %vm636, %v492, 0.0
  %v758 = vadd.f32 %v756, %v757
  %v759 = vsel %vm636, %v495, 0.0
  %v760 = vadd.f32 %v758, %v759
  %v761 = vsel %vm636, %v500, 0.0
  %v762 = vadd.f32 %v760, %v761
  %v763 = vsel %vm636, %v503, 0.0
  %v764 = vadd.f32 %v762, %v763
  %v765 = vsel %vm636, %v508, 0.0
  %v766 = vadd.f32 %v764, %v765
  %v767 = vsel %vm636, %v511, 0.0
  %v768 = vadd.f32 %v766, %v767
  %v769 = vsel %vm636, %v516, 0.0
  %v770 = vadd.f32 %v768, %v769
  %v771 = vsel %vm636, %v519, 0.0
  %v772 = vadd.f32 %v770, %v771
  %v773 = vsel %vm636, %v524, 0.0
  %v774 = vadd.f32 %v772, %v773
  %v775 = vsel %vm636, %v527, 0.0
  %v776 = vadd.f32 %v774, %v775
  %v777 = vsel %vm636, %v532, 0.0
  %v778 = vadd.f32 %v776, %v777
  %v779 = vsel %vm636, %v535, 0.0
  %v780 = vadd.f32 %v778, %v779
  %v781 = vsel %vm636, %v540, 0.0
  %v782 = vadd.f32 %v780, %v781
  %v783 = vsel %vm636, %v543, 0.0
  %v784 = vadd.f32 %v782, %v783
  %v785 = vsel %vm636, %v548, 0.0
  %v786 = vadd.f32 %v784, %v785
  %v787 = vsel %vm636, %v551, 0.0
  %v788 = vadd.f32 %v786, %v787
  %v789 = vsel %vm636, %v556, 0.0
  %v790 = vadd.f32 %v788, %v789
  %v791 = vsel %vm636, %v559, 0.0
  %v792 = vadd.f32 %v790, %v791
  %v793 = vsel %vm636, %v564, 0.0
  %v794 = vadd.f32 %v792, %v793
  %v795 = vsel %vm636, %v567, 0.0
  %v796 = vadd.f32 %v794, %v795
  %v797 = vsel %vm636, %v572, 0.0
  %v798 = vadd.f32 %v796, %v797
  %v799 = vsel %vm636, %v575, 0.0
  %v800 = vadd.f32 %v798, %v799
  %v801 = vsel %vm636, %v580, 0.0
  %v802 = vadd.f32 %v800, %v801
  %v803 = vsel %vm636, %v583, 0.0
  %v804 = vadd.f32 %v802, %v803
  %v805 = vsel %vm636, %v588, 0.0
  %v806 = vadd.f32 %v804, %v805
  %v807 = vsel %vm636, %v591, 0.0
  %v808 = vadd.f32 %v806, %v807
  %v809 = vsel %vm636, %v596, 0.0
  %v810 = vadd.f32 %v808, %v809
  %v811 = vsel %vm636, %v599, 0.0
  %v812 = vadd.f32 %v810, %v811
  %v813 = vsel %vm636, %v604, 0.0
  %v814 = vadd.f32 %v812, %v813
  %v815 = vsel %vm636, %v607, 0.0
  %v816 = vadd.f32 %v814, %v815
  %v817 = vsel %vm636, %v612, 0.0
  %v818 = vadd.f32 %v816, %v817
  %v819 = vsel %vm636, %v615, 0.0
  %v820 = vadd.f32 %v818, %v819
  %v821 = vsel %vm636, %v620, 0.0
  %v822 = vadd.f32 %v820, %v821
  %v823 = vsel %vm636, %v623, 0.0
  %v824 = vadd.f32 %v822, %v823
  %v825 = vsel %vm636, %v628, 0.0
  %v826 = vadd.f32 %v824, %v825
  %v827 = vsel %vm636, %v631, 0.0
  %v828 = vadd.f32 %v826, %v827
  %v829 = vrot.slane %v828, 4
  %v830 = vadd.f32 %v828, %v829
  %v831 = vrot.slane %v830, 2
  %v832 = vadd.f32 %v830, %v831
  %v833 = vrot.slane %v832, 1
  %v834 = vadd.f32 %v832, %v833
  %v835 = vadd.f32 %v701, %v834
  %vm836 = vcmask 122880
  %837 = vst.msk [vmem:[#allocation2] sm:$0x1] %vm836, %v835
  %v838 = vld [vmem:[#allocation3] sm:$0x1]
  %v839 = vmul.f32 %v380, %v380
  %v840 = vmul.f32 %v383, %v383
  %v841 = vmul.f32 %v388, %v388
  %v842 = vmul.f32 %v391, %v391
  %v843 = vmul.f32 %v396, %v396
  %v844 = vmul.f32 %v399, %v399
  %v845 = vmul.f32 %v404, %v404
  %v846 = vmul.f32 %v407, %v407
  %v847 = vmul.f32 %v412, %v412
  %v848 = vmul.f32 %v415, %v415
  %v849 = vmul.f32 %v420, %v420
  %v850 = vmul.f32 %v423, %v423
  %v851 = vmul.f32 %v428, %v428
  %v852 = vmul.f32 %v431, %v431
  %v853 = vmul.f32 %v436, %v436
  %v854 = vmul.f32 %v439, %v439
  %v855 = vmul.f32 %v444, %v444
  %v856 = vmul.f32 %v447, %v447
  %v857 = vmul.f32 %v452, %v452
  %v858 = vmul.f32 %v455, %v455
  %v859 = vmul.f32 %v460, %v460
  %v860 = vmul.f32 %v463, %v463
  %v861 = vmul.f32 %v468, %v468
  %v862 = vmul.f32 %v471, %v471
  %v863 = vmul.f32 %v476, %v476
  %v864 = vmul.f32 %v479, %v479
  %v865 = vmul.f32 %v484, %v484
  %v866 = vmul.f32 %v487, %v487
  %v867 = vmul.f32 %v492, %v492
  %v868 = vmul.f32 %v495, %v495
  %v869 = vmul.f32 %v500, %v500
  %v870 = vmul.f32 %v503, %v503
  %v871 = vmul.f32 %v508, %v508
  %v872 = vmul.f32 %v511, %v511
  %v873 = vmul.f32 %v516, %v516
  %v874 = vmul.f32 %v519, %v519
  %v875 = vmul.f32 %v524, %v524
  %v876 = vmul.f32 %v527, %v527
  %v877 = vmul.f32 %v532, %v532
  %v878 = vmul.f32 %v535, %v535
  %v879 = vmul.f32 %v540, %v540
  %v880 = vmul.f32 %v543, %v543
  %v881 = vmul.f32 %v548, %v548
  %v882 = vmul.f32 %v551, %v551
  %v883 = vmul.f32 %v556, %v556
  %v884 = vmul.f32 %v559, %v559
  %v885 = vmul.f32 %v564, %v564
  %v886 = vmul.f32 %v567, %v567
  %v887 = vmul.f32 %v572, %v572
  %v888 = vmul.f32 %v575, %v575
  %v889 = vmul.f32 %v580, %v580
  %v890 = vmul.f32 %v583, %v583
  %v891 = vmul.f32 %v588, %v588
  %v892 = vmul.f32 %v591, %v591
  %v893 = vmul.f32 %v596, %v596
  %v894 = vmul.f32 %v599, %v599
  %v895 = vmul.f32 %v604, %v604
  %v896 = vmul.f32 %v607, %v607
  %v897 = vmul.f32 %v612, %v612
  %v898 = vmul.f32 %v615, %v615
  %v899 = vmul.f32 %v620, %v620
  %v900 = vmul.f32 %v623, %v623
  %v901 = vmul.f32 %v628, %v628
  %v902 = vmul.f32 %v631, %v631
  %v903 = vsel %vm636, %v839, 0.0
  %v904 = vsel %vm636, %v840, 0.0
  %v905 = vadd.f32 %v903, %v904
  %v906 = vsel %vm636, %v841, 0.0
  %v907 = vadd.f32 %v905, %v906
  %v908 = vsel %vm636, %v842, 0.0
  %v909 = vadd.f32 %v907, %v908
  %v910 = vsel %vm636, %v843, 0.0
  %v911 = vadd.f32 %v909, %v910
  %v912 = vsel %vm636, %v844, 0.0
  %v913 = vadd.f32 %v911, %v912
  %v914 = vsel %vm636, %v845, 0.0
  %v915 = vadd.f32 %v913, %v914
  %v916 = vsel %vm636, %v846, 0.0
  %v917 = vadd.f32 %v915, %v916
  %v918 = vsel %vm636, %v847, 0.0
  %v919 = vadd.f32 %v917, %v918
  %v920 = vsel %vm636, %v848, 0.0
  %v921 = vadd.f32 %v919, %v920
  %v922 = vsel %vm636, %v849, 0.0
  %v923 = vadd.f32 %v921, %v922
  %v924 = vsel %vm636, %v850, 0.0
  %v925 = vadd.f32 %v923, %v924
  %v926 = vsel %vm636, %v851, 0.0
  %v927 = vadd.f32 %v925, %v926
  %v928 = vsel %vm636, %v852, 0.0
  %v929 = vadd.f32 %v927, %v928
  %v930 = vsel %vm636, %v853, 0.0
  %v931 = vadd.f32 %v929, %v930
  %v932 = vsel %vm636, %v854, 0.0
  %v933 = vadd.f32 %v931, %v932
  %v934 = vsel %vm636, %v855, 0.0
  %v935 = vadd.f32 %v933, %v934
  %v936 = vsel %vm636, %v856, 0.0
  %v937 = vadd.f32 %v935, %v936
  %v938 = vsel %vm636, %v857, 0.0
  %v939 = vadd.f32 %v937, %v938
  %v940 = vsel %vm636, %v858, 0.0
  %v941 = vadd.f32 %v939, %v940
  %v942 = vsel %vm636, %v859, 0.0
  %v943 = vadd.f32 %v941, %v942
  %v944 = vsel %vm636, %v860, 0.0
  %v945 = vadd.f32 %v943, %v944
  %v946 = vsel %vm636, %v861, 0.0
  %v947 = vadd.f32 %v945, %v946
  %v948 = vsel %vm636, %v862, 0.0
  %v949 = vadd.f32 %v947, %v948
  %v950 = vsel %vm636, %v863, 0.0
  %v951 = vadd.f32 %v949, %v950
  %v952 = vsel %vm636, %v864, 0.0
  %v953 = vadd.f32 %v951, %v952
  %v954 = vsel %vm636, %v865, 0.0
  %v955 = vadd.f32 %v953, %v954
  %v956 = vsel %vm636, %v866, 0.0
  %v957 = vadd.f32 %v955, %v956
  %v958 = vsel %vm636, %v867, 0.0
  %v959 = vadd.f32 %v957, %v958
  %v960 = vsel %vm636, %v868, 0.0
  %v961 = vadd.f32 %v959, %v960
  %v962 = vsel %vm636, %v869, 0.0
  %v963 = vadd.f32 %v961, %v962
  %v964 = vsel %vm636, %v870, 0.0
  %v965 = vadd.f32 %v963, %v964
  %v966 = vsel %vm636, %v871, 0.0
  %v967 = vadd.f32 %v965, %v966
  %v968 = vsel %vm636, %v872, 0.0
  %v969 = vadd.f32 %v967, %v968
  %v970 = vsel %vm636, %v873, 0.0
  %v971 = vadd.f32 %v969, %v970
  %v972 = vsel %vm636, %v874, 0.0
  %v973 = vadd.f32 %v971, %v972
  %v974 = vsel %vm636, %v875, 0.0
  %v975 = vadd.f32 %v973, %v974
  %v976 = vsel %vm636, %v876, 0.0
  %v977 = vadd.f32 %v975, %v976
  %v978 = vsel %vm636, %v877, 0.0
  %v979 = vadd.f32 %v977, %v978
  %v980 = vsel %vm636, %v878, 0.0
  %v981 = vadd.f32 %v979, %v980
  %v982 = vsel %vm636, %v879, 0.0
  %v983 = vadd.f32 %v981, %v982
  %v984 = vsel %vm636, %v880, 0.0
  %v985 = vadd.f32 %v983, %v984
  %v986 = vsel %vm636, %v881, 0.0
  %v987 = vadd.f32 %v985, %v986
  %v988 = vsel %vm636, %v882, 0.0
  %v989 = vadd.f32 %v987, %v988
  %v990 = vsel %vm636, %v883, 0.0
  %v991 = vadd.f32 %v989, %v990
  %v992 = vsel %vm636, %v884, 0.0
  %v993 = vadd.f32 %v991, %v992
  %v994 = vsel %vm636, %v885, 0.0
  %v995 = vadd.f32 %v993, %v994
  %v996 = vsel %vm636, %v886, 0.0
  %v997 = vadd.f32 %v995, %v996
  %v998 = vsel %vm636, %v887, 0.0
  %v999 = vadd.f32 %v997, %v998
  %v1000 = vsel %vm636, %v888, 0.0
  %v1001 = vadd.f32 %v999, %v1000
  %v1002 = vsel %vm636, %v889, 0.0
  %v1003 = vadd.f32 %v1001, %v1002
  %v1004 = vsel %vm636, %v890, 0.0
  %v1005 = vadd.f32 %v1003, %v1004
  %v1006 = vsel %vm636, %v891, 0.0
  %v1007 = vadd.f32 %v1005, %v1006
  %v1008 = vsel %vm636, %v892, 0.0
  %v1009 = vadd.f32 %v1007, %v1008
  %v1010 = vsel %vm636, %v893, 0.0
  %v1011 = vadd.f32 %v1009, %v1010
  %v1012 = vsel %vm636, %v894, 0.0
  %v1013 = vadd.f32 %v1011, %v1012
  %v1014 = vsel %vm636, %v895, 0.0
  %v1015 = vadd.f32 %v1013, %v1014
  %v1016 = vsel %vm636, %v896, 0.0
  %v1017 = vadd.f32 %v1015, %v1016
  %v1018 = vsel %vm636, %v897, 0.0
  %v1019 = vadd.f32 %v1017, %v1018
  %v1020 = vsel %vm636, %v898, 0.0
  %v1021 = vadd.f32 %v1019, %v1020
  %v1022 = vsel %vm636, %v899, 0.0
  %v1023 = vadd.f32 %v1021, %v1022
  %v1024 = vsel %vm636, %v900, 0.0
  %v1025 = vadd.f32 %v1023, %v1024
  %v1026 = vsel %vm636, %v901, 0.0
  %v1027 = vadd.f32 %v1025, %v1026
  %v1028 = vsel %vm636, %v902, 0.0
  %v1029 = vadd.f32 %v1027, %v1028
  %v1030 = vrot.slane %v1029, 4
  %v1031 = vadd.f32 %v1029, %v1030
  %v1032 = vrot.slane %v1031, 2
  %v1033 = vadd.f32 %v1031, %v1032
  %v1034 = vrot.slane %v1033, 1
  %v1035 = vadd.f32 %v1033, %v1034
  %v1036 = vadd.f32 %v838, %v1035
  %1037 = vst.msk [vmem:[#allocation3] sm:$0x1] %vm836, %v1036
  // Predicated region
  $region22: #{discriminator_forward.6} parent=0 // pred_check
    %p1038 = pneg %p18
  $region23: #{discriminator_forward.6} parent=0 // pred_check_branch
    %1040 = sbr.rel (%p1038) target = $region25
  $region24: #{discriminator_forward.6} parent=0 // pred_region
    %v1041 = vld [vmem:[#allocation2] sm:$0x1]
    %v1042 = vmul.f32 %v1041, 0.001953125
    %v1043 = vld [vmem:[#allocation3] sm:$0x1]
    %v1044 = vmul.f32 %v1043, 0.001953125
    %v1045 = vmul.f32 %v1042, %v1042
    %v1046 = vsub.f32 %v1044, %v1045
    %v1047 = vmax.f32 %v1046, 0.0
    %v1048 = vld [vmem:[%s2] sm:$0x1]
    %v1049 = vadd.f32 %v1047, 1e-05
    %v1050 = vrsqrt.pop %v1049
    %v1051 = vmul.f32 %v1048, %v1050
    %v1052 = vld [vmem:[%s3] sm:$0x1]
    %v1053 = vmul.f32 %v1042, %v1051
    %v1054 = vsub.f32 %v1052, %v1053
    %v1055 = vld [vmem:[%s4] sm:$0xff]
    %v1056 = vld [vmem:[%s4 + $0x8] sm:$0xff]
    %v1057 = vld [vmem:[%s4 + $0x10] sm:$0xff]
    %v1058 = vld [vmem:[%s4 + $0x18] sm:$0xff]
    %v1059 = vld [vmem:[%s4 + $0x20] sm:$0xff]
    %v1060 = vld [vmem:[%s4 + $0x28] sm:$0xff]
    %v1061 = vld [vmem:[%s4 + $0x30] sm:$0xff]
    %v1062 = vld [vmem:[%s4 + $0x38] sm:$0xff]
    %v1063 = vld [vmem:[%s4 + $0x40] sm:$0xff]
    %v1064 = vld [vmem:[%s4 + $0x48] sm:$0xff]
    %v1065 = vld [vmem:[%s4 + $0x50] sm:$0xff]
    %v1066 = vld [vmem:[%s4 + $0x58] sm:$0xff]
    %v1067 = vld [vmem:[%s4 + $0x60] sm:$0xff]
    %v1068 = vld [vmem:[%s4 + $0x68] sm:$0xff]
    %v1069 = vld [vmem:[%s4 + $0x70] sm:$0xff]
    %v1070 = vld [vmem:[%s4 + $0x78] sm:$0xff]
    %v1071 = vld [vmem:[%s4 + $0x80] sm:$0xff]
    %v1072 = vld [vmem:[%s4 + $0x88] sm:$0xff]
    %v1073 = vld [vmem:[%s4 + $0x90] sm:$0xff]
    %v1074 = vld [vmem:[%s4 + $0x98] sm:$0xff]
    %v1075 = vld [vmem:[%s4 + $0xa0] sm:$0xff]
    %v1076 = vld [vmem:[%s4 + $0xa8] sm:$0xff]
    %v1077 = vld [vmem:[%s4 + $0xb0] sm:$0xff]
    %v1078 = vld [vmem:[%s4 + $0xb8] sm:$0xff]
    %v1079 = vld [vmem:[%s4 + $0xc0] sm:$0xff]
    %v1080 = vld [vmem:[%s4 + $0xc8] sm:$0xff]
    %v1081 = vld [vmem:[%s4 + $0xd0] sm:$0xff]
    %v1082 = vld [vmem:[%s4 + $0xd8] sm:$0xff]
    %v1083 = vld [vmem:[%s4 + $0xe0] sm:$0xff]
    %v1084 = vld [vmem:[%s4 + $0xe8] sm:$0xff]
    %v1085 = vld [vmem:[%s4 + $0xf0] sm:$0xff]
    %v1086 = vld [vmem:[%s4 + $0xf8] sm:$0xff]
    %v1087 = vld [vmem:[%s4 + $0x100] sm:$0xff]
    %v1088 = vld [vmem:[%s4 + $0x108] sm:$0xff]
    %v1089 = vld [vmem:[%s4 + $0x110] sm:$0xff]
    %v1090 = vld [vmem:[%s4 + $0x118] sm:$0xff]
    %v1091 = vld [vmem:[%s4 + $0x120] sm:$0xff]
    %v1092 = vld [vmem:[%s4 + $0x128] sm:$0xff]
    %v1093 = vld [vmem:[%s4 + $0x130] sm:$0xff]
    %v1094 = vld [vmem:[%s4 + $0x138] sm:$0xff]
    %v1095 = vld [vmem:[%s4 + $0x140] sm:$0xff]
    %v1096 = vld [vmem:[%s4 + $0x148] sm:$0xff]
    %v1097 = vld [vmem:[%s4 + $0x150] sm:$0xff]
    %v1098 = vld [vmem:[%s4 + $0x158] sm:$0xff]
    %v1099 = vld [vmem:[%s4 + $0x160] sm:$0xff]
    %v1100 = vld [vmem:[%s4 + $0x168] sm:$0xff]
    %v1101 = vld [vmem:[%s4 + $0x170] sm:$0xff]
    %v1102 = vld [vmem:[%s4 + $0x178] sm:$0xff]
    %v1103 = vld [vmem:[%s4 + $0x180] sm:$0xff]
    %v1104 = vld [vmem:[%s4 + $0x188] sm:$0xff]
    %v1105 = vld [vmem:[%s4 + $0x190] sm:$0xff]
    %v1106 = vld [vmem:[%s4 + $0x198] sm:$0xff]
    %v1107 = vld [vmem:[%s4 + $0x1a0] sm:$0xff]
    %v1108 = vld [vmem:[%s4 + $0x1a8] sm:$0xff]
    %v1109 = vld [vmem:[%s4 + $0x1b0] sm:$0xff]
    %v1110 = vld [vmem:[%s4 + $0x1b8] sm:$0xff]
    %v1111 = vld [vmem:[%s4 + $0x1c0] sm:$0xff]
    %v1112 = vld [vmem:[%s4 + $0x1c8] sm:$0xff]
    %v1113 = vld [vmem:[%s4 + $0x1d0] sm:$0xff]
    %v1114 = vld [vmem:[%s4 + $0x1d8] sm:$0xff]
    %v1115 = vld [vmem:[%s4 + $0x1e0] sm:$0xff]
    %v1116 = vld [vmem:[%s4 + $0x1e8] sm:$0xff]
    %v1117 = vld [vmem:[%s4 + $0x1f0] sm:$0xff]
    %v1118 = vld [vmem:[%s4 + $0x1f8] sm:$0xff]
    %v1120 = vlaneseq
    %v1121 = vshrl.u32 %v1120, 7
    %v1122 = vsub.s32 0, %v1121
    %v1123 = vrot.slane %v1051, %v1122
    %v1125 = vmul.f32 %v1055, %v1123
    %v1126 = vmul.f32 %v1056, %v1123
    %v1127 = vmul.f32 %v1057, %v1123
    %v1128 = vmul.f32 %v1058, %v1123
    %v1129 = vmul.f32 %v1059, %v1123
    %v1130 = vmul.f32 %v1060, %v1123
    %v1131 = vmul.f32 %v1061, %v1123
    %v1132 = vmul.f32 %v1062, %v1123
    %v1133 = vmul.f32 %v1063, %v1123
    %v1134 = vmul.f32 %v1064, %v1123
    %v1135 = vmul.f32 %v1065, %v1123
    %v1136 = vmul.f32 %v1066, %v1123
    %v1137 = vmul.f32 %v1067, %v1123
    %v1138 = vmul.f32 %v1068, %v1123
    %v1139 = vmul.f32 %v1069, %v1123
    %v1140 = vmul.f32 %v1070, %v1123
    %v1141 = vmul.f32 %v1071, %v1123
    %v1142 = vmul.f32 %v1072, %v1123
    %v1143 = vmul.f32 %v1073, %v1123
    %v1144 = vmul.f32 %v1074, %v1123
    %v1145 = vmul.f32 %v1075, %v1123
    %v1146 = vmul.f32 %v1076, %v1123
    %v1147 = vmul.f32 %v1077, %v1123
    %v1148 = vmul.f32 %v1078, %v1123
    %v1149 = vmul.f32 %v1079, %v1123
    %v1150 = vmul.f32 %v1080, %v1123
    %v1151 = vmul.f32 %v1081, %v1123
    %v1152 = vmul.f32 %v1082, %v1123
    %v1153 = vmul.f32 %v1083, %v1123
    %v1154 = vmul.f32 %v1084, %v1123
    %v1155 = vmul.f32 %v1085, %v1123
    %v1156 = vmul.f32 %v1086, %v1123
    %v1157 = vmul.f32 %v1087, %v1123
    %v1158 = vmul.f32 %v1088, %v1123
    %v1159 = vmul.f32 %v1089, %v1123
    %v1160 = vmul.f32 %v1090, %v1123
    %v1161 = vmul.f32 %v1091, %v1123
    %v1162 = vmul.f32 %v1092, %v1123
    %v1163 = vmul.f32 %v1093, %v1123
    %v1164 = vmul.f32 %v1094, %v1123
    %v1165 = vmul.f32 %v1095, %v1123
    %v1166 = vmul.f32 %v1096, %v1123
    %v1167 = vmul.f32 %v1097, %v1123
    %v1168 = vmul.f32 %v1098, %v1123
    %v1169 = vmul.f32 %v1099, %v1123
    %v1170 = vmul.f32 %v1100, %v1123
    %v1171 = vmul.f32 %v1101, %v1123
    %v1172 = vmul.f32 %v1102, %v1123
    %v1173 = vmul.f32 %v1103, %v1123
    %v1174 = vmul.f32 %v1104, %v1123
    %v1175 = vmul.f32 %v1105, %v1123
    %v1176 = vmul.f32 %v1106, %v1123
    %v1177 = vmul.f32 %v1107, %v1123
    %v1178 = vmul.f32 %v1108, %v1123
    %v1179 = vmul.f32 %v1109, %v1123
    %v1180 = vmul.f32 %v1110, %v1123
    %v1181 = vmul.f32 %v1111, %v1123
    %v1182 = vmul.f32 %v1112, %v1123
    %v1183 = vmul.f32 %v1113, %v1123
    %v1184 = vmul.f32 %v1114, %v1123
    %v1185 = vmul.f32 %v1115, %v1123
    %v1186 = vmul.f32 %v1116, %v1123
    %v1187 = vmul.f32 %v1117, %v1123
    %v1188 = vmul.f32 %v1118, %v1123
    %v1190 = vlaneseq
    %v1191 = vshrl.u32 %v1190, 7
    %v1192 = vsub.s32 0, %v1191
    %v1193 = vrot.slane %v1054, %v1192
    %v1195 = vadd.f32 %v1125, %v1193
    %v1196 = vadd.f32 %v1126, %v1193
    %v1197 = vadd.f32 %v1127, %v1193
    %v1198 = vadd.f32 %v1128, %v1193
    %v1199 = vadd.f32 %v1129, %v1193
    %v1200 = vadd.f32 %v1130, %v1193
    %v1201 = vadd.f32 %v1131, %v1193
    %v1202 = vadd.f32 %v1132, %v1193
    %v1203 = vadd.f32 %v1133, %v1193
    %v1204 = vadd.f32 %v1134, %v1193
    %v1205 = vadd.f32 %v1135, %v1193
    %v1206 = vadd.f32 %v1136, %v1193
    %v1207 = vadd.f32 %v1137, %v1193
    %v1208 = vadd.f32 %v1138, %v1193
    %v1209 = vadd.f32 %v1139, %v1193
    %v1210 = vadd.f32 %v1140, %v1193
    %v1211 = vadd.f32 %v1141, %v1193
    %v1212 = vadd.f32 %v1142, %v1193
    %v1213 = vadd.f32 %v1143, %v1193
    %v1214 = vadd.f32 %v1144, %v1193
    %v1215 = vadd.f32 %v1145, %v1193
    %v1216 = vadd.f32 %v1146, %v1193
    %v1217 = vadd.f32 %v1147, %v1193
    %v1218 = vadd.f32 %v1148, %v1193
    %v1219 = vadd.f32 %v1149, %v1193
    %v1220 = vadd.f32 %v1150, %v1193
    %v1221 = vadd.f32 %v1151, %v1193
    %v1222 = vadd.f32 %v1152, %v1193
    %v1223 = vadd.f32 %v1153, %v1193
    %v1224 = vadd.f32 %v1154, %v1193
    %v1225 = vadd.f32 %v1155, %v1193
    %v1226 = vadd.f32 %v1156, %v1193
    %v1227 = vadd.f32 %v1157, %v1193
    %v1228 = vadd.f32 %v1158, %v1193
    %v1229 = vadd.f32 %v1159, %v1193
    %v1230 = vadd.f32 %v1160, %v1193
    %v1231 = vadd.f32 %v1161, %v1193
    %v1232 = vadd.f32 %v1162, %v1193
    %v1233 = vadd.f32 %v1163, %v1193
    %v1234 = vadd.f32 %v1164, %v1193
    %v1235 = vadd.f32 %v1165, %v1193
    %v1236 = vadd.f32 %v1166, %v1193
    %v1237 = vadd.f32 %v1167, %v1193
    %v1238 = vadd.f32 %v1168, %v1193
    %v1239 = vadd.f32 %v1169, %v1193
    %v1240 = vadd.f32 %v1170, %v1193
    %v1241 = vadd.f32 %v1171, %v1193
    %v1242 = vadd.f32 %v1172, %v1193
    %v1243 = vadd.f32 %v1173, %v1193
    %v1244 = vadd.f32 %v1174, %v1193
    %v1245 = vadd.f32 %v1175, %v1193
    %v1246 = vadd.f32 %v1176, %v1193
    %v1247 = vadd.f32 %v1177, %v1193
    %v1248 = vadd.f32 %v1178, %v1193
    %v1249 = vadd.f32 %v1179, %v1193
    %v1250 = vadd.f32 %v1180, %v1193
    %v1251 = vadd.f32 %v1181, %v1193
    %v1252 = vadd.f32 %v1182, %v1193
    %v1253 = vadd.f32 %v1183, %v1193
    %v1254 = vadd.f32 %v1184, %v1193
    %v1255 = vadd.f32 %v1185, %v1193
    %v1256 = vadd.f32 %v1186, %v1193
    %v1257 = vadd.f32 %v1187, %v1193
    %v1258 = vadd.f32 %v1188, %v1193
    %vm1259 = vcmp.gt.f32.partialorder %v1195, 0.0
    %vm1260 = vcmp.gt.f32.partialorder %v1196, 0.0
    %vm1261 = vcmp.gt.f32.partialorder %v1197, 0.0
    %vm1262 = vcmp.gt.f32.partialorder %v1198, 0.0
    %vm1263 = vcmp.gt.f32.partialorder %v1199, 0.0
    %vm1264 = vcmp.gt.f32.partialorder %v1200, 0.0
    %vm1265 = vcmp.gt.f32.partialorder %v1201, 0.0
    %vm1266 = vcmp.gt.f32.partialorder %v1202, 0.0
    %vm1267 = vcmp.gt.f32.partialorder %v1203, 0.0
    %vm1268 = vcmp.gt.f32.partialorder %v1204, 0.0
    %vm1269 = vcmp.gt.f32.partialorder %v1205, 0.0
    %vm1270 = vcmp.gt.f32.partialorder %v1206, 0.0
    %vm1271 = vcmp.gt.f32.partialorder %v1207, 0.0
    %vm1272 = vcmp.gt.f32.partialorder %v1208, 0.0
    %vm1273 = vcmp.gt.f32.partialorder %v1209, 0.0
    %vm1274 = vcmp.gt.f32.partialorder %v1210, 0.0
    %vm1275 = vcmp.gt.f32.partialorder %v1211, 0.0
    %vm1276 = vcmp.gt.f32.partialorder %v1212, 0.0
    %vm1277 = vcmp.gt.f32.partialorder %v1213, 0.0
    %vm1278 = vcmp.gt.f32.partialorder %v1214, 0.0
    %vm1279 = vcmp.gt.f32.partialorder %v1215, 0.0
    %vm1280 = vcmp.gt.f32.partialorder %v1216, 0.0
    %vm1281 = vcmp.gt.f32.partialorder %v1217, 0.0
    %vm1282 = vcmp.gt.f32.partialorder %v1218, 0.0
    %vm1283 = vcmp.gt.f32.partialorder %v1219, 0.0
    %vm1284 = vcmp.gt.f32.partialorder %v1220, 0.0
    %vm1285 = vcmp.gt.f32.partialorder %v1221, 0.0
    %vm1286 = vcmp.gt.f32.partialorder %v1222, 0.0
    %vm1287 = vcmp.gt.f32.partialorder %v1223, 0.0
    %vm1288 = vcmp.gt.f32.partialorder %v1224, 0.0
    %vm1289 = vcmp.gt.f32.partialorder %v1225, 0.0
    %vm1290 = vcmp.gt.f32.partialorder %v1226, 0.0
    %vm1291 = vcmp.gt.f32.partialorder %v1227, 0.0
    %vm1292 = vcmp.gt.f32.partialorder %v1228, 0.0
    %vm1293 = vcmp.gt.f32.partialorder %v1229, 0.0
    %vm1294 = vcmp.gt.f32.partialorder %v1230, 0.0
    %vm1295 = vcmp.gt.f32.partialorder %v1231, 0.0
    %vm1296 = vcmp.gt.f32.partialorder %v1232, 0.0
    %vm1297 = vcmp.gt.f32.partialorder %v1233, 0.0
    %vm1298 = vcmp.gt.f32.partialorder %v1234, 0.0
    %vm1299 = vcmp.gt.f32.partialorder %v1235, 0.0
    %vm1300 = vcmp.gt.f32.partialorder %v1236, 0.0
    %vm1301 = vcmp.gt.f32.partialorder %v1237, 0.0
    %vm1302 = vcmp.gt.f32.partialorder %v1238, 0.0
    %vm1303 = vcmp.gt.f32.partialorder %v1239, 0.0
    %vm1304 = vcmp.gt.f32.partialorder %v1240, 0.0
    %vm1305 = vcmp.gt.f32.partialorder %v1241, 0.0
    %vm1306 = vcmp.gt.f32.partialorder %v1242, 0.0
    %vm1307 = vcmp.gt.f32.partialorder %v1243, 0.0
    %vm1308 = vcmp.gt.f32.partialorder %v1244, 0.0
    %vm1309 = vcmp.gt.f32.partialorder %v1245, 0.0
    %vm1310 = vcmp.gt.f32.partialorder %v1246, 0.0
    %vm1311 = vcmp.gt.f32.partialorder %v1247, 0.0
    %vm1312 = vcmp.gt.f32.partialorder %v1248, 0.0
    %vm1313 = vcmp.gt.f32.partialorder %v1249, 0.0
    %vm1314 = vcmp.gt.f32.partialorder %v1250, 0.0
    %vm1315 = vcmp.gt.f32.partialorder %v1251, 0.0
    %vm1316 = vcmp.gt.f32.partialorder %v1252, 0.0
    %vm1317 = vcmp.gt.f32.partialorder %v1253, 0.0
    %vm1318 = vcmp.gt.f32.partialorder %v1254, 0.0
    %vm1319 = vcmp.gt.f32.partialorder %v1255, 0.0
    %vm1320 = vcmp.gt.f32.partialorder %v1256, 0.0
    %vm1321 = vcmp.gt.f32.partialorder %v1257, 0.0
    %vm1322 = vcmp.gt.f32.partialorder %v1258, 0.0
    %v1323 = vmul.f32 %v1195, 0.2
    %v1324 = vmul.f32 %v1196, 0.2
    %v1325 = vmul.f32 %v1197, 0.2
    %v1326 = vmul.f32 %v1198, 0.2
    %v1327 = vmul.f32 %v1199, 0.2
    %v1328 = vmul.f32 %v1200, 0.2
    %v1329 = vmul.f32 %v1201, 0.2
    %v1330 = vmul.f32 %v1202, 0.2
    %v1331 = vmul.f32 %v1203, 0.2
    %v1332 = vmul.f32 %v1204, 0.2
    %v1333 = vmul.f32 %v1205, 0.2
    %v1334 = vmul.f32 %v1206, 0.2
    %v1335 = vmul.f32 %v1207, 0.2
    %v1336 = vmul.f32 %v1208, 0.2
    %v1337 = vmul.f32 %v1209, 0.2
    %v1338 = vmul.f32 %v1210, 0.2
    %v1339 = vmul.f32 %v1211, 0.2
    %v1340 = vmul.f32 %v1212, 0.2
    %v1341 = vmul.f32 %v1213, 0.2
    %v1342 = vmul.f32 %v1214, 0.2
    %v1343 = vmul.f32 %v1215, 0.2
    %v1344 = vmul.f32 %v1216, 0.2
    %v1345 = vmul.f32 %v1217, 0.2
    %v1346 = vmul.f32 %v1218, 0.2
    %v1347 = vmul.f32 %v1219, 0.2
    %v1348 = vmul.f32 %v1220, 0.2
    %v1349 = vmul.f32 %v1221, 0.2
    %v1350 = vmul.f32 %v1222, 0.2
    %v1351 = vmul.f32 %v1223, 0.2
    %v1352 = vmul.f32 %v1224, 0.2
    %v1353 = vmul.f32 %v1225, 0.2
    %v1354 = vmul.f32 %v1226, 0.2
    %v1355 = vmul.f32 %v1227, 0.2
    %v1356 = vmul.f32 %v1228, 0.2
    %v1357 = vmul.f32 %v1229, 0.2
    %v1358 = vmul.f32 %v1230, 0.2
    %v1359 = vmul.f32 %v1231, 0.2
    %v1360 = vmul.f32 %v1232, 0.2
    %v1361 = vmul.f32 %v1233, 0.2
    %v1362 = vmul.f32 %v1234, 0.2
    %v1363 = vmul.f32 %v1235, 0.2
    %v1364 = vmul.f32 %v1236, 0.2
    %v1365 = vmul.f32 %v1237, 0.2
    %v1366 = vmul.f32 %v1238, 0.2
    %v1367 = vmul.f32 %v1239, 0.2
    %v1368 = vmul.f32 %v1240, 0.2
    %v1369 = vmul.f32 %v1241, 0.2
    %v1370 = vmul.f32 %v1242, 0.2
    %v1371 = vmul.f32 %v1243, 0.2
    %v1372 = vmul.f32 %v1244, 0.2
    %v1373 = vmul.f32 %v1245, 0.2
    %v1374 = vmul.f32 %v1246, 0.2
    %v1375 = vmul.f32 %v1247, 0.2
    %v1376 = vmul.f32 %v1248, 0.2
    %v1377 = vmul.f32 %v1249, 0.2
    %v1378 = vmul.f32 %v1250, 0.2
    %v1379 = vmul.f32 %v1251, 0.2
    %v1380 = vmul.f32 %v1252, 0.2
    %v1381 = vmul.f32 %v1253, 0.2
    %v1382 = vmul.f32 %v1254, 0.2
    %v1383 = vmul.f32 %v1255, 0.2
    %v1384 = vmul.f32 %v1256, 0.2
    %v1385 = vmul.f32 %v1257, 0.2
    %v1386 = vmul.f32 %v1258, 0.2
    %v1387 = vsel %vm1259, %v1195, %v1323
    %v1388 = vsel %vm1260, %v1196, %v1324
    %v1389 = vsel %vm1261, %v1197, %v1325
    %v1390 = vsel %vm1262, %v1198, %v1326
    %v1391 = vsel %vm1263, %v1199, %v1327
    %v1392 = vsel %vm1264, %v1200, %v1328
    %v1393 = vsel %vm1265, %v1201, %v1329
    %v1394 = vsel %vm1266, %v1202, %v1330
    %v1395 = vsel %vm1267, %v1203, %v1331
    %v1396 = vsel %vm1268, %v1204, %v1332
    %v1397 = vsel %vm1269, %v1205, %v1333
    %v1398 = vsel %vm1270, %v1206, %v1334
    %v1399 = vsel %vm1271, %v1207, %v1335
    %v1400 = vsel %vm1272, %v1208, %v1336
    %v1401 = vsel %vm1273, %v1209, %v1337
    %v1402 = vsel %vm1274, %v1210, %v1338
    %v1403 = vsel %vm1275, %v1211, %v1339
    %v1404 = vsel %vm1276, %v1212, %v1340
    %v1405 = vsel %vm1277, %v1213, %v1341
    %v1406 = vsel %vm1278, %v1214, %v1342
    %v1407 = vsel %vm1279, %v1215, %v1343
    %v1408 = vsel %vm1280, %v1216, %v1344
    %v1409 = vsel %vm1281, %v1217, %v1345
    %v1410 = vsel %vm1282, %v1218, %v1346
    %v1411 = vsel %vm1283, %v1219, %v1347
    %v1412 = vsel %vm1284, %v1220, %v1348
    %v1413 = vsel %vm1285, %v1221, %v1349
    %v1414 = vsel %vm1286, %v1222, %v1350
    %v1415 = vsel %vm1287, %v1223, %v1351
    %v1416 = vsel %vm1288, %v1224, %v1352
    %v1417 = vsel %vm1289, %v1225, %v1353
    %v1418 = vsel %vm1290, %v1226, %v1354
    %v1419 = vsel %vm1291, %v1227, %v1355
    %v1420 = vsel %vm1292, %v1228, %v1356
    %v1421 = vsel %vm1293, %v1229, %v1357
    %v1422 = vsel %vm1294, %v1230, %v1358
    %v1423 = vsel %vm1295, %v1231, %v1359
    %v1424 = vsel %vm1296, %v1232, %v1360
    %v1425 = vsel %vm1297, %v1233, %v1361
    %v1426 = vsel %vm1298, %v1234, %v1362
    %v1427 = vsel %vm1299, %v1235, %v1363
    %v1428 = vsel %vm1300, %v1236, %v1364
    %v1429 = vsel %vm1301, %v1237, %v1365
    %v1430 = vsel %vm1302, %v1238, %v1366
    %v1431 = vsel %vm1303, %v1239, %v1367
    %v1432 = vsel %vm1304, %v1240, %v1368
    %v1433 = vsel %vm1305, %v1241, %v1369
    %v1434 = vsel %vm1306, %v1242, %v1370
    %v1435 = vsel %vm1307, %v1243, %v1371
    %v1436 = vsel %vm1308, %v1244, %v1372
    %v1437 = vsel %vm1309, %v1245, %v1373
    %v1438 = vsel %vm1310, %v1246, %v1374
    %v1439 = vsel %vm1311, %v1247, %v1375
    %v1440 = vsel %vm1312, %v1248, %v1376
    %v1441 = vsel %vm1313, %v1249, %v1377
    %v1442 = vsel %vm1314, %v1250, %v1378
    %v1443 = vsel %vm1315, %v1251, %v1379
    %v1444 = vsel %vm1316, %v1252, %v1380
    %v1445 = vsel %vm1317, %v1253, %v1381
    %v1446 = vsel %vm1318, %v1254, %v1382
    %v1447 = vsel %vm1319, %v1255, %v1383
    %v1448 = vsel %vm1320, %v1256, %v1384
    %v1449 = vsel %vm1321, %v1257, %v1385
    %v1450 = vsel %vm1322, %v1258, %v1386
    %1451 = vst.msk [vmem:[%s4] sm:$0xff] %vm636, %v1387
    %1452 = vst.msk [vmem:[%s4 + $0x8] sm:$0xff] %vm636, %v1388
    %1453 = vst.msk [vmem:[%s4 + $0x10] sm:$0xff] %vm636, %v1389
    %1454 = vst.msk [vmem:[%s4 + $0x18] sm:$0xff] %vm636, %v1390
    %1455 = vst.msk [vmem:[%s4 + $0x20] sm:$0xff] %vm636, %v1391
    %1456 = vst.msk [vmem:[%s4 + $0x28] sm:$0xff] %vm636, %v1392
    %1457 = vst.msk [vmem:[%s4 + $0x30] sm:$0xff] %vm636, %v1393
    %1458 = vst.msk [vmem:[%s4 + $0x38] sm:$0xff] %vm636, %v1394
    %1459 = vst.msk [vmem:[%s4 + $0x40] sm:$0xff] %vm636, %v1395
    %1460 = vst.msk [vmem:[%s4 + $0x48] sm:$0xff] %vm636, %v1396
    %1461 = vst.msk [vmem:[%s4 + $0x50] sm:$0xff] %vm636, %v1397
    %1462 = vst.msk [vmem:[%s4 + $0x58] sm:$0xff] %vm636, %v1398
    %1463 = vst.msk [vmem:[%s4 + $0x60] sm:$0xff] %vm636, %v1399
    %1464 = vst.msk [vmem:[%s4 + $0x68] sm:$0xff] %vm636, %v1400
    %1465 = vst.msk [vmem:[%s4 + $0x70] sm:$0xff] %vm636, %v1401
    %1466 = vst.msk [vmem:[%s4 + $0x78] sm:$0xff] %vm636, %v1402
    %1467 = vst.msk [vmem:[%s4 + $0x80] sm:$0xff] %vm636, %v1403
    %1468 = vst.msk [vmem:[%s4 + $0x88] sm:$0xff] %vm636, %v1404
    %1469 = vst.msk [vmem:[%s4 + $0x90] sm:$0xff] %vm636, %v1405
    %1470 = vst.msk [vmem:[%s4 + $0x98] sm:$0xff] %vm636, %v1406
    %1471 = vst.msk [vmem:[%s4 + $0xa0] sm:$0xff] %vm636, %v1407
    %1472 = vst.msk [vmem:[%s4 + $0xa8] sm:$0xff] %vm636, %v1408
    %1473 = vst.msk [vmem:[%s4 + $0xb0] sm:$0xff] %vm636, %v1409
    %1474 = vst.msk [vmem:[%s4 + $0xb8] sm:$0xff] %vm636, %v1410
    %1475 = vst.msk [vmem:[%s4 + $0xc0] sm:$0xff] %vm636, %v1411
    %1476 = vst.msk [vmem:[%s4 + $0xc8] sm:$0xff] %vm636, %v1412
    %1477 = vst.msk [vmem:[%s4 + $0xd0] sm:$0xff] %vm636, %v1413
    %1478 = vst.msk [vmem:[%s4 + $0xd8] sm:$0xff] %vm636, %v1414
    %1479 = vst.msk [vmem:[%s4 + $0xe0] sm:$0xff] %vm636, %v1415
    %1480 = vst.msk [vmem:[%s4 + $0xe8] sm:$0xff] %vm636, %v1416
    %1481 = vst.msk [vmem:[%s4 + $0xf0] sm:$0xff] %vm636, %v1417
    %1482 = vst.msk [vmem:[%s4 + $0xf8] sm:$0xff] %vm636, %v1418
    %1483 = vst.msk [vmem:[%s4 + $0x100] sm:$0xff] %vm636, %v1419
    %1484 = vst.msk [vmem:[%s4 + $0x108] sm:$0xff] %vm636, %v1420
    %1485 = vst.msk [vmem:[%s4 + $0x110] sm:$0xff] %vm636, %v1421
    %1486 = vst.msk [vmem:[%s4 + $0x118] sm:$0xff] %vm636, %v1422
    %1487 = vst.msk [vmem:[%s4 + $0x120] sm:$0xff] %vm636, %v1423
    %1488 = vst.msk [vmem:[%s4 + $0x128] sm:$0xff] %vm636, %v1424
    %1489 = vst.msk [vmem:[%s4 + $0x130] sm:$0xff] %vm636, %v1425
    %1490 = vst.msk [vmem:[%s4 + $0x138] sm:$0xff] %vm636, %v1426
    %1491 = vst.msk [vmem:[%s4 + $0x140] sm:$0xff] %vm636, %v1427
    %1492 = vst.msk [vmem:[%s4 + $0x148] sm:$0xff] %vm636, %v1428
    %1493 = vst.msk [vmem:[%s4 + $0x150] sm:$0xff] %vm636, %v1429
    %1494 = vst.msk [vmem:[%s4 + $0x158] sm:$0xff] %vm636, %v1430
    %1495 = vst.msk [vmem:[%s4 + $0x160] sm:$0xff] %vm636, %v1431
    %1496 = vst.msk [vmem:[%s4 + $0x168] sm:$0xff] %vm636, %v1432
    %1497 = vst.msk [vmem:[%s4 + $0x170] sm:$0xff] %vm636, %v1433
    %1498 = vst.msk [vmem:[%s4 + $0x178] sm:$0xff] %vm636, %v1434
    %1499 = vst.msk [vmem:[%s4 + $0x180] sm:$0xff] %vm636, %v1435
    %1500 = vst.msk [vmem:[%s4 + $0x188] sm:$0xff] %vm636, %v1436
    %1501 = vst.msk [vmem:[%s4 + $0x190] sm:$0xff] %vm636, %v1437
    %1502 = vst.msk [vmem:[%s4 + $0x198] sm:$0xff] %vm636, %v1438
    %1503 = vst.msk [vmem:[%s4 + $0x1a0] sm:$0xff] %vm636, %v1439
    %1504 = vst.msk [vmem:[%s4 + $0x1a8] sm:$0xff] %vm636, %v1440
    %1505 = vst.msk [vmem:[%s4 + $0x1b0] sm:$0xff] %vm636, %v1441
    %1506 = vst.msk [vmem:[%s4 + $0x1b8] sm:$0xff] %vm636, %v1442
    %1507 = vst.msk [vmem:[%s4 + $0x1c0] sm:$0xff] %vm636, %v1443
    %1508 = vst.msk [vmem:[%s4 + $0x1c8] sm:$0xff] %vm636, %v1444
    %1509 = vst.msk [vmem:[%s4 + $0x1d0] sm:$0xff] %vm636, %v1445
    %1510 = vst.msk [vmem:[%s4 + $0x1d8] sm:$0xff] %vm636, %v1446
    %1511 = vst.msk [vmem:[%s4 + $0x1e0] sm:$0xff] %vm636, %v1447
    %1512 = vst.msk [vmem:[%s4 + $0x1e8] sm:$0xff] %vm636, %v1448
    %1513 = vst.msk [vmem:[%s4 + $0x1f0] sm:$0xff] %vm636, %v1449
    %1514 = vst.msk [vmem:[%s4 + $0x1f8] sm:$0xff] %vm636, %v1450
  $region25: #{discriminator_forward.6} parent=0 // pred_fallthru
    _
  // Predicated region
  $region26: #{discriminator_forward.6} parent=0 // pred_check
    _
  $region27: #{discriminator_forward.6} parent=0 // pred_check_branch
    %1516 = sbr.rel (0) target = $region29
  $region28: #{discriminator_forward.6} parent=0 // pred_region
    _
  $region29: #{discriminator_forward.6} parent=0 // pred_fallthru
    _
  // Predicated region
  $region30: #{discriminator_forward.6} parent=0 // pred_check
    _
  $region31: #{discriminator_forward.6} parent=0 // pred_check_branch
    %1518 = sbr.rel (0) target = $region33
  $region32: #{discriminator_forward.6} parent=0 // pred_region
    _
  $region33: #{discriminator_forward.6} parent=0 // pred_fallthru
    _

// kernel: discriminator_forward.7
$region0: #{discriminator_forward.7}
  #allocation0 [shape = 'u32[]', space=smem, size = 0x4, offset = 0x4, fixed_abs, tag = 'smem constant byte address 0x4 - core index']
  #allocation1 [shape = 'u32[144,128]{1,0:T(1,128)}', space=vmem, size = 0x12000, scoped, tag = 'internal scratch']
  #allocation2 [shape = 'f32[1,32]{1,0:T(1,128)}', space=vmem, size = 0x200, scoped, tag = 'scratch operand']
  #allocation3 [shape = 'f32[1,32]{1,0:T(1,128)}', space=vmem, size = 0x200, scoped, tag = 'scratch operand']
  %s0 = inlined_call_operand.vmem [shape: bf16[128,256], index: 0, kind: input, shape index: {}]
  %s1 = inlined_call_operand.vmem [shape: bf16[256,32], index: 1, kind: input, shape index: {}]
  %s2 = inlined_call_operand.vmem [shape: f32[1,32], index: 2, kind: input, shape index: {}]
  %s3 = inlined_call_operand.vmem [shape: f32[1,32], index: 3, kind: input, shape index: {}]
  %s4 = inlined_call_operand.vmem [shape: f32[128,32], index: 4, kind: output, shape index: {}]
  %s5 = sld [smem:[#allocation0]]
  $region34: #{discriminator_forward.7} parent=0
    _
  %s7 = ssub.s32 1, %s5
  %s8 = scalar_select 0, %s7, %s5
  // Predicated region
  $region2: #{discriminator_forward.7} parent=0 // pred_check
    _
  $region3: #{discriminator_forward.7} parent=0 // pred_check_branch
    %10 = sbr.rel (0) target = $region5
  $region4: #{discriminator_forward.7} parent=0 // pred_region
    _
  $region5: #{discriminator_forward.7} parent=0 // pred_fallthru
    _
  // Predicated region
  $region6: #{discriminator_forward.7} parent=0 // pred_check
    _
  $region7: #{discriminator_forward.7} parent=0 // pred_check_branch
    %12 = sbr.rel (0) target = $region9
  $region8: #{discriminator_forward.7} parent=0 // pred_region
    _
  $region9: #{discriminator_forward.7} parent=0 // pred_fallthru
    _
  // Predicated region
  $region10: #{discriminator_forward.7} parent=0 // pred_check
    _
  $region11: #{discriminator_forward.7} parent=0 // pred_check_branch
    %14 = sbr.rel (0) target = $region13
  $region12: #{discriminator_forward.7} parent=0 // pred_region
    _
  $region13: #{discriminator_forward.7} parent=0 // pred_fallthru
    _
  // Predicated region
  $region14: #{discriminator_forward.7} parent=0 // pred_check
    _
  $region15: #{discriminator_forward.7} parent=0 // pred_check_branch
    %16 = sbr.rel (0) target = $region17
  $region16: #{discriminator_forward.7} parent=0 // pred_region
    _
  $region17: #{discriminator_forward.7} parent=0 // pred_fallthru
    _
  %p18 = scmp.eq.s32.totalorder 0, 0
  // Predicated region
  $region18: #{discriminator_forward.7} parent=0 // pred_check
    %p19 = pneg %p18
  $region19: #{discriminator_forward.7} parent=0 // pred_check_branch
    %21 = sbr.rel (%p19) target = $region21
  $region20: #{discriminator_forward.7} parent=0 // pred_region
    %vm22 = vcmask 253952
    %23 = vst.msk [vmem:[#allocation2] sm:$0x1] %vm22, 0.0
    %24 = vst.msk [vmem:[#allocation3] sm:$0x1] %vm22, 0.0
  $region21: #{discriminator_forward.7} parent=0 // pred_fallthru
    _
  %v25 = vld [vmem:[%s0] sm:$0xff]
  %v26 = vld [vmem:[%s0 + $0x8] sm:$0xff]
  %v27 = vld [vmem:[%s0 + $0x10] sm:$0xff]
  %v28 = vld [vmem:[%s0 + $0x18] sm:$0xff]
  %v29 = vld [vmem:[%s0 + $0x20] sm:$0xff]
  %v30 = vld [vmem:[%s0 + $0x28] sm:$0xff]
  %v31 = vld [vmem:[%s0 + $0x30] sm:$0xff]
  %v32 = vld [vmem:[%s0 + $0x38] sm:$0xff]
  %v33 = vld [vmem:[%s0 + $0x40] sm:$0xff]
  %v34 = vld [vmem:[%s0 + $0x48] sm:$0xff]
  %v35 = vld [vmem:[%s0 + $0x50] sm:$0xff]
  %v36 = vld [vmem:[%s0 + $0x58] sm:$0xff]
  %v37 = vld [vmem:[%s0 + $0x60] sm:$0xff]
  %v38 = vld [vmem:[%s0 + $0x68] sm:$0xff]
  %v39 = vld [vmem:[%s0 + $0x70] sm:$0xff]
  %v40 = vld [vmem:[%s0 + $0x78] sm:$0xff]
  %v41 = vld [vmem:[%s1] sm:$0xf]
  %v42 = vld [vmem:[%s1 + $0x4] sm:$0xf]
  %v43 = vld [vmem:[%s1 + $0x8] sm:$0xf]
  %v44 = vld [vmem:[%s1 + $0xc] sm:$0xf]
  %v45 = vld [vmem:[%s1 + $0x10] sm:$0xf]
  %v46 = vld [vmem:[%s1 + $0x14] sm:$0xf]
  %v47 = vld [vmem:[%s1 + $0x18] sm:$0xf]
  %v48 = vld [vmem:[%s1 + $0x1c] sm:$0xf]
  %v49 = vld [vmem:[%s1 + $0x20] sm:$0xf]
  %v50 = vld [vmem:[%s1 + $0x24] sm:$0xf]
  %v51 = vld [vmem:[%s1 + $0x28] sm:$0xf]
  %v52 = vld [vmem:[%s1 + $0x2c] sm:$0xf]
  %v53 = vld [vmem:[%s1 + $0x30] sm:$0xf]
  %v54 = vld [vmem:[%s1 + $0x34] sm:$0xf]
  %v55 = vld [vmem:[%s1 + $0x38] sm:$0xf]
  %v56 = vld [vmem:[%s1 + $0x3c] sm:$0xf]
  %v57 = vld [vmem:[%s1 + $0x40] sm:$0xf]
  %v58 = vld [vmem:[%s1 + $0x44] sm:$0xf]
  %v59 = vld [vmem:[%s1 + $0x48] sm:$0xf]
  %v60 = vld [vmem:[%s1 + $0x4c] sm:$0xf]
  %v61 = vld [vmem:[%s1 + $0x50] sm:$0xf]
  %v62 = vld [vmem:[%s1 + $0x54] sm:$0xf]
  %v63 = vld [vmem:[%s1 + $0x58] sm:$0xf]
  %v64 = vld [vmem:[%s1 + $0x5c] sm:$0xf]
  %v65 = vld [vmem:[%s1 + $0x60] sm:$0xf]
  %v66 = vld [vmem:[%s1 + $0x64] sm:$0xf]
  %v67 = vld [vmem:[%s1 + $0x68] sm:$0xf]
  %v68 = vld [vmem:[%s1 + $0x6c] sm:$0xf]
  %v69 = vld [vmem:[%s1 + $0x70] sm:$0xf]
  %v70 = vld [vmem:[%s1 + $0x74] sm:$0xf]
  %v71 = vld [vmem:[%s1 + $0x78] sm:$0xf]
  %v72 = vld [vmem:[%s1 + $0x7c] sm:$0xf]
  %v89 = vunpack.c.l.b16 %v25
  %v90 = vunpack.c.h.b16 %v25
  %v91 = vunpack.c.l.b16 %v26
  %v92 = vunpack.c.h.b16 %v26
  %v93 = vunpack.c.l.b16 %v27
  %v94 = vunpack.c.h.b16 %v27
  %v95 = vunpack.c.l.b16 %v28
  %v96 = vunpack.c.h.b16 %v28
  %v97 = vunpack.c.l.b16 %v29
  %v98 = vunpack.c.h.b16 %v29
  %v99 = vunpack.c.l.b16 %v30
  %v100 = vunpack.c.h.b16 %v30
  %v101 = vunpack.c.l.b16 %v31
  %v102 = vunpack.c.h.b16 %v31
  %v103 = vunpack.c.l.b16 %v32
  %v104 = vunpack.c.h.b16 %v32
  %v105 = vunpack.c.l.b16 %v33
  %v106 = vunpack.c.h.b16 %v33
  %v107 = vunpack.c.l.b16 %v34
  %v108 = vunpack.c.h.b16 %v34
  %v109 = vunpack.c.l.b16 %v35
  %v110 = vunpack.c.h.b16 %v35
  %v111 = vunpack.c.l.b16 %v36
  %v112 = vunpack.c.h.b16 %v36
  %v113 = vunpack.c.l.b16 %v37
  %v114 = vunpack.c.h.b16 %v37
  %v115 = vunpack.c.l.b16 %v38
  %v116 = vunpack.c.h.b16 %v38
  %v117 = vunpack.c.l.b16 %v39
  %v118 = vunpack.c.h.b16 %v39
  %v119 = vunpack.c.l.b16 %v40
  %v120 = vunpack.c.h.b16 %v40
  %v121 = vpack.c.b16 %v91, %v89
  %v122 = vpack.c.b16 %v92, %v90
  %v123 = vpack.c.b16 %v95, %v93
  %v124 = vpack.c.b16 %v96, %v94
  %v125 = vpack.c.b16 %v99, %v97
  %v126 = vpack.c.b16 %v100, %v98
  %v127 = vpack.c.b16 %v103, %v101
  %v128 = vpack.c.b16 %v104, %v102
  %v129 = vpack.c.b16 %v107, %v105
  %v130 = vpack.c.b16 %v108, %v106
  %v131 = vpack.c.b16 %v111, %v109
  %v132 = vpack.c.b16 %v112, %v110
  %v133 = vpack.c.b16 %v115, %v113
  %v134 = vpack.c.b16 %v116, %v114
  %v135 = vpack.c.b16 %v119, %v117
  %v136 = vpack.c.b16 %v120, %v118
  %v185 = vunpack.c.l.b16 %v41
  %v186 = vunpack.c.l.b16 %v42
  %v187 = vunpack.c.l.b16 %v43
  %v188 = vunpack.c.l.b16 %v44
  %v189 = vunpack.c.l.b16 %v45
  %v190 = vunpack.c.l.b16 %v46
  %v191 = vunpack.c.l.b16 %v47
  %v192 = vunpack.c.l.b16 %v48
  %v193 = vunpack.c.l.b16 %v49
  %v194 = vunpack.c.l.b16 %v50
  %v195 = vunpack.c.l.b16 %v51
  %v196 = vunpack.c.l.b16 %v52
  %v197 = vunpack.c.l.b16 %v53
  %v198 = vunpack.c.l.b16 %v54
  %v199 = vunpack.c.l.b16 %v55
  %v200 = vunpack.c.l.b16 %v56
  %v201 = vunpack.c.l.b16 %v57
  %v202 = vunpack.c.l.b16 %v58
  %v203 = vunpack.c.l.b16 %v59
  %v204 = vunpack.c.l.b16 %v60
  %v205 = vunpack.c.l.b16 %v61
  %v206 = vunpack.c.l.b16 %v62
  %v207 = vunpack.c.l.b16 %v63
  %v208 = vunpack.c.l.b16 %v64
  %v209 = vunpack.c.l.b16 %v65
  %v210 = vunpack.c.l.b16 %v66
  %v211 = vunpack.c.l.b16 %v67
  %v212 = vunpack.c.l.b16 %v68
  %v213 = vunpack.c.l.b16 %v69
  %v214 = vunpack.c.l.b16 %v70
  %v215 = vunpack.c.l.b16 %v71
  %v216 = vunpack.c.l.b16 %v72
  %v217 = vpack.c.b16 %v186, %v185
  %v218 = vpack.c.b16 %v188, %v187
  %v219 = vpack.c.b16 %v190, %v189
  %v220 = vpack.c.b16 %v192, %v191
  %v221 = vpack.c.b16 %v194, %v193
  %v222 = vpack.c.b16 %v196, %v195
  %v223 = vpack.c.b16 %v198, %v197
  %v224 = vpack.c.b16 %v200, %v199
  %v225 = vpack.c.b16 %v202, %v201
  %v226 = vpack.c.b16 %v204, %v203
  %v227 = vpack.c.b16 %v206, %v205
  %v228 = vpack.c.b16 %v208, %v207
  %v229 = vpack.c.b16 %v210, %v209
  %v230 = vpack.c.b16 %v212, %v211
  %v231 = vpack.c.b16 %v214, %v213
  %v232 = vpack.c.b16 %v216, %v215
  %249 = vmatprep.subr.bf16.mxu0 0
  %250 = vmatpush1.bf16.msra.mxu0 %v217
  %251 = vmatprep.subr.bf16.mxu0 0
  %252 = vmatpush1.bf16.msra.mxu0 %v218
  %253 = vmatprep.subr.bf16.mxu0 0
  %254 = vmatpush1.bf16.msra.mxu0 %v219
  %255 = vmatprep.subr.bf16.mxu0 0
  %256 = vmatpush1.bf16.msra.mxu0 %v220
  %257 = vmatprep.subr.bf16.mxu0 0
  %258 = vmatpush1.bf16.msra.mxu0 %v221
  %259 = vmatprep.subr.bf16.mxu0 0
  %260 = vmatpush1.bf16.msra.mxu0 %v222
  %261 = vmatprep.subr.bf16.mxu0 0
  %262 = vmatpush1.bf16.msra.mxu0 %v223
  %263 = vmatprep.subr.bf16.mxu0 0
  %264 = vmatpush1.bf16.msra.mxu0 %v224
  %265 = vmatprep.subr.bf16.mxu0 0
  %266 = vmatpush1.bf16.msra.mxu0 %v225
  %267 = vmatprep.subr.bf16.mxu0 0
  %268 = vmatpush1.bf16.msra.mxu0 %v226
  %269 = vmatprep.subr.bf16.mxu0 0
  %270 = vmatpush1.bf16.msra.mxu0 %v227
  %271 = vmatprep.subr.bf16.mxu0 0
  %272 = vmatpush1.bf16.msra.mxu0 %v228
  %273 = vmatprep.subr.bf16.mxu0 0
  %274 = vmatpush1.bf16.msra.mxu0 %v229
  %275 = vmatprep.subr.bf16.mxu0 0
  %276 = vmatpush1.bf16.msra.mxu0 %v230
  %277 = vmatprep.subr.bf16.mxu0 0
  %278 = vmatpush1.bf16.msra.mxu0 %v231
  %279 = vmatprep.subr.bf16.mxu0 0
  %280 = vmatpush1.bf16.msra.mxu0 %v232
  %281 = vmatprep.mubr.bf16.mxu0 %v122
  %282 = vmatmul.mubr.bf16.gmra.mrb[0].mxu0 %v121
  %v283 = vpop.f32.mrb[0].mxu0
  %v284 = vadd.f32 0.0, %v283
  %v285 = vpop.f32.mrb[0].mxu0
  %v286 = vpop.f32.mrb[0].mxu0
  %v287 = vadd.f32 0.0, %v286
  %v288 = vpop.f32.mrb[0].mxu0
  %289 = vmatprep.mubr.bf16.mxu0 %v124
  %290 = vmatmul.mubr.bf16.gmra.mrb[0].mxu0 %v123
  %v291 = vpop.f32.mrb[0].mxu0
  %v292 = vadd.f32 0.0, %v291
  %v293 = vpop.f32.mrb[0].mxu0
  %v294 = vpop.f32.mrb[0].mxu0
  %v295 = vadd.f32 0.0, %v294
  %v296 = vpop.f32.mrb[0].mxu0
  %297 = vmatprep.mubr.bf16.mxu0 %v126
  %298 = vmatmul.mubr.bf16.gmra.mrb[0].mxu0 %v125
  %v299 = vpop.f32.mrb[0].mxu0
  %v300 = vadd.f32 0.0, %v299
  %v301 = vpop.f32.mrb[0].mxu0
  %v302 = vpop.f32.mrb[0].mxu0
  %v303 = vadd.f32 0.0, %v302
  %v304 = vpop.f32.mrb[0].mxu0
  %305 = vmatprep.mubr.bf16.mxu0 %v128
  %306 = vmatmul.mubr.bf16.gmra.mrb[0].mxu0 %v127
  %v307 = vpop.f32.mrb[0].mxu0
  %v308 = vadd.f32 0.0, %v307
  %v309 = vpop.f32.mrb[0].mxu0
  %v310 = vpop.f32.mrb[0].mxu0
  %v311 = vadd.f32 0.0, %v310
  %v312 = vpop.f32.mrb[0].mxu0
  %313 = vmatprep.mubr.bf16.mxu0 %v130
  %314 = vmatmul.mubr.bf16.gmra.mrb[0].mxu0 %v129
  %v315 = vpop.f32.mrb[0].mxu0
  %v316 = vadd.f32 0.0, %v315
  %v317 = vpop.f32.mrb[0].mxu0
  %v318 = vpop.f32.mrb[0].mxu0
  %v319 = vadd.f32 0.0, %v318
  %v320 = vpop.f32.mrb[0].mxu0
  %321 = vmatprep.mubr.bf16.mxu0 %v132
  %322 = vmatmul.mubr.bf16.gmra.mrb[0].mxu0 %v131
  %v323 = vpop.f32.mrb[0].mxu0
  %v324 = vadd.f32 0.0, %v323
  %v325 = vpop.f32.mrb[0].mxu0
  %v326 = vpop.f32.mrb[0].mxu0
  %v327 = vadd.f32 0.0, %v326
  %v328 = vpop.f32.mrb[0].mxu0
  %329 = vmatprep.mubr.bf16.mxu0 %v134
  %330 = vmatmul.mubr.bf16.gmra.mrb[0].mxu0 %v133
  %v331 = vpop.f32.mrb[0].mxu0
  %v332 = vadd.f32 0.0, %v331
  %v333 = vpop.f32.mrb[0].mxu0
  %v334 = vpop.f32.mrb[0].mxu0
  %v335 = vadd.f32 0.0, %v334
  %v336 = vpop.f32.mrb[0].mxu0
  %337 = vmatprep.mubr.bf16.mxu0 %v136
  %338 = vmatmul.mubr.bf16.gmra.mrb[0].mxu0 %v135
  %v339 = vpop.f32.mrb[0].mxu0
  %v340 = vadd.f32 0.0, %v339
  %v341 = vpop.f32.mrb[0].mxu0
  %v342 = vpop.f32.mrb[0].mxu0
  %v343 = vadd.f32 0.0, %v342
  %v344 = vpop.f32.mrb[0].mxu0
  %345 = vdwg.mxu0
  %s346 = smul.u32 0, 128
  %s347 = scalar_lea.vmem %s4, %s346
  %vm348 = vcmask 261120
  %349 = vst.msk [vmem:[%s347] sm:$0xff] %vm348, %v284
  %350 = vst.msk [vmem:[%s347 + $0x8] sm:$0xff] %vm348, %v287
  %351 = vst.msk [vmem:[%s347 + $0x10] sm:$0xff] %vm348, %v292
  %352 = vst.msk [vmem:[%s347 + $0x18] sm:$0xff] %vm348, %v295
  %353 = vst.msk [vmem:[%s347 + $0x20] sm:$0xff] %vm348, %v300
  %354 = vst.msk [vmem:[%s347 + $0x28] sm:$0xff] %vm348, %v303
  %355 = vst.msk [vmem:[%s347 + $0x30] sm:$0xff] %vm348, %v308
  %356 = vst.msk [vmem:[%s347 + $0x38] sm:$0xff] %vm348, %v311
  %357 = vst.msk [vmem:[%s347 + $0x40] sm:$0xff] %vm348, %v316
  %358 = vst.msk [vmem:[%s347 + $0x48] sm:$0xff] %vm348, %v319
  %359 = vst.msk [vmem:[%s347 + $0x50] sm:$0xff] %vm348, %v324
  %360 = vst.msk [vmem:[%s347 + $0x58] sm:$0xff] %vm348, %v327
  %361 = vst.msk [vmem:[%s347 + $0x60] sm:$0xff] %vm348, %v332
  %362 = vst.msk [vmem:[%s347 + $0x68] sm:$0xff] %vm348, %v335
  %363 = vst.msk [vmem:[%s347 + $0x70] sm:$0xff] %vm348, %v340
  %364 = vst.msk [vmem:[%s347 + $0x78] sm:$0xff] %vm348, %v343
  %v365 = vld [vmem:[#allocation2] sm:$0x1]
  %v366 = vsel %vm348, %v284, 0.0
  %v367 = vsel %vm348, %v287, 0.0
  %v368 = vadd.f32 %v366, %v367
  %v369 = vsel %vm348, %v292, 0.0
  %v370 = vadd.f32 %v368, %v369
  %v371 = vsel %vm348, %v295, 0.0
  %v372 = vadd.f32 %v370, %v371
  %v373 = vsel %vm348, %v300, 0.0
  %v374 = vadd.f32 %v372, %v373
  %v375 = vsel %vm348, %v303, 0.0
  %v376 = vadd.f32 %v374, %v375
  %v377 = vsel %vm348, %v308, 0.0
  %v378 = vadd.f32 %v376, %v377
  %v379 = vsel %vm348, %v311, 0.0
  %v380 = vadd.f32 %v378, %v379
  %v381 = vsel %vm348, %v316, 0.0
  %v382 = vadd.f32 %v380, %v381
  %v383 = vsel %vm348, %v319, 0.0
  %v384 = vadd.f32 %v382, %v383
  %v385 = vsel %vm348, %v324, 0.0
  %v386 = vadd.f32 %v384, %v385
  %v387 = vsel %vm348, %v327, 0.0
  %v388 = vadd.f32 %v386, %v387
  %v389 = vsel %vm348, %v332, 0.0
  %v390 = vadd.f32 %v388, %v389
  %v391 = vsel %vm348, %v335, 0.0
  %v392 = vadd.f32 %v390, %v391
  %v393 = vsel %vm348, %v340, 0.0
  %v394 = vadd.f32 %v392, %v393
  %v395 = vsel %vm348, %v343, 0.0
  %v396 = vadd.f32 %v394, %v395
  %v397 = vrot.slane %v396, 4
  %v398 = vadd.f32 %v396, %v397
  %v399 = vrot.slane %v398, 2
  %v400 = vadd.f32 %v398, %v399
  %v401 = vrot.slane %v400, 1
  %v402 = vadd.f32 %v400, %v401
  %v403 = vadd.f32 %v365, %v402
  %vm404 = vcmask 253952
  %405 = vst.msk [vmem:[#allocation2] sm:$0x1] %vm404, %v403
  %v406 = vld [vmem:[#allocation3] sm:$0x1]
  %v407 = vmul.f32 %v284, %v284
  %v408 = vmul.f32 %v287, %v287
  %v409 = vmul.f32 %v292, %v292
  %v410 = vmul.f32 %v295, %v295
  %v411 = vmul.f32 %v300, %v300
  %v412 = vmul.f32 %v303, %v303
  %v413 = vmul.f32 %v308, %v308
  %v414 = vmul.f32 %v311, %v311
  %v415 = vmul.f32 %v316, %v316
  %v416 = vmul.f32 %v319, %v319
  %v417 = vmul.f32 %v324, %v324
  %v418 = vmul.f32 %v327, %v327
  %v419 = vmul.f32 %v332, %v332
  %v420 = vmul.f32 %v335, %v335
  %v421 = vmul.f32 %v340, %v340
  %v422 = vmul.f32 %v343, %v343
  %v423 = vsel %vm348, %v407, 0.0
  %v424 = vsel %vm348, %v408, 0.0
  %v425 = vadd.f32 %v423, %v424
  %v426 = vsel %vm348, %v409, 0.0
  %v427 = vadd.f32 %v425, %v426
  %v428 = vsel %vm348, %v410, 0.0
  %v429 = vadd.f32 %v427, %v428
  %v430 = vsel %vm348, %v411, 0.0
  %v431 = vadd.f32 %v429, %v430
  %v432 = vsel %vm348, %v412, 0.0
  %v433 = vadd.f32 %v431, %v432
  %v434 = vsel %vm348, %v413, 0.0
  %v435 = vadd.f32 %v433, %v434
  %v436 = vsel %vm348, %v414, 0.0
  %v437 = vadd.f32 %v435, %v436
  %v438 = vsel %vm348, %v415, 0.0
  %v439 = vadd.f32 %v437, %v438
  %v440 = vsel %vm348, %v416, 0.0
  %v441 = vadd.f32 %v439, %v440
  %v442 = vsel %vm348, %v417, 0.0
  %v443 = vadd.f32 %v441, %v442
  %v444 = vsel %vm348, %v418, 0.0
  %v445 = vadd.f32 %v443, %v444
  %v446 = vsel %vm348, %v419, 0.0
  %v447 = vadd.f32 %v445, %v446
  %v448 = vsel %vm348, %v420, 0.0
  %v449 = vadd.f32 %v447, %v448
  %v450 = vsel %vm348, %v421, 0.0
  %v451 = vadd.f32 %v449, %v450
  %v452 = vsel %vm348, %v422, 0.0
  %v453 = vadd.f32 %v451, %v452
  %v454 = vrot.slane %v453, 4
  %v455 = vadd.f32 %v453, %v454
  %v456 = vrot.slane %v455, 2
  %v457 = vadd.f32 %v455, %v456
  %v458 = vrot.slane %v457, 1
  %v459 = vadd.f32 %v457, %v458
  %v460 = vadd.f32 %v406, %v459
  %461 = vst.msk [vmem:[#allocation3] sm:$0x1] %vm404, %v460
  // Predicated region
  $region22: #{discriminator_forward.7} parent=0 // pred_check
    %p462 = pneg %p18
  $region23: #{discriminator_forward.7} parent=0 // pred_check_branch
    %464 = sbr.rel (%p462) target = $region25
  $region24: #{discriminator_forward.7} parent=0 // pred_region
    %v465 = vld [vmem:[#allocation2] sm:$0x1]
    %v466 = vmul.f32 %v465, 0.0078125
    %v467 = vld [vmem:[#allocation3] sm:$0x1]
    %v468 = vmul.f32 %v467, 0.0078125
    %v469 = vmul.f32 %v466, %v466
    %v470 = vsub.f32 %v468, %v469
    %v471 = vmax.f32 %v470, 0.0
    %v472 = vld [vmem:[%s2] sm:$0x1]
    %v473 = vadd.f32 %v471, 1e-05
    %v474 = vrsqrt.pop %v473
    %v475 = vmul.f32 %v472, %v474
    %v476 = vld [vmem:[%s3] sm:$0x1]
    %v477 = vmul.f32 %v466, %v475
    %v478 = vsub.f32 %v476, %v477
    %v479 = vld [vmem:[%s4] sm:$0xff]
    %v480 = vld [vmem:[%s4 + $0x8] sm:$0xff]
    %v481 = vld [vmem:[%s4 + $0x10] sm:$0xff]
    %v482 = vld [vmem:[%s4 + $0x18] sm:$0xff]
    %v483 = vld [vmem:[%s4 + $0x20] sm:$0xff]
    %v484 = vld [vmem:[%s4 + $0x28] sm:$0xff]
    %v485 = vld [vmem:[%s4 + $0x30] sm:$0xff]
    %v486 = vld [vmem:[%s4 + $0x38] sm:$0xff]
    %v487 = vld [vmem:[%s4 + $0x40] sm:$0xff]
    %v488 = vld [vmem:[%s4 + $0x48] sm:$0xff]
    %v489 = vld [vmem:[%s4 + $0x50] sm:$0xff]
    %v490 = vld [vmem:[%s4 + $0x58] sm:$0xff]
    %v491 = vld [vmem:[%s4 + $0x60] sm:$0xff]
    %v492 = vld [vmem:[%s4 + $0x68] sm:$0xff]
    %v493 = vld [vmem:[%s4 + $0x70] sm:$0xff]
    %v494 = vld [vmem:[%s4 + $0x78] sm:$0xff]
    %v496 = vlaneseq
    %v497 = vshrl.u32 %v496, 7
    %v498 = vsub.s32 0, %v497
    %v499 = vrot.slane %v475, %v498
    %v501 = vmul.f32 %v479, %v499
    %v502 = vmul.f32 %v480, %v499
    %v503 = vmul.f32 %v481, %v499
    %v504 = vmul.f32 %v482, %v499
    %v505 = vmul.f32 %v483, %v499
    %v506 = vmul.f32 %v484, %v499
    %v507 = vmul.f32 %v485, %v499
    %v508 = vmul.f32 %v486, %v499
    %v509 = vmul.f32 %v487, %v499
    %v510 = vmul.f32 %v488, %v499
    %v511 = vmul.f32 %v489, %v499
    %v512 = vmul.f32 %v490, %v499
    %v513 = vmul.f32 %v491, %v499
    %v514 = vmul.f32 %v492, %v499
    %v515 = vmul.f32 %v493, %v499
    %v516 = vmul.f32 %v494, %v499
    %v518 = vlaneseq
    %v519 = vshrl.u32 %v518, 7
    %v520 = vsub.s32 0, %v519
    %v521 = vrot.slane %v478, %v520
    %v523 = vadd.f32 %v501, %v521
    %v524 = vadd.f32 %v502, %v521
    %v525 = vadd.f32 %v503, %v521
    %v526 = vadd.f32 %v504, %v521
    %v527 = vadd.f32 %v505, %v521
    %v528 = vadd.f32 %v506, %v521
    %v529 = vadd.f32 %v507, %v521
    %v530 = vadd.f32 %v508, %v521
    %v531 = vadd.f32 %v509, %v521
    %v532 = vadd.f32 %v510, %v521
    %v533 = vadd.f32 %v511, %v521
    %v534 = vadd.f32 %v512, %v521
    %v535 = vadd.f32 %v513, %v521
    %v536 = vadd.f32 %v514, %v521
    %v537 = vadd.f32 %v515, %v521
    %v538 = vadd.f32 %v516, %v521
    %vm539 = vcmp.gt.f32.partialorder %v523, 0.0
    %vm540 = vcmp.gt.f32.partialorder %v524, 0.0
    %vm541 = vcmp.gt.f32.partialorder %v525, 0.0
    %vm542 = vcmp.gt.f32.partialorder %v526, 0.0
    %vm543 = vcmp.gt.f32.partialorder %v527, 0.0
    %vm544 = vcmp.gt.f32.partialorder %v528, 0.0
    %vm545 = vcmp.gt.f32.partialorder %v529, 0.0
    %vm546 = vcmp.gt.f32.partialorder %v530, 0.0
    %vm547 = vcmp.gt.f32.partialorder %v531, 0.0
    %vm548 = vcmp.gt.f32.partialorder %v532, 0.0
    %vm549 = vcmp.gt.f32.partialorder %v533, 0.0
    %vm550 = vcmp.gt.f32.partialorder %v534, 0.0
    %vm551 = vcmp.gt.f32.partialorder %v535, 0.0
    %vm552 = vcmp.gt.f32.partialorder %v536, 0.0
    %vm553 = vcmp.gt.f32.partialorder %v537, 0.0
    %vm554 = vcmp.gt.f32.partialorder %v538, 0.0
    %v555 = vmul.f32 %v523, 0.2
    %v556 = vmul.f32 %v524, 0.2
    %v557 = vmul.f32 %v525, 0.2
    %v558 = vmul.f32 %v526, 0.2
    %v559 = vmul.f32 %v527, 0.2
    %v560 = vmul.f32 %v528, 0.2
    %v561 = vmul.f32 %v529, 0.2
    %v562 = vmul.f32 %v530, 0.2
    %v563 = vmul.f32 %v531, 0.2
    %v564 = vmul.f32 %v532, 0.2
    %v565 = vmul.f32 %v533, 0.2
    %v566 = vmul.f32 %v534, 0.2
    %v567 = vmul.f32 %v535, 0.2
    %v568 = vmul.f32 %v536, 0.2
    %v569 = vmul.f32 %v537, 0.2
    %v570 = vmul.f32 %v538, 0.2
    %v571 = vsel %vm539, %v523, %v555
    %v572 = vsel %vm540, %v524, %v556
    %v573 = vsel %vm541, %v525, %v557
    %v574 = vsel %vm542, %v526, %v558
    %v575 = vsel %vm543, %v527, %v559
    %v576 = vsel %vm544, %v528, %v560
    %v577 = vsel %vm545, %v529, %v561
    %v578 = vsel %vm546, %v530, %v562
    %v579 = vsel %vm547, %v531, %v563
    %v580 = vsel %vm548, %v532, %v564
    %v581 = vsel %vm549, %v533, %v565
    %v582 = vsel %vm550, %v534, %v566
    %v583 = vsel %vm551, %v535, %v567
    %v584 = vsel %vm552, %v536, %v568
    %v585 = vsel %vm553, %v537, %v569
    %v586 = vsel %vm554, %v538, %v570
    %587 = vst.msk [vmem:[%s4] sm:$0xff] %vm348, %v571
    %588 = vst.msk [vmem:[%s4 + $0x8] sm:$0xff] %vm348, %v572
    %589 = vst.msk [vmem:[%s4 + $0x10] sm:$0xff] %vm348, %v573
    %590 = vst.msk [vmem:[%s4 + $0x18] sm:$0xff] %vm348, %v574
    %591 = vst.msk [vmem:[%s4 + $0x20] sm:$0xff] %vm348, %v575
    %592 = vst.msk [vmem:[%s4 + $0x28] sm:$0xff] %vm348, %v576
    %593 = vst.msk [vmem:[%s4 + $0x30] sm:$0xff] %vm348, %v577
    %594 = vst.msk [vmem:[%s4 + $0x38] sm:$0xff] %vm348, %v578
    %595 = vst.msk [vmem:[%s4 + $0x40] sm:$0xff] %vm348, %v579
    %596 = vst.msk [vmem:[%s4 + $0x48] sm:$0xff] %vm348, %v580
    %597 = vst.msk [vmem:[%s4 + $0x50] sm:$0xff] %vm348, %v581
    %598 = vst.msk [vmem:[%s4 + $0x58] sm:$0xff] %vm348, %v582
    %599 = vst.msk [vmem:[%s4 + $0x60] sm:$0xff] %vm348, %v583
    %600 = vst.msk [vmem:[%s4 + $0x68] sm:$0xff] %vm348, %v584
    %601 = vst.msk [vmem:[%s4 + $0x70] sm:$0xff] %vm348, %v585
    %602 = vst.msk [vmem:[%s4 + $0x78] sm:$0xff] %vm348, %v586
  $region25: #{discriminator_forward.7} parent=0 // pred_fallthru
    _
  // Predicated region
  $region26: #{discriminator_forward.7} parent=0 // pred_check
    _
  $region27: #{discriminator_forward.7} parent=0 // pred_check_branch
    %604 = sbr.rel (0) target = $region29
  $region28: #{discriminator_forward.7} parent=0 // pred_region
    _
  $region29: #{discriminator_forward.7} parent=0 // pred_fallthru
    _
  // Predicated region
  $region30: #{discriminator_forward.7} parent=0 // pred_check
    _
  $region31: #{discriminator_forward.7} parent=0 // pred_check_branch
    %606 = sbr.rel (0) target = $region33
  $region32: #{discriminator_forward.7} parent=0 // pred_region
    _
  $region33: #{discriminator_forward.7} parent=0 // pred_fallthru
    _

// kernel: discriminator_forward.8
$region0: #{discriminator_forward.8}
  #allocation0 [shape = 'u32[]', space=smem, size = 0x4, offset = 0x4, fixed_abs, tag = 'smem constant byte address 0x4 - core index']
  #allocation1 [shape = 'u32[144,128]{1,0:T(1,128)}', space=vmem, size = 0x12000, scoped, tag = 'internal scratch']
  #allocation2 [shape = 'f32[1,64]{1,0:T(1,128)}', space=vmem, size = 0x200, scoped, tag = 'scratch operand']
  #allocation3 [shape = 'f32[1,64]{1,0:T(1,128)}', space=vmem, size = 0x200, scoped, tag = 'scratch operand']
  %s0 = inlined_call_operand.vmem [shape: bf16[32,512], index: 0, kind: input, shape index: {}]
  %s1 = inlined_call_operand.vmem [shape: bf16[512,64], index: 1, kind: input, shape index: {}]
  %s2 = inlined_call_operand.vmem [shape: f32[1,64], index: 2, kind: input, shape index: {}]
  %s3 = inlined_call_operand.vmem [shape: f32[1,64], index: 3, kind: input, shape index: {}]
  %s4 = inlined_call_operand.vmem [shape: f32[32,64], index: 4, kind: output, shape index: {}]
  %s5 = sld [smem:[#allocation0]]
  $region34: #{discriminator_forward.8} parent=0
    _
  %s7 = ssub.s32 1, %s5
  %s8 = scalar_select 0, %s7, %s5
  // Predicated region
  $region2: #{discriminator_forward.8} parent=0 // pred_check
    _
  $region3: #{discriminator_forward.8} parent=0 // pred_check_branch
    %10 = sbr.rel (0) target = $region5
  $region4: #{discriminator_forward.8} parent=0 // pred_region
    _
  $region5: #{discriminator_forward.8} parent=0 // pred_fallthru
    _
  // Predicated region
  $region6: #{discriminator_forward.8} parent=0 // pred_check
    _
  $region7: #{discriminator_forward.8} parent=0 // pred_check_branch
    %12 = sbr.rel (0) target = $region9
  $region8: #{discriminator_forward.8} parent=0 // pred_region
    _
  $region9: #{discriminator_forward.8} parent=0 // pred_fallthru
    _
  // Predicated region
  $region10: #{discriminator_forward.8} parent=0 // pred_check
    _
  $region11: #{discriminator_forward.8} parent=0 // pred_check_branch
    %14 = sbr.rel (0) target = $region13
  $region12: #{discriminator_forward.8} parent=0 // pred_region
    _
  $region13: #{discriminator_forward.8} parent=0 // pred_fallthru
    _
  // Predicated region
  $region14: #{discriminator_forward.8} parent=0 // pred_check
    _
  $region15: #{discriminator_forward.8} parent=0 // pred_check_branch
    %16 = sbr.rel (0) target = $region17
  $region16: #{discriminator_forward.8} parent=0 // pred_region
    _
  $region17: #{discriminator_forward.8} parent=0 // pred_fallthru
    _
  %p18 = scmp.eq.s32.totalorder 0, 0
  // Predicated region
  $region18: #{discriminator_forward.8} parent=0 // pred_check
    %p19 = pneg %p18
  $region19: #{discriminator_forward.8} parent=0 // pred_check_branch
    %21 = sbr.rel (%p19) target = $region21
  $region20: #{discriminator_forward.8} parent=0 // pred_region
    %vm22 = vcmask 516096
    %23 = vst.msk [vmem:[#allocation2] sm:$0x1] %vm22, 0.0
    %24 = vst.msk [vmem:[#allocation3] sm:$0x1] %vm22, 0.0
  $region21: #{discriminator_forward.8} parent=0 // pred_fallthru
    _
  %v25 = vld [vmem:[%s0] sm:$0xff]
  %v26 = vld [vmem:[%s0 + $0x8] sm:$0xff]
  %v27 = vld [vmem:[%s0 + $0x10] sm:$0xff]
  %v28 = vld [vmem:[%s0 + $0x18] sm:$0xff]
  %v29 = vld [vmem:[%s0 + $0x20] sm:$0xff]
  %v30 = vld [vmem:[%s0 + $0x28] sm:$0xff]
  %v31 = vld [vmem:[%s0 + $0x30] sm:$0xff]
  %v32 = vld [vmem:[%s0 + $0x38] sm:$0xff]
  %v33 = vld [vmem:[%s1] sm:$0xf]
  %v34 = vld [vmem:[%s1 + $0x4] sm:$0xf]
  %v35 = vld [vmem:[%s1 + $0x8] sm:$0xf]
  %v36 = vld [vmem:[%s1 + $0xc] sm:$0xf]
  %v37 = vld [vmem:[%s1 + $0x10] sm:$0xf]
  %v38 = vld [vmem:[%s1 + $0x14] sm:$0xf]
  %v39 = vld [vmem:[%s1 + $0x18] sm:$0xf]
  %v40 = vld [vmem:[%s1 + $0x1c] sm:$0xf]
  %v41 = vld [vmem:[%s1 + $0x20] sm:$0xf]
  %v42 = vld [vmem:[%s1 + $0x24] sm:$0xf]
  %v43 = vld [vmem:[%s1 + $0x28] sm:$0xf]
  %v44 = vld [vmem:[%s1 + $0x2c] sm:$0xf]
  %v45 = vld [vmem:[%s1 + $0x30] sm:$0xf]
  %v46 = vld [vmem:[%s1 + $0x34] sm:$0xf]
  %v47 = vld [vmem:[%s1 + $0x38] sm:$0xf]
  %v48 = vld [vmem:[%s1 + $0x3c] sm:$0xf]
  %v49 = vld [vmem:[%s1 + $0x40] sm:$0xf]
  %v50 = vld [vmem:[%s1 + $0x44] sm:$0xf]
  %v51 = vld [vmem:[%s1 + $0x48] sm:$0xf]
  %v52 = vld [vmem:[%s1 + $0x4c] sm:$0xf]
  %v53 = vld [vmem:[%s1 + $0x50] sm:$0xf]
  %v54 = vld [vmem:[%s1 + $0x54] sm:$0xf]
  %v55 = vld [vmem:[%s1 + $0x58] sm:$0xf]
  %v56 = vld [vmem:[%s1 + $0x5c] sm:$0xf]
  %v57 = vld [vmem:[%s1 + $0x60] sm:$0xf]
  %v58 = vld [vmem:[%s1 + $0x64] sm:$0xf]
  %v59 = vld [vmem:[%s1 + $0x68] sm:$0xf]
  %v60 = vld [vmem:[%s1 + $0x6c] sm:$0xf]
  %v61 = vld [vmem:[%s1 + $0x70] sm:$0xf]
  %v62 = vld [vmem:[%s1 + $0x74] sm:$0xf]
  %v63 = vld [vmem:[%s1 + $0x78] sm:$0xf]
  %v64 = vld [vmem:[%s1 + $0x7c] sm:$0xf]
  %v65 = vld [vmem:[%s1 + $0x80] sm:$0xf]
  %v66 = vld [vmem:[%s1 + $0x84] sm:$0xf]
  %v67 = vld [vmem:[%s1 + $0x88] sm:$0xf]
  %v68 = vld [vmem:[%s1 + $0x8c] sm:$0xf]
  %v69 = vld [vmem:[%s1 + $0x90] sm:$0xf]
  %v70 = vld [vmem:[%s1 + $0x94] sm:$0xf]
  %v71 = vld [vmem:[%s1 + $0x98] sm:$0xf]
  %v72 = vld [vmem:[%s1 + $0x9c] sm:$0xf]
  %v73 = vld [vmem:[%s1 + $0xa0] sm:$0xf]
  %v74 = vld [vmem:[%s1 + $0xa4] sm:$0xf]
  %v75 = vld [vmem:[%s1 + $0xa8] sm:$0xf]
  %v76 = vld [vmem:[%s1 + $0xac] sm:$0xf]
  %v77 = vld [vmem:[%s1 + $0xb0] sm:$0xf]
  %v78 = vld [vmem:[%s1 + $0xb4] sm:$0xf]
  %v79 = vld [vmem:[%s1 + $0xb8] sm:$0xf]
  %v80 = vld [vmem:[%s1 + $0xbc] sm:$0xf]
  %v81 = vld [vmem:[%s1 + $0xc0] sm:$0xf]
  %v82 = vld [vmem:[%s1 + $0xc4] sm:$0xf]
  %v83 = vld [vmem:[%s1 + $0xc8] sm:$0xf]
  %v84 = vld [vmem:[%s1 + $0xcc] sm:$0xf]
  %v85 = vld [vmem:[%s1 + $0xd0] sm:$0xf]
  %v86 = vld [vmem:[%s1 + $0xd4] sm:$0xf]
  %v87 = vld [vmem:[%s1 + $0xd8] sm:$0xf]
  %v88 = vld [vmem:[%s1 + $0xdc] sm:$0xf]
  %v89 = vld [vmem:[%s1 + $0xe0] sm:$0xf]
  %v90 = vld [vmem:[%s1 + $0xe4] sm:$0xf]
  %v91 = vld [vmem:[%s1 + $0xe8] sm:$0xf]
  %v92 = vld [vmem:[%s1 + $0xec] sm:$0xf]
  %v93 = vld [vmem:[%s1 + $0xf0] sm:$0xf]
  %v94 = vld [vmem:[%s1 + $0xf4] sm:$0xf]
  %v95 = vld [vmem:[%s1 + $0xf8] sm:$0xf]
  %v96 = vld [vmem:[%s1 + $0xfc] sm:$0xf]
  %v105 = vunpack.c.l.b16 %v25
  %v106 = vunpack.c.h.b16 %v25
  %v107 = vunpack.c.l.b16 %v26
  %v108 = vunpack.c.h.b16 %v26
  %v109 = vunpack.c.l.b16 %v27
  %v110 = vunpack.c.h.b16 %v27
  %v111 = vunpack.c.l.b16 %v28
  %v112 = vunpack.c.h.b16 %v28
  %v113 = vunpack.c.l.b16 %v29
  %v114 = vunpack.c.h.b16 %v29
  %v115 = vunpack.c.l.b16 %v30
  %v116 = vunpack.c.h.b16 %v30
  %v117 = vunpack.c.l.b16 %v31
  %v118 = vunpack.c.h.b16 %v31
  %v119 = vunpack.c.l.b16 %v32
  %v120 = vunpack.c.h.b16 %v32
  %v121 = vpack.c.b16 %v109, %v105
  %v122 = vpack.c.b16 %v110, %v106
  %v123 = vpack.c.b16 %v111, %v107
  %v124 = vpack.c.b16 %v112, %v108
  %v125 = vpack.c.b16 %v117, %v113
  %v126 = vpack.c.b16 %v118, %v114
  %v127 = vpack.c.b16 %v119, %v115
  %v128 = vpack.c.b16 %v120, %v116
  %v201 = vunpack.c.l.b16 %v33
  %v202 = vunpack.c.l.b16 %v34
  %v203 = vunpack.c.l.b16 %v35
  %v204 = vunpack.c.l.b16 %v36
  %v205 = vunpack.c.l.b16 %v37
  %v206 = vunpack.c.l.b16 %v38
  %v207 = vunpack.c.l.b16 %v39
  %v208 = vunpack.c.l.b16 %v40
  %v209 = vunpack.c.l.b16 %v41
  %v210 = vunpack.c.l.b16 %v42
  %v211 = vunpack.c.l.b16 %v43
  %v212 = vunpack.c.l.b16 %v44
  %v213 = vunpack.c.l.b16 %v45
  %v214 = vunpack.c.l.b16 %v46
  %v215 = vunpack.c.l.b16 %v47
  %v216 = vunpack.c.l.b16 %v48
  %v217 = vunpack.c.l.b16 %v49
  %v218 = vunpack.c.l.b16 %v50
  %v219 = vunpack.c.l.b16 %v51
  %v220 = vunpack.c.l.b16 %v52
  %v221 = vunpack.c.l.b16 %v53
  %v222 = vunpack.c.l.b16 %v54
  %v223 = vunpack.c.l.b16 %v55
  %v224 = vunpack.c.l.b16 %v56
  %v225 = vunpack.c.l.b16 %v57
  %v226 = vunpack.c.l.b16 %v58
  %v227 = vunpack.c.l.b16 %v59
  %v228 = vunpack.c.l.b16 %v60
  %v229 = vunpack.c.l.b16 %v61
  %v230 = vunpack.c.l.b16 %v62
  %v231 = vunpack.c.l.b16 %v63
  %v232 = vunpack.c.l.b16 %v64
  %v233 = vunpack.c.l.b16 %v65
  %v234 = vunpack.c.l.b16 %v66
  %v235 = vunpack.c.l.b16 %v67
  %v236 = vunpack.c.l.b16 %v68
  %v237 = vunpack.c.l.b16 %v69
  %v238 = vunpack.c.l.b16 %v70
  %v239 = vunpack.c.l.b16 %v71
  %v240 = vunpack.c.l.b16 %v72
  %v241 = vunpack.c.l.b16 %v73
  %v242 = vunpack.c.l.b16 %v74
  %v243 = vunpack.c.l.b16 %v75
  %v244 = vunpack.c.l.b16 %v76
  %v245 = vunpack.c.l.b16 %v77
  %v246 = vunpack.c.l.b16 %v78
  %v247 = vunpack.c.l.b16 %v79
  %v248 = vunpack.c.l.b16 %v80
  %v249 = vunpack.c.l.b16 %v81
  %v250 = vunpack.c.l.b16 %v82
  %v251 = vunpack.c.l.b16 %v83
  %v252 = vunpack.c.l.b16 %v84
  %v253 = vunpack.c.l.b16 %v85
  %v254 = vunpack.c.l.b16 %v86
  %v255 = vunpack.c.l.b16 %v87
  %v256 = vunpack.c.l.b16 %v88
  %v257 = vunpack.c.l.b16 %v89
  %v258 = vunpack.c.l.b16 %v90
  %v259 = vunpack.c.l.b16 %v91
  %v260 = vunpack.c.l.b16 %v92
  %v261 = vunpack.c.l.b16 %v93
  %v262 = vunpack.c.l.b16 %v94
  %v263 = vunpack.c.l.b16 %v95
  %v264 = vunpack.c.l.b16 %v96
  %v265 = vpack.c.b16 %v202, %v201
  %v266 = vpack.c.b16 %v204, %v203
  %v267 = vpack.c.b16 %v206, %v205
  %v268 = vpack.c.b16 %v208, %v207
  %v269 = vpack.c.b16 %v210, %v209
  %v270 = vpack.c.b16 %v212, %v211
  %v271 = vpack.c.b16 %v214, %v213
  %v272 = vpack.c.b16 %v216, %v215
  %v273 = vpack.c.b16 %v218, %v217
  %v274 = vpack.c.b16 %v220, %v219
  %v275 = vpack.c.b16 %v222, %v221
  %v276 = vpack.c.b16 %v224, %v223
  %v277 = vpack.c.b16 %v226, %v225
  %v278 = vpack.c.b16 %v228, %v227
  %v279 = vpack.c.b16 %v230, %v229
  %v280 = vpack.c.b16 %v232, %v231
  %v281 = vpack.c.b16 %v234, %v233
  %v282 = vpack.c.b16 %v236, %v235
  %v283 = vpack.c.b16 %v238, %v237
  %v284 = vpack.c.b16 %v240, %v239
  %v285 = vpack.c.b16 %v242, %v241
  %v286 = vpack.c.b16 %v244, %v243
  %v287 = vpack.c.b16 %v246, %v245
  %v288 = vpack.c.b16 %v248, %v247
  %v289 = vpack.c.b16 %v250, %v249
  %v290 = vpack.c.b16 %v252, %v251
  %v291 = vpack.c.b16 %v254, %v253
  %v292 = vpack.c.b16 %v256, %v255
  %v293 = vpack.c.b16 %v258, %v257
  %v294 = vpack.c.b16 %v260, %v259
  %v295 = vpack.c.b16 %v262, %v261
  %v296 = vpack.c.b16 %v264, %v263
  %329 = vmatprep.subr.bf16.mxu0 0
  %330 = vmatpush1.bf16.msra.mxu0 %v265
  %331 = vmatprep.subr.bf16.mxu0 0
  %332 = vmatpush1.bf16.msra.mxu0 %v266
  %333 = vmatprep.subr.bf16.mxu0 0
  %334 = vmatpush1.bf16.msra.mxu0 %v267
  %335 = vmatprep.subr.bf16.mxu0 0
  %336 = vmatpush1.bf16.msra.mxu0 %v268
  %337 = vmatprep.subr.bf16.mxu0 0
  %338 = vmatpush1.bf16.msra.mxu0 %v269
  %339 = vmatprep.subr.bf16.mxu0 0
  %340 = vmatpush1.bf16.msra.mxu0 %v270
  %341 = vmatprep.subr.bf16.mxu0 0
  %342 = vmatpush1.bf16.msra.mxu0 %v271
  %343 = vmatprep.subr.bf16.mxu0 0
  %344 = vmatpush1.bf16.msra.mxu0 %v272
  %345 = vmatprep.subr.bf16.mxu0 0
  %346 = vmatpush1.bf16.msra.mxu0 %v273
  %347 = vmatprep.subr.bf16.mxu0 0
  %348 = vmatpush1.bf16.msra.mxu0 %v274
  %349 = vmatprep.subr.bf16.mxu0 0
  %350 = vmatpush1.bf16.msra.mxu0 %v275
  %351 = vmatprep.subr.bf16.mxu0 0
  %352 = vmatpush1.bf16.msra.mxu0 %v276
  %353 = vmatprep.subr.bf16.mxu0 0
  %354 = vmatpush1.bf16.msra.mxu0 %v277
  %355 = vmatprep.subr.bf16.mxu0 0
  %356 = vmatpush1.bf16.msra.mxu0 %v278
  %357 = vmatprep.subr.bf16.mxu0 0
  %358 = vmatpush1.bf16.msra.mxu0 %v279
  %359 = vmatprep.subr.bf16.mxu0 0
  %360 = vmatpush1.bf16.msra.mxu0 %v280
  %361 = vmatprep.mubr.bf16.mxu0 %v122
  %362 = vmatmul.mubr.bf16.gmra.mrb[0].mxu0 %v121
  %v363 = vpop.f32.mrb[0].mxu0
  %v364 = vadd.f32 0.0, %v363
  %v365 = vpop.f32.mrb[0].mxu0
  %v366 = vpop.f32.mrb[0].mxu0
  %v367 = vadd.f32 0.0, %v366
  %v368 = vpop.f32.mrb[0].mxu0
  %369 = vmatprep.mubr.bf16.mxu0 %v126
  %370 = vmatmul.mubr.bf16.gmra.mrb[0].mxu0 %v125
  %v371 = vpop.f32.mrb[0].mxu0
  %v372 = vadd.f32 0.0, %v371
  %v373 = vpop.f32.mrb[0].mxu0
  %v374 = vpop.f32.mrb[0].mxu0
  %v375 = vadd.f32 0.0, %v374
  %v376 = vpop.f32.mrb[0].mxu0
  %377 = vdwg.mxu0
  %378 = vmatprep.subr.bf16.mxu0 0
  %379 = vmatpush1.bf16.msra.mxu0 %v281
  %380 = vmatprep.subr.bf16.mxu0 0
  %381 = vmatpush1.bf16.msra.mxu0 %v282
  %382 = vmatprep.subr.bf16.mxu0 0
  %383 = vmatpush1.bf16.msra.mxu0 %v283
  %384 = vmatprep.subr.bf16.mxu0 0
  %385 = vmatpush1.bf16.msra.mxu0 %v284
  %386 = vmatprep.subr.bf16.mxu0 0
  %387 = vmatpush1.bf16.msra.mxu0 %v285
  %388 = vmatprep.subr.bf16.mxu0 0
  %389 = vmatpush1.bf16.msra.mxu0 %v286
  %390 = vmatprep.subr.bf16.mxu0 0
  %391 = vmatpush1.bf16.msra.mxu0 %v287
  %392 = vmatprep.subr.bf16.mxu0 0
  %393 = vmatpush1.bf16.msra.mxu0 %v288
  %394 = vmatprep.subr.bf16.mxu0 0
  %395 = vmatpush1.bf16.msra.mxu0 %v289
  %396 = vmatprep.subr.bf16.mxu0 0
  %397 = vmatpush1.bf16.msra.mxu0 %v290
  %398 = vmatprep.subr.bf16.mxu0 0
  %399 = vmatpush1.bf16.msra.mxu0 %v291
  %400 = vmatprep.subr.bf16.mxu0 0
  %401 = vmatpush1.bf16.msra.mxu0 %v292
  %402 = vmatprep.subr.bf16.mxu0 0
  %403 = vmatpush1.bf16.msra.mxu0 %v293
  %404 = vmatprep.subr.bf16.mxu0 0
  %405 = vmatpush1.bf16.msra.mxu0 %v294
  %406 = vmatprep.subr.bf16.mxu0 0
  %407 = vmatpush1.bf16.msra.mxu0 %v295
  %408 = vmatprep.subr.bf16.mxu0 0
  %409 = vmatpush1.bf16.msra.mxu0 %v296
  %410 = vmatprep.mubr.bf16.mxu0 %v124
  %411 = vmatmul.mubr.bf16.gmra.mrb[0].mxu0 %v123
  %v412 = vpop.f32.mrb[0].mxu0
  %v413 = vadd.f32 %v364, %v412
  %v414 = vpop.f32.mrb[0].mxu0
  %v415 = vpop.f32.mrb[0].mxu0
  %v416 = vadd.f32 %v367, %v415
  %v417 = vpop.f32.mrb[0].mxu0
  %418 = vmatprep.mubr.bf16.mxu0 %v128
  %419 = vmatmul.mubr.bf16.gmra.mrb[0].mxu0 %v127
  %v420 = vpop.f32.mrb[0].mxu0
  %v421 = vadd.f32 %v372, %v420
  %v422 = vpop.f32.mrb[0].mxu0
  %v423 = vpop.f32.mrb[0].mxu0
  %v424 = vadd.f32 %v375, %v423
  %v425 = vpop.f32.mrb[0].mxu0
  %426 = vdwg.mxu0
  %s427 = smul.u32 0, 32
  %s428 = scalar_lea.vmem %s4, %s427
  %vm429 = vcmask 523264
  %430 = vst.msk [vmem:[%s428] sm:$0xff] %vm429, %v413
  %431 = vst.msk [vmem:[%s428 + $0x8] sm:$0xff] %vm429, %v416
  %432 = vst.msk [vmem:[%s428 + $0x10] sm:$0xff] %vm429, %v421
  %433 = vst.msk [vmem:[%s428 + $0x18] sm:$0xff] %vm429, %v424
  %v434 = vld [vmem:[#allocation2] sm:$0x1]
  %v435 = vsel %vm429, %v413, 0.0
  %v436 = vsel %vm429, %v416, 0.0
  %v437 = vadd.f32 %v435, %v436
  %v438 = vsel %vm429, %v421, 0.0
  %v439 = vadd.f32 %v437, %v438
  %v440 = vsel %vm429, %v424, 0.0
  %v441 = vadd.f32 %v439, %v440
  %v442 = vrot.slane %v441, 4
  %v443 = vadd.f32 %v441, %v442
  %v444 = vrot.slane %v443, 2
  %v445 = vadd.f32 %v443, %v444
  %v446 = vrot.slane %v445, 1
  %v447 = vadd.f32 %v445, %v446
  %v448 = vadd.f32 %v434, %v447
  %vm449 = vcmask 516096
  %450 = vst.msk [vmem:[#allocation2] sm:$0x1] %vm449, %v448
  %v451 = vld [vmem:[#allocation3] sm:$0x1]
  %v452 = vmul.f32 %v413, %v413
  %v453 = vmul.f32 %v416, %v416
  %v454 = vmul.f32 %v421, %v421
  %v455 = vmul.f32 %v424, %v424
  %v456 = vsel %vm429, %v452, 0.0
  %v457 = vsel %vm429, %v453, 0.0
  %v458 = vadd.f32 %v456, %v457
  %v459 = vsel %vm429, %v454, 0.0
  %v460 = vadd.f32 %v458, %v459
  %v461 = vsel %vm429, %v455, 0.0
  %v462 = vadd.f32 %v460, %v461
  %v463 = vrot.slane %v462, 4
  %v464 = vadd.f32 %v462, %v463
  %v465 = vrot.slane %v464, 2
  %v466 = vadd.f32 %v464, %v465
  %v467 = vrot.slane %v466, 1
  %v468 = vadd.f32 %v466, %v467
  %v469 = vadd.f32 %v451, %v468
  %470 = vst.msk [vmem:[#allocation3] sm:$0x1] %vm449, %v469
  // Predicated region
  $region22: #{discriminator_forward.8} parent=0 // pred_check
    %p471 = pneg %p18
  $region23: #{discriminator_forward.8} parent=0 // pred_check_branch
    %473 = sbr.rel (%p471) target = $region25
  $region24: #{discriminator_forward.8} parent=0 // pred_region
    %v474 = vld [vmem:[#allocation2] sm:$0x1]
    %v475 = vmul.f32 %v474, 0.03125
    %v476 = vld [vmem:[#allocation3] sm:$0x1]
    %v477 = vmul.f32 %v476, 0.03125
    %v478 = vmul.f32 %v475, %v475
    %v479 = vsub.f32 %v477, %v478
    %v480 = vmax.f32 %v479, 0.0
    %v481 = vld [vmem:[%s2] sm:$0x1]
    %v482 = vadd.f32 %v480, 1e-05
    %v483 = vrsqrt.pop %v482
    %v484 = vmul.f32 %v481, %v483
    %v485 = vld [vmem:[%s3] sm:$0x1]
    %v486 = vmul.f32 %v475, %v484
    %v487 = vsub.f32 %v485, %v486
    %v488 = vld [vmem:[%s4] sm:$0xff]
    %v489 = vld [vmem:[%s4 + $0x8] sm:$0xff]
    %v490 = vld [vmem:[%s4 + $0x10] sm:$0xff]
    %v491 = vld [vmem:[%s4 + $0x18] sm:$0xff]
    %v493 = vlaneseq
    %v494 = vshrl.u32 %v493, 7
    %v495 = vsub.s32 0, %v494
    %v496 = vrot.slane %v484, %v495
    %v498 = vmul.f32 %v488, %v496
    %v499 = vmul.f32 %v489, %v496
    %v500 = vmul.f32 %v490, %v496
    %v501 = vmul.f32 %v491, %v496
    %v503 = vlaneseq
    %v504 = vshrl.u32 %v503, 7
    %v505 = vsub.s32 0, %v504
    %v506 = vrot.slane %v487, %v505
    %v508 = vadd.f32 %v498, %v506
    %v509 = vadd.f32 %v499, %v506
    %v510 = vadd.f32 %v500, %v506
    %v511 = vadd.f32 %v501, %v506
    %vm512 = vcmp.gt.f32.partialorder %v508, 0.0
    %vm513 = vcmp.gt.f32.partialorder %v509, 0.0
    %vm514 = vcmp.gt.f32.partialorder %v510, 0.0
    %vm515 = vcmp.gt.f32.partialorder %v511, 0.0
    %v516 = vmul.f32 %v508, 0.2
    %v517 = vmul.f32 %v509, 0.2
    %v518 = vmul.f32 %v510, 0.2
    %v519 = vmul.f32 %v511, 0.2
    %v520 = vsel %vm512, %v508, %v516
    %v521 = vsel %vm513, %v509, %v517
    %v522 = vsel %vm514, %v510, %v518
    %v523 = vsel %vm515, %v511, %v519
    %524 = vst.msk [vmem:[%s4] sm:$0xff] %vm429, %v520
    %525 = vst.msk [vmem:[%s4 + $0x8] sm:$0xff] %vm429, %v521
    %526 = vst.msk [vmem:[%s4 + $0x10] sm:$0xff] %vm429, %v522
    %527 = vst.msk [vmem:[%s4 + $0x18] sm:$0xff] %vm429, %v523
  $region25: #{discriminator_forward.8} parent=0 // pred_fallthru
    _
  // Predicated region
  $region26: #{discriminator_forward.8} parent=0 // pred_check
    _
  $region27: #{discriminator_forward.8} parent=0 // pred_check_branch
    %529 = sbr.rel (0) target = $region29
  $region28: #{discriminator_forward.8} parent=0 // pred_region
    _
  $region29: #{discriminator_forward.8} parent=0 // pred_fallthru
    _
  // Predicated region
  $region30: #{discriminator_forward.8} parent=0 // pred_check
    _
  $region31: #{discriminator_forward.8} parent=0 // pred_check_branch
    %531 = sbr.rel (0) target = $region33
  $region32: #{discriminator_forward.8} parent=0 // pred_region
    _
  $region33: #{discriminator_forward.8} parent=0 // pred_fallthru
    _

// kernel: discriminator_forward.9
$region0: #{discriminator_forward.9}
  #allocation0 [shape = 'u32[]', space=smem, size = 0x4, offset = 0x4, fixed_abs, tag = 'smem constant byte address 0x4 - core index']
  #allocation1 [shape = 'u32[144,128]{1,0:T(1,128)}', space=vmem, size = 0x12000, scoped, tag = 'internal scratch']
  %s0 = inlined_call_operand.vmem [shape: bf16[8,1024], index: 0, kind: input, shape index: {}]
  %s1 = inlined_call_operand.vmem [shape: bf16[1024,1], index: 1, kind: input, shape index: {}]
  %s2 = inlined_call_operand.vmem [shape: f32[8,1], index: 2, kind: output, shape index: {}]
  %s3 = sld [smem:[#allocation0]]
  $region18: #{discriminator_forward.9} parent=0
    _
  %s5 = ssub.s32 1, %s3
  %s6 = scalar_select 0, %s5, %s3
  // Predicated region
  $region2: #{discriminator_forward.9} parent=0 // pred_check
    _
  $region3: #{discriminator_forward.9} parent=0 // pred_check_branch
    %8 = sbr.rel (0) target = $region5
  $region4: #{discriminator_forward.9} parent=0 // pred_region
    _
  $region5: #{discriminator_forward.9} parent=0 // pred_fallthru
    _
  // Predicated region
  $region6: #{discriminator_forward.9} parent=0 // pred_check
    _
  $region7: #{discriminator_forward.9} parent=0 // pred_check_branch
    %10 = sbr.rel (0) target = $region9
  $region8: #{discriminator_forward.9} parent=0 // pred_region
    _
  $region9: #{discriminator_forward.9} parent=0 // pred_fallthru
    _
  %v12 = vld [vmem:[%s0] sm:$0xff]
  %v13 = vld [vmem:[%s0 + $0x8] sm:$0xff]
  %v14 = vld [vmem:[%s0 + $0x10] sm:$0xff]
  %v15 = vld [vmem:[%s0 + $0x18] sm:$0xff]
  %v16 = vld [vmem:[%s1] sm:$0xf]
  %v17 = vld [vmem:[%s1 + $0x4] sm:$0xf]
  %v18 = vld [vmem:[%s1 + $0x8] sm:$0xf]
  %v19 = vld [vmem:[%s1 + $0xc] sm:$0xf]
  %v20 = vld [vmem:[%s1 + $0x10] sm:$0xf]
  %v21 = vld [vmem:[%s1 + $0x14] sm:$0xf]
  %v22 = vld [vmem:[%s1 + $0x18] sm:$0xf]
  %v23 = vld [vmem:[%s1 + $0x1c] sm:$0xf]
  %v24 = vld [vmem:[%s1 + $0x20] sm:$0xf]
  %v25 = vld [vmem:[%s1 + $0x24] sm:$0xf]
  %v26 = vld [vmem:[%s1 + $0x28] sm:$0xf]
  %v27 = vld [vmem:[%s1 + $0x2c] sm:$0xf]
  %v28 = vld [vmem:[%s1 + $0x30] sm:$0xf]
  %v29 = vld [vmem:[%s1 + $0x34] sm:$0xf]
  %v30 = vld [vmem:[%s1 + $0x38] sm:$0xf]
  %v31 = vld [vmem:[%s1 + $0x3c] sm:$0xf]
  %v32 = vld [vmem:[%s1 + $0x40] sm:$0xf]
  %v33 = vld [vmem:[%s1 + $0x44] sm:$0xf]
  %v34 = vld [vmem:[%s1 + $0x48] sm:$0xf]
  %v35 = vld [vmem:[%s1 + $0x4c] sm:$0xf]
  %v36 = vld [vmem:[%s1 + $0x50] sm:$0xf]
  %v37 = vld [vmem:[%s1 + $0x54] sm:$0xf]
  %v38 = vld [vmem:[%s1 + $0x58] sm:$0xf]
  %v39 = vld [vmem:[%s1 + $0x5c] sm:$0xf]
  %v40 = vld [vmem:[%s1 + $0x60] sm:$0xf]
  %v41 = vld [vmem:[%s1 + $0x64] sm:$0xf]
  %v42 = vld [vmem:[%s1 + $0x68] sm:$0xf]
  %v43 = vld [vmem:[%s1 + $0x6c] sm:$0xf]
  %v44 = vld [vmem:[%s1 + $0x70] sm:$0xf]
  %v45 = vld [vmem:[%s1 + $0x74] sm:$0xf]
  %v46 = vld [vmem:[%s1 + $0x78] sm:$0xf]
  %v47 = vld [vmem:[%s1 + $0x7c] sm:$0xf]
  %v48 = vld [vmem:[%s1 + $0x80] sm:$0xf]
  %v49 = vld [vmem:[%s1 + $0x84] sm:$0xf]
  %v50 = vld [vmem:[%s1 + $0x88] sm:$0xf]
  %v51 = vld [vmem:[%s1 + $0x8c] sm:$0xf]
  %v52 = vld [vmem:[%s1 + $0x90] sm:$0xf]
  %v53 = vld [vmem:[%s1 + $0x94] sm:$0xf]
  %v54 = vld [vmem:[%s1 + $0x98] sm:$0xf]
  %v55 = vld [vmem:[%s1 + $0x9c] sm:$0xf]
  %v56 = vld [vmem:[%s1 + $0xa0] sm:$0xf]
  %v57 = vld [vmem:[%s1 + $0xa4] sm:$0xf]
  %v58 = vld [vmem:[%s1 + $0xa8] sm:$0xf]
  %v59 = vld [vmem:[%s1 + $0xac] sm:$0xf]
  %v60 = vld [vmem:[%s1 + $0xb0] sm:$0xf]
  %v61 = vld [vmem:[%s1 + $0xb4] sm:$0xf]
  %v62 = vld [vmem:[%s1 + $0xb8] sm:$0xf]
  %v63 = vld [vmem:[%s1 + $0xbc] sm:$0xf]
  %v64 = vld [vmem:[%s1 + $0xc0] sm:$0xf]
  %v65 = vld [vmem:[%s1 + $0xc4] sm:$0xf]
  %v66 = vld [vmem:[%s1 + $0xc8] sm:$0xf]
  %v67 = vld [vmem:[%s1 + $0xcc] sm:$0xf]
  %v68 = vld [vmem:[%s1 + $0xd0] sm:$0xf]
  %v69 = vld [vmem:[%s1 + $0xd4] sm:$0xf]
  %v70 = vld [vmem:[%s1 + $0xd8] sm:$0xf]
  %v71 = vld [vmem:[%s1 + $0xdc] sm:$0xf]
  %v72 = vld [vmem:[%s1 + $0xe0] sm:$0xf]
  %v73 = vld [vmem:[%s1 + $0xe4] sm:$0xf]
  %v74 = vld [vmem:[%s1 + $0xe8] sm:$0xf]
  %v75 = vld [vmem:[%s1 + $0xec] sm:$0xf]
  %v76 = vld [vmem:[%s1 + $0xf0] sm:$0xf]
  %v77 = vld [vmem:[%s1 + $0xf4] sm:$0xf]
  %v78 = vld [vmem:[%s1 + $0xf8] sm:$0xf]
  %v79 = vld [vmem:[%s1 + $0xfc] sm:$0xf]
  %v80 = vld [vmem:[%s1 + $0x100] sm:$0xf]
  %v81 = vld [vmem:[%s1 + $0x104] sm:$0xf]
  %v82 = vld [vmem:[%s1 + $0x108] sm:$0xf]
  %v83 = vld [vmem:[%s1 + $0x10c] sm:$0xf]
  %v84 = vld [vmem:[%s1 + $0x110] sm:$0xf]
  %v85 = vld [vmem:[%s1 + $0x114] sm:$0xf]
  %v86 = vld [vmem:[%s1 + $0x118] sm:$0xf]
  %v87 = vld [vmem:[%s1 + $0x11c] sm:$0xf]
  %v88 = vld [vmem:[%s1 + $0x120] sm:$0xf]
  %v89 = vld [vmem:[%s1 + $0x124] sm:$0xf]
  %v90 = vld [vmem:[%s1 + $0x128] sm:$0xf]
  %v91 = vld [vmem:[%s1 + $0x12c] sm:$0xf]
  %v92 = vld [vmem:[%s1 + $0x130] sm:$0xf]
  %v93 = vld [vmem:[%s1 + $0x134] sm:$0xf]
  %v94 = vld [vmem:[%s1 + $0x138] sm:$0xf]
  %v95 = vld [vmem:[%s1 + $0x13c] sm:$0xf]
  %v96 = vld [vmem:[%s1 + $0x140] sm:$0xf]
  %v97 = vld [vmem:[%s1 + $0x144] sm:$0xf]
  %v98 = vld [vmem:[%s1 + $0x148] sm:$0xf]
  %v99 = vld [vmem:[%s1 + $0x14c] sm:$0xf]
  %v100 = vld [vmem:[%s1 + $0x150] sm:$0xf]
  %v101 = vld [vmem:[%s1 + $0x154] sm:$0xf]
  %v102 = vld [vmem:[%s1 + $0x158] sm:$0xf]
  %v103 = vld [vmem:[%s1 + $0x15c] sm:$0xf]
  %v104 = vld [vmem:[%s1 + $0x160] sm:$0xf]
  %v105 = vld [vmem:[%s1 + $0x164] sm:$0xf]
  %v106 = vld [vmem:[%s1 + $0x168] sm:$0xf]
  %v107 = vld [vmem:[%s1 + $0x16c] sm:$0xf]
  %v108 = vld [vmem:[%s1 + $0x170] sm:$0xf]
  %v109 = vld [vmem:[%s1 + $0x174] sm:$0xf]
  %v110 = vld [vmem:[%s1 + $0x178] sm:$0xf]
  %v111 = vld [vmem:[%s1 + $0x17c] sm:$0xf]
  %v112 = vld [vmem:[%s1 + $0x180] sm:$0xf]
  %v113 = vld [vmem:[%s1 + $0x184] sm:$0xf]
  %v114 = vld [vmem:[%s1 + $0x188] sm:$0xf]
  %v115 = vld [vmem:[%s1 + $0x18c] sm:$0xf]
  %v116 = vld [vmem:[%s1 + $0x190] sm:$0xf]
  %v117 = vld [vmem:[%s1 + $0x194] sm:$0xf]
  %v118 = vld [vmem:[%s1 + $0x198] sm:$0xf]
  %v119 = vld [vmem:[%s1 + $0x19c] sm:$0xf]
  %v120 = vld [vmem:[%s1 + $0x1a0] sm:$0xf]
  %v121 = vld [vmem:[%s1 + $0x1a4] sm:$0xf]
  %v122 = vld [vmem:[%s1 + $0x1a8] sm:$0xf]
  %v123 = vld [vmem:[%s1 + $0x1ac] sm:$0xf]
  %v124 = vld [vmem:[%s1 + $0x1b0] sm:$0xf]
  %v125 = vld [vmem:[%s1 + $0x1b4] sm:$0xf]
  %v126 = vld [vmem:[%s1 + $0x1b8] sm:$0xf]
  %v127 = vld [vmem:[%s1 + $0x1bc] sm:$0xf]
  %v128 = vld [vmem:[%s1 + $0x1c0] sm:$0xf]
  %v129 = vld [vmem:[%s1 + $0x1c4] sm:$0xf]
  %v130 = vld [vmem:[%s1 + $0x1c8] sm:$0xf]
  %v131 = vld [vmem:[%s1 + $0x1cc] sm:$0xf]
  %v132 = vld [vmem:[%s1 + $0x1d0] sm:$0xf]
  %v133 = vld [vmem:[%s1 + $0x1d4] sm:$0xf]
  %v134 = vld [vmem:[%s1 + $0x1d8] sm:$0xf]
  %v135 = vld [vmem:[%s1 + $0x1dc] sm:$0xf]
  %v136 = vld [vmem:[%s1 + $0x1e0] sm:$0xf]
  %v137 = vld [vmem:[%s1 + $0x1e4] sm:$0xf]
  %v138 = vld [vmem:[%s1 + $0x1e8] sm:$0xf]
  %v139 = vld [vmem:[%s1 + $0x1ec] sm:$0xf]
  %v140 = vld [vmem:[%s1 + $0x1f0] sm:$0xf]
  %v141 = vld [vmem:[%s1 + $0x1f4] sm:$0xf]
  %v142 = vld [vmem:[%s1 + $0x1f8] sm:$0xf]
  %v143 = vld [vmem:[%s1 + $0x1fc] sm:$0xf]
  %v148 = vunpack.c.l.b16 %v12
  %v149 = vunpack.c.h.b16 %v12
  %v150 = vunpack.c.l.b16 %v13
  %v151 = vunpack.c.h.b16 %v13
  %v152 = vunpack.c.l.b16 %v14
  %v153 = vunpack.c.h.b16 %v14
  %v154 = vunpack.c.l.b16 %v15
  %v155 = vunpack.c.h.b16 %v15
  %v156 = vpack.c.b16 %v148, %v148
  %v157 = vpack.c.b16 %v149, %v149
  %v158 = vpack.c.b16 %v150, %v150
  %v159 = vpack.c.b16 %v151, %v151
  %v160 = vpack.c.b16 %v152, %v152
  %v161 = vpack.c.b16 %v153, %v153
  %v162 = vpack.c.b16 %v154, %v154
  %v163 = vpack.c.b16 %v155, %v155
  %v300 = vunpack.c.l.b16 %v16
  %v301 = vunpack.c.l.b16 %v17
  %v302 = vunpack.c.l.b16 %v18
  %v303 = vunpack.c.l.b16 %v19
  %v304 = vunpack.c.l.b16 %v20
  %v305 = vunpack.c.l.b16 %v21
  %v306 = vunpack.c.l.b16 %v22
  %v307 = vunpack.c.l.b16 %v23
  %v308 = vunpack.c.l.b16 %v24
  %v309 = vunpack.c.l.b16 %v25
  %v310 = vunpack.c.l.b16 %v26
  %v311 = vunpack.c.l.b16 %v27
  %v312 = vunpack.c.l.b16 %v28
  %v313 = vunpack.c.l.b16 %v29
  %v314 = vunpack.c.l.b16 %v30
  %v315 = vunpack.c.l.b16 %v31
  %v316 = vunpack.c.l.b16 %v32
  %v317 = vunpack.c.l.b16 %v33
  %v318 = vunpack.c.l.b16 %v34
  %v319 = vunpack.c.l.b16 %v35
  %v320 = vunpack.c.l.b16 %v36
  %v321 = vunpack.c.l.b16 %v37
  %v322 = vunpack.c.l.b16 %v38
  %v323 = vunpack.c.l.b16 %v39
  %v324 = vunpack.c.l.b16 %v40
  %v325 = vunpack.c.l.b16 %v41
  %v326 = vunpack.c.l.b16 %v42
  %v327 = vunpack.c.l.b16 %v43
  %v328 = vunpack.c.l.b16 %v44
  %v329 = vunpack.c.l.b16 %v45
  %v330 = vunpack.c.l.b16 %v46
  %v331 = vunpack.c.l.b16 %v47
  %v332 = vunpack.c.l.b16 %v48
  %v333 = vunpack.c.l.b16 %v49
  %v334 = vunpack.c.l.b16 %v50
  %v335 = vunpack.c.l.b16 %v51
  %v336 = vunpack.c.l.b16 %v52
  %v337 = vunpack.c.l.b16 %v53
  %v338 = vunpack.c.l.b16 %v54
  %v339 = vunpack.c.l.b16 %v55
  %v340 = vunpack.c.l.b16 %v56
  %v341 = vunpack.c.l.b16 %v57
  %v342 = vunpack.c.l.b16 %v58
  %v343 = vunpack.c.l.b16 %v59
  %v344 = vunpack.c.l.b16 %v60
  %v345 = vunpack.c.l.b16 %v61
  %v346 = vunpack.c.l.b16 %v62
  %v347 = vunpack.c.l.b16 %v63
  %v348 = vunpack.c.l.b16 %v64
  %v349 = vunpack.c.l.b16 %v65
  %v350 = vunpack.c.l.b16 %v66
  %v351 = vunpack.c.l.b16 %v67
  %v352 = vunpack.c.l.b16 %v68
  %v353 = vunpack.c.l.b16 %v69
  %v354 = vunpack.c.l.b16 %v70
  %v355 = vunpack.c.l.b16 %v71
  %v356 = vunpack.c.l.b16 %v72
  %v357 = vunpack.c.l.b16 %v73
  %v358 = vunpack.c.l.b16 %v74
  %v359 = vunpack.c.l.b16 %v75
  %v360 = vunpack.c.l.b16 %v76
  %v361 = vunpack.c.l.b16 %v77
  %v362 = vunpack.c.l.b16 %v78
  %v363 = vunpack.c.l.b16 %v79
  %v364 = vunpack.c.l.b16 %v80
  %v365 = vunpack.c.l.b16 %v81
  %v366 = vunpack.c.l.b16 %v82
  %v367 = vunpack.c.l.b16 %v83
  %v368 = vunpack.c.l.b16 %v84
  %v369 = vunpack.c.l.b16 %v85
  %v370 = vunpack.c.l.b16 %v86
  %v371 = vunpack.c.l.b16 %v87
  %v372 = vunpack.c.l.b16 %v88
  %v373 = vunpack.c.l.b16 %v89
  %v374 = vunpack.c.l.b16 %v90
  %v375 = vunpack.c.l.b16 %v91
  %v376 = vunpack.c.l.b16 %v92
  %v377 = vunpack.c.l.b16 %v93
  %v378 = vunpack.c.l.b16 %v94
  %v379 = vunpack.c.l.b16 %v95
  %v380 = vunpack.c.l.b16 %v96
  %v381 = vunpack.c.l.b16 %v97
  %v382 = vunpack.c.l.b16 %v98
  %v383 = vunpack.c.l.b16 %v99
  %v384 = vunpack.c.l.b16 %v100
  %v385 = vunpack.c.l.b16 %v101
  %v386 = vunpack.c.l.b16 %v102
  %v387 = vunpack.c.l.b16 %v103
  %v388 = vunpack.c.l.b16 %v104
  %v389 = vunpack.c.l.b16 %v105
  %v390 = vunpack.c.l.b16 %v106
  %v391 = vunpack.c.l.b16 %v107
  %v392 = vunpack.c.l.b16 %v108
  %v393 = vunpack.c.l.b16 %v109
  %v394 = vunpack.c.l.b16 %v110
  %v395 = vunpack.c.l.b16 %v111
  %v396 = vunpack.c.l.b16 %v112
  %v397 = vunpack.c.l.b16 %v113
  %v398 = vunpack.c.l.b16 %v114
  %v399 = vunpack.c.l.b16 %v115
  %v400 = vunpack.c.l.b16 %v116
  %v401 = vunpack.c.l.b16 %v117
  %v402 = vunpack.c.l.b16 %v118
  %v403 = vunpack.c.l.b16 %v119
  %v404 = vunpack.c.l.b16 %v120
  %v405 = vunpack.c.l.b16 %v121
  %v406 = vunpack.c.l.b16 %v122
  %v407 = vunpack.c.l.b16 %v123
  %v408 = vunpack.c.l.b16 %v124
  %v409 = vunpack.c.l.b16 %v125
  %v410 = vunpack.c.l.b16 %v126
  %v411 = vunpack.c.l.b16 %v127
  %v412 = vunpack.c.l.b16 %v128
  %v413 = vunpack.c.l.b16 %v129
  %v414 = vunpack.c.l.b16 %v130
  %v415 = vunpack.c.l.b16 %v131
  %v416 = vunpack.c.l.b16 %v132
  %v417 = vunpack.c.l.b16 %v133
  %v418 = vunpack.c.l.b16 %v134
  %v419 = vunpack.c.l.b16 %v135
  %v420 = vunpack.c.l.b16 %v136
  %v421 = vunpack.c.l.b16 %v137
  %v422 = vunpack.c.l.b16 %v138
  %v423 = vunpack.c.l.b16 %v139
  %v424 = vunpack.c.l.b16 %v140
  %v425 = vunpack.c.l.b16 %v141
  %v426 = vunpack.c.l.b16 %v142
  %v427 = vunpack.c.l.b16 %v143
  %v428 = vpack.c.b16 %v301, %v300
  %v429 = vpack.c.b16 %v303, %v302
  %v430 = vpack.c.b16 %v305, %v304
  %v431 = vpack.c.b16 %v307, %v306
  %v432 = vpack.c.b16 %v309, %v308
  %v433 = vpack.c.b16 %v311, %v310
  %v434 = vpack.c.b16 %v313, %v312
  %v435 = vpack.c.b16 %v315, %v314
  %v436 = vpack.c.b16 %v317, %v316
  %v437 = vpack.c.b16 %v319, %v318
  %v438 = vpack.c.b16 %v321, %v320
  %v439 = vpack.c.b16 %v323, %v322
  %v440 = vpack.c.b16 %v325, %v324
  %v441 = vpack.c.b16 %v327, %v326
  %v442 = vpack.c.b16 %v329, %v328
  %v443 = vpack.c.b16 %v331, %v330
  %v444 = vpack.c.b16 %v333, %v332
  %v445 = vpack.c.b16 %v335, %v334
  %v446 = vpack.c.b16 %v337, %v336
  %v447 = vpack.c.b16 %v339, %v338
  %v448 = vpack.c.b16 %v341, %v340
  %v449 = vpack.c.b16 %v343, %v342
  %v450 = vpack.c.b16 %v345, %v344
  %v451 = vpack.c.b16 %v347, %v346
  %v452 = vpack.c.b16 %v349, %v348
  %v453 = vpack.c.b16 %v351, %v350
  %v454 = vpack.c.b16 %v353, %v352
  %v455 = vpack.c.b16 %v355, %v354
  %v456 = vpack.c.b16 %v357, %v356
  %v457 = vpack.c.b16 %v359, %v358
  %v458 = vpack.c.b16 %v361, %v360
  %v459 = vpack.c.b16 %v363, %v362
  %v460 = vpack.c.b16 %v365, %v364
  %v461 = vpack.c.b16 %v367, %v366
  %v462 = vpack.c.b16 %v369, %v368
  %v463 = vpack.c.b16 %v371, %v370
  %v464 = vpack.c.b16 %v373, %v372
  %v465 = vpack.c.b16 %v375, %v374
  %v466 = vpack.c.b16 %v377, %v376
  %v467 = vpack.c.b16 %v379, %v378
  %v468 = vpack.c.b16 %v381, %v380
  %v469 = vpack.c.b16 %v383, %v382
  %v470 = vpack.c.b16 %v385, %v384
  %v471 = vpack.c.b16 %v387, %v386
  %v472 = vpack.c.b16 %v389, %v388
  %v473 = vpack.c.b16 %v391, %v390
  %v474 = vpack.c.b16 %v393, %v392
  %v475 = vpack.c.b16 %v395, %v394
  %v476 = vpack.c.b16 %v397, %v396
  %v477 = vpack.c.b16 %v399, %v398
  %v478 = vpack.c.b16 %v401, %v400
  %v479 = vpack.c.b16 %v403, %v402
  %v480 = vpack.c.b16 %v405, %v404
  %v481 = vpack.c.b16 %v407, %v406
  %v482 = vpack.c.b16 %v409, %v408
  %v483 = vpack.c.b16 %v411, %v410
  %v484 = vpack.c.b16 %v413, %v412
  %v485 = vpack.c.b16 %v415, %v414
  %v486 = vpack.c.b16 %v417, %v416
  %v487 = vpack.c.b16 %v419, %v418
  %v488 = vpack.c.b16 %v421, %v420
  %v489 = vpack.c.b16 %v423, %v422
  %v490 = vpack.c.b16 %v425, %v424
  %v491 = vpack.c.b16 %v427, %v426
  %556 = vmatprep.subr.bf16.mxu0 0
  %557 = vmatpush1.bf16.msra.mxu0 %v428
  %558 = vmatprep.subr.bf16.mxu0 0
  %559 = vmatpush1.bf16.msra.mxu0 %v429
  %560 = vmatprep.subr.bf16.mxu0 0
  %561 = vmatpush1.bf16.msra.mxu0 %v430
  %562 = vmatprep.subr.bf16.mxu0 0
  %563 = vmatpush1.bf16.msra.mxu0 %v431
  %564 = vmatprep.subr.bf16.mxu0 0
  %565 = vmatpush1.bf16.msra.mxu0 %v432
  %566 = vmatprep.subr.bf16.mxu0 0
  %567 = vmatpush1.bf16.msra.mxu0 %v433
  %568 = vmatprep.subr.bf16.mxu0 0
  %569 = vmatpush1.bf16.msra.mxu0 %v434
  %570 = vmatprep.subr.bf16.mxu0 0
  %571 = vmatpush1.bf16.msra.mxu0 %v435
  %572 = vmatprep.subr.bf16.mxu0 0
  %573 = vmatpush1.bf16.msra.mxu0 %v436
  %574 = vmatprep.subr.bf16.mxu0 0
  %575 = vmatpush1.bf16.msra.mxu0 %v437
  %576 = vmatprep.subr.bf16.mxu0 0
  %577 = vmatpush1.bf16.msra.mxu0 %v438
  %578 = vmatprep.subr.bf16.mxu0 0
  %579 = vmatpush1.bf16.msra.mxu0 %v439
  %580 = vmatprep.subr.bf16.mxu0 0
  %581 = vmatpush1.bf16.msra.mxu0 %v440
  %582 = vmatprep.subr.bf16.mxu0 0
  %583 = vmatpush1.bf16.msra.mxu0 %v441
  %584 = vmatprep.subr.bf16.mxu0 0
  %585 = vmatpush1.bf16.msra.mxu0 %v442
  %586 = vmatprep.subr.bf16.mxu0 0
  %587 = vmatpush1.bf16.msra.mxu0 %v443
  %588 = vmatprep.mubr.bf16.mxu0 %v157
  %589 = vmatmul.mubr.bf16.gmra.mrb[0].mxu0 %v156
  %v590 = vpop.f32.mrb[0].mxu0
  %v591 = vadd.f32 0.0, %v590
  %v592 = vpop.f32.mrb[0].mxu0
  %v593 = vpop.f32.mrb[0].mxu0
  %v594 = vpop.f32.mrb[0].mxu0
  %595 = vdwg.mxu0
  %596 = vmatprep.subr.bf16.mxu0 0
  %597 = vmatpush1.bf16.msra.mxu0 %v444
  %598 = vmatprep.subr.bf16.mxu0 0
  %599 = vmatpush1.bf16.msra.mxu0 %v445
  %600 = vmatprep.subr.bf16.mxu0 0
  %601 = vmatpush1.bf16.msra.mxu0 %v446
  %602 = vmatprep.subr.bf16.mxu0 0
  %603 = vmatpush1.bf16.msra.mxu0 %v447
  %604 = vmatprep.subr.bf16.mxu0 0
  %605 = vmatpush1.bf16.msra.mxu0 %v448
  %606 = vmatprep.subr.bf16.mxu0 0
  %607 = vmatpush1.bf16.msra.mxu0 %v449
  %608 = vmatprep.subr.bf16.mxu0 0
  %609 = vmatpush1.bf16.msra.mxu0 %v450
  %610 = vmatprep.subr.bf16.mxu0 0
  %611 = vmatpush1.bf16.msra.mxu0 %v451
  %612 = vmatprep.subr.bf16.mxu0 0
  %613 = vmatpush1.bf16.msra.mxu0 %v452
  %614 = vmatprep.subr.bf16.mxu0 0
  %615 = vmatpush1.bf16.msra.mxu0 %v453
  %616 = vmatprep.subr.bf16.mxu0 0
  %617 = vmatpush1.bf16.msra.mxu0 %v454
  %618 = vmatprep.subr.bf16.mxu0 0
  %619 = vmatpush1.bf16.msra.mxu0 %v455
  %620 = vmatprep.subr.bf16.mxu0 0
  %621 = vmatpush1.bf16.msra.mxu0 %v456
  %622 = vmatprep.subr.bf16.mxu0 0
  %623 = vmatpush1.bf16.msra.mxu0 %v457
  %624 = vmatprep.subr.bf16.mxu0 0
  %625 = vmatpush1.bf16.msra.mxu0 %v458
  %626 = vmatprep.subr.bf16.mxu0 0
  %627 = vmatpush1.bf16.msra.mxu0 %v459
  %628 = vmatprep.mubr.bf16.mxu0 %v159
  %629 = vmatmul.mubr.bf16.gmra.mrb[0].mxu0 %v158
  %v630 = vpop.f32.mrb[0].mxu0
  %v631 = vadd.f32 %v591, %v630
  %v632 = vpop.f32.mrb[0].mxu0
  %v633 = vpop.f32.mrb[0].mxu0
  %v634 = vpop.f32.mrb[0].mxu0
  %635 = vdwg.mxu0
  %636 = vmatprep.subr.bf16.mxu0 0
  %637 = vmatpush1.bf16.msra.mxu0 %v460
  %638 = vmatprep.subr.bf16.mxu0 0
  %639 = vmatpush1.bf16.msra.mxu0 %v461
  %640 = vmatprep.subr.bf16.mxu0 0
  %641 = vmatpush1.bf16.msra.mxu0 %v462
  %642 = vmatprep.subr.bf16.mxu0 0
  %643 = vmatpush1.bf16.msra.mxu0 %v463
  %644 = vmatprep.subr.bf16.mxu0 0
  %645 = vmatpush1.bf16.msra.mxu0 %v464
  %646 = vmatprep.subr.bf16.mxu0 0
  %647 = vmatpush1.bf16.msra.mxu0 %v465
  %648 = vmatprep.subr.bf16.mxu0 0
  %649 = vmatpush1.bf16.msra.mxu0 %v466
  %650 = vmatprep.subr.bf16.mxu0 0
  %651 = vmatpush1.bf16.msra.mxu0 %v467
  %652 = vmatprep.subr.bf16.mxu0 0
  %653 = vmatpush1.bf16.msra.mxu0 %v468
  %654 = vmatprep.subr.bf16.mxu0 0
  %655 = vmatpush1.bf16.msra.mxu0 %v469
  %656 = vmatprep.subr.bf16.mxu0 0
  %657 = vmatpush1.bf16.msra.mxu0 %v470
  %658 = vmatprep.subr.bf16.mxu0 0
  %659 = vmatpush1.bf16.msra.mxu0 %v471
  %660 = vmatprep.subr.bf16.mxu0 0
  %661 = vmatpush1.bf16.msra.mxu0 %v472
  %662 = vmatprep.subr.bf16.mxu0 0
  %663 = vmatpush1.bf16.msra.mxu0 %v473
  %664 = vmatprep.subr.bf16.mxu0 0
  %665 = vmatpush1.bf16.msra.mxu0 %v474
  %666 = vmatprep.subr.bf16.mxu0 0
  %667 = vmatpush1.bf16.msra.mxu0 %v475
  %668 = vmatprep.mubr.bf16.mxu0 %v161
  %669 = vmatmul.mubr.bf16.gmra.mrb[0].mxu0 %v160
  %v670 = vpop.f32.mrb[0].mxu0
  %v671 = vadd.f32 %v631, %v670
  %v672 = vpop.f32.mrb[0].mxu0
  %v673 = vpop.f32.mrb[0].mxu0
  %v674 = vpop.f32.mrb[0].mxu0
  %675 = vdwg.mxu0
  %676 = vmatprep.subr.bf16.mxu0 0
  %677 = vmatpush1.bf16.msra.mxu0 %v476
  %678 = vmatprep.subr.bf16.mxu0 0
  %679 = vmatpush1.bf16.msra.mxu0 %v477
  %680 = vmatprep.subr.bf16.mxu0 0
  %681 = vmatpush1.bf16.msra.mxu0 %v478
  %682 = vmatprep.subr.bf16.mxu0 0
  %683 = vmatpush1.bf16.msra.mxu0 %v479
  %684 = vmatprep.subr.bf16.mxu0 0
  %685 = vmatpush1.bf16.msra.mxu0 %v480
  %686 = vmatprep.subr.bf16.mxu0 0
  %687 = vmatpush1.bf16.msra.mxu0 %v481
  %688 = vmatprep.subr.bf16.mxu0 0
  %689 = vmatpush1.bf16.msra.mxu0 %v482
  %690 = vmatprep.subr.bf16.mxu0 0
  %691 = vmatpush1.bf16.msra.mxu0 %v483
  %692 = vmatprep.subr.bf16.mxu0 0
  %693 = vmatpush1.bf16.msra.mxu0 %v484
  %694 = vmatprep.subr.bf16.mxu0 0
  %695 = vmatpush1.bf16.msra.mxu0 %v485
  %696 = vmatprep.subr.bf16.mxu0 0
  %697 = vmatpush1.bf16.msra.mxu0 %v486
  %698 = vmatprep.subr.bf16.mxu0 0
  %699 = vmatpush1.bf16.msra.mxu0 %v487
  %700 = vmatprep.subr.bf16.mxu0 0
  %701 = vmatpush1.bf16.msra.mxu0 %v488
  %702 = vmatprep.subr.bf16.mxu0 0
  %703 = vmatpush1.bf16.msra.mxu0 %v489
  %704 = vmatprep.subr.bf16.mxu0 0
  %705 = vmatpush1.bf16.msra.mxu0 %v490
  %706 = vmatprep.subr.bf16.mxu0 0
  %707 = vmatpush1.bf16.msra.mxu0 %v491
  %708 = vmatprep.mubr.bf16.mxu0 %v163
  %709 = vmatmul.mubr.bf16.gmra.mrb[0].mxu0 %v162
  %v710 = vpop.f32.mrb[0].mxu0
  %v711 = vadd.f32 %v671, %v710
  %v712 = vpop.f32.mrb[0].mxu0
  %v713 = vpop.f32.mrb[0].mxu0
  %v714 = vpop.f32.mrb[0].mxu0
  %715 = vdwg.mxu0
  %v716 = vmul.f32 %v711, 0.5
  %v717 = vtanh.pop %v716
  %v718 = vadd.f32 %v717, 1.0
  %v719 = vmul.f32 %v718, 0.5
  %vm720 = vcmask 7168
  %721 = vst.msk [vmem:[%s2] sm:$0xff] %vm720, %v719
  // Predicated region
  $region10: #{discriminator_forward.9} parent=0 // pred_check
    _
  $region11: #{discriminator_forward.9} parent=0 // pred_check_branch
    %723 = sbr.rel (0) target = $region13
  $region12: #{discriminator_forward.9} parent=0 // pred_region
    _
  $region13: #{discriminator_forward.9} parent=0 // pred_fallthru
    _
  // Predicated region
  $region14: #{discriminator_forward.9} parent=0 // pred_check
    _
  $region15: #{discriminator_forward.9} parent=0 // pred_check_branch
    %725 = sbr.rel (0) target = $region17
  $region16: #{discriminator_forward.9} parent=0 // pred_region
    _
  $region17: #{discriminator_forward.9} parent=0 // pred_fallthru
    _

</llo_original>
